<compile_context>
chip_gen: v7x
topology: tpu7x:2x2x1
jax: 0.10.0
libtpu: 0.0.40
codegen_flags: <defaults>
</compile_context>

<pallas_src>
import numpy as np
import jax
import jax.numpy as jnp
from jax import lax
from jax.experimental import pallas as pl
from jax.experimental.pallas import tpu as pltpu

# ----------------------- tiny synthetic Virchow config -----------------------
B = 2                       # batch
C = 3                       # image channels
IMG = 16                    # spatial size
PATCH = 8                   # patch size -> 2x2 = 4 patches
NP_PATCH = (IMG // PATCH) ** 2     # 4 patch tokens
N_REAL = NP_PATCH + 1              # 5 tokens (cls + patches)
N_PAD = 8                          # token rows per image, padded to sublane multiple
D = 32                      # embed dim
NHEADS = 4
HEAD_DIM = D // NHEADS
DEPTH = 2
MLP_HIDDEN = 4 * D          # packed SwiGLU fc1 width (split into two halves)
H_HALF = MLP_HIDDEN // 2
CPP = C * PATCH * PATCH     # flattened patch length
LN_EPS = 1e-6
OUT_LANES = 128             # lane-dense padded output width (embedding = 2*D lanes)


# ------------------------------- fused kernel ---------------------------------
def _layernorm(x, g, b):
    mu = jnp.mean(x, axis=-1, keepdims=True)
    var = jnp.mean(jnp.square(x - mu), axis=-1, keepdims=True)
    return (x - mu) * lax.rsqrt(var + LN_EPS) * g + b


def _virchow_kernel(
    xp_ref, patch_w_ref, scatter_ref, embed_bias_ref, attn_bias_ref,
    pool_cls_ref, pool_mean_ref, norm_g_ref, norm_b_ref,
    ln1_g_ref, ln1_b_ref,
    q_w_ref, q_b_ref, k_w_ref, k_b_ref, v_w_ref, v_b_ref,
    proj_w_ref, proj_b_ref,
    ln2_g_ref, ln2_b_ref,
    fc1g_w_ref, fc1g_b_ref, fc1v_w_ref, fc1v_b_ref,
    fc2_w_ref, fc2_b_ref,
    out_ref,
    tok_acc,
):
    d = pl.program_id(0)

    # ------- token embedding for ALL images (runs once, at depth step 0) ------
    @pl.when(d == 0)
    def _embed():
        # [B*NP_PATCH, CPP]bf16 @ [CPP, D]bf16 -> f32
        pe = jnp.dot(xp_ref[...], patch_w_ref[...],
                     preferred_element_type=jnp.float32)
        # scatter patch rows into their per-image slots, add cls/pos/patch-bias
        tok = jnp.dot(scatter_ref[...], pe,
                      preferred_element_type=jnp.float32) + embed_bias_ref[...]
        tok_acc[...] = tok                              # single full-slab store

    x = tok_acc[...]                                    # [ROWS, D] f32

    # --------------------------- attention branch -----------------------------
    h1 = _layernorm(x, ln1_g_ref[...], ln1_b_ref[...])
    h1b = h1.astype(jnp.bfloat16)
    # q scale (1/sqrt(head_dim)) is folded into q_w at parameter init
    q = jnp.dot(h1b, q_w_ref[...], preferred_element_type=jnp.float32) + q_b_ref[...]
    k = jnp.dot(h1b, k_w_ref[...], preferred_element_type=jnp.float32) + k_b_ref[...]
    v = jnp.dot(h1b, v_w_ref[...], preferred_element_type=jnp.float32) + v_b_ref[...]

    # precomputed block-diagonal (per-image) + padded-key mask, loop-invariant
    bias = attn_bias_ref[...]                           # [ROWS, ROWS] f32

    heads = []
    for h in range(NHEADS):
        sl = slice(h * HEAD_DIM, (h + 1) * HEAD_DIM)
        qh, kh, vh = q[:, sl], k[:, sl], v[:, sl]
        s = lax.dot_general(qh, kh, (((1,), (1,)), ((), ())),
                            preferred_element_type=jnp.float32) + bias
        s = s - jnp.max(s, axis=-1, keepdims=True)
        p = jnp.exp(s)
        inv = pl.reciprocal(jnp.sum(p, axis=-1, keepdims=True), approx=True)
        heads.append(jnp.dot(p, vh, preferred_element_type=jnp.float32) * inv)
    # one lane-concat + ONE output projection matmul (bf16 operands, f32 acc)
    o = jnp.concatenate(heads, axis=-1).astype(jnp.bfloat16)      # [ROWS, D]
    x = x + jnp.dot(o, proj_w_ref[...],
                    preferred_element_type=jnp.float32) + proj_b_ref[...]

    # ------------------- SwiGLU MLP branch (SiLU(x1) * x2) --------------------
    h2 = _layernorm(x, ln2_g_ref[...], ln2_b_ref[...])
    h2b = h2.astype(jnp.bfloat16)
    x1 = (jnp.dot(h2b, fc1g_w_ref[...], preferred_element_type=jnp.float32)
          + fc1g_b_ref[...])
    x2 = (jnp.dot(h2b, fc1v_w_ref[...], preferred_element_type=jnp.float32)
          + fc1v_b_ref[...])
    gated = ((x1 * jax.nn.sigmoid(x1)) * x2).astype(jnp.bfloat16)
    x = x + (jnp.dot(gated, fc2_w_ref[...], preferred_element_type=jnp.float32)
             + fc2_b_ref[...])

    tok_acc[...] = x

    # ----- final norm + cls/mean pool (runs once, at the last depth step) -----
    @pl.when(d == DEPTH - 1)
    def _pool():
        normed = _layernorm(x, norm_g_ref[...], norm_b_ref[...])
        cls_tok = jnp.dot(pool_cls_ref[...], normed,
                          preferred_element_type=jnp.float32)        # [B, D]
        pmean = jnp.dot(pool_mean_ref[...], normed,
                        preferred_element_type=jnp.float32)          # [B, D]
        pad = jnp.zeros((out_ref.shape[0], OUT_LANES - 2 * D), jnp.float32)
        # single lane-dense full-width store
        out_ref[...] = jnp.concatenate([cls_tok, pmean, pad], axis=-1)


# ---------------------------------- forward ------------------------------------
def virchow_forward(x, params):
    """x: [B, C, H, W] float32 -> embedding [B, 2*D]."""
    b = x.shape[0]
    rows = b * N_PAD
    # TODO(synk): add a batch-tile grid axis (parallel, for megacore) when b*N_PAD > 128
    assert rows <= 128, "whole batch must fit in one 128-row sublane slab"

    nh, nw = IMG // PATCH, IMG // PATCH
    # Patch extraction (Conv2d with k=stride=PATCH == matmul on flattened patches).
    xp = (
        x.reshape(b, C, nh, PATCH, nw, PATCH)
        .transpose(0, 2, 4, 1, 3, 5)
        .reshape(b * NP_PATCH, CPP)
    ).astype(jnp.bfloat16)

    # --- loop-invariant constants built once in the wrapper (layout plumbing) ---
    # per-image embed bias: row0 = cls + pos0, rows1..4 = pos + patch_b, rows5..7 = 0
    per_img = jnp.concatenate(
        [params["cls_token"] + params["pos_embed"][0:1],
         params["pos_embed"][1:] + params["patch_b"],
         jnp.zeros((N_PAD - N_REAL, D), jnp.float32)], axis=0)       # [N_PAD, D]
    embed_bias = jnp.tile(per_img, (b, 1))                           # [rows, D]

    # scatter matrix: patch row (bi, p) -> token row bi*N_PAD + 1 + p
    scat_np = np.zeros((rows, b * NP_PATCH), np.float32)
    for bi in range(b):
        for p in range(NP_PATCH):
            scat_np[bi * N_PAD + 1 + p, bi * NP_PATCH + p] = 1.0
    scatter = jnp.asarray(scat_np)

    # block-diagonal attention mask (per-image) + mask padded key rows
    ii = np.arange(rows)
    same_img = (ii[:, None] // N_PAD) == (ii[None, :] // N_PAD)
    real_key = (ii[None, :] % N_PAD) < N_REAL
    attn_bias = jnp.asarray(np.where(same_img & real_key, 0.0, -1e30)
                            .astype(np.float32))                     # [rows, rows]

    # pooling matrices: select cls row / average the patch rows of each image
    pcls_np = np.zeros((b, rows), np.float32)
    pmean_np = np.zeros((b, rows), np.float32)
    for bi in range(b):
        pcls_np[bi, bi * N_PAD] = 1.0
        pmean_np[bi, bi * N_PAD + 1: bi * N_PAD + N_REAL] = 1.0 / NP_PATCH
    pool_cls = jnp.asarray(pcls_np)
    pool_mean = jnp.asarray(pmean_np)

    def _const(shape):               # depth-invariant operands (fetched once)
        n = len(shape)
        return pl.BlockSpec(tuple(shape), lambda d, _n=n: (0,) * _n)

    def _stacked(trailing):          # per-layer weights, streamed once per layer
        n = len(trailing)
        return pl.BlockSpec((None,) + tuple(trailing),
                            lambda d, _n=n: (d,) + (0,) * _n)

    out = pl.pallas_call(
        _virchow_kernel,
        out_shape=jax.ShapeDtypeStruct((b, OUT_LANES), jnp.float32),
        grid=(DEPTH,),
        in_specs=[
            _const((b * NP_PATCH, CPP)),   # xp (bf16)
            _const((CPP, D)),              # patch_w (bf16)
            _const((rows, b * NP_PATCH)),  # patch scatter matrix
            _const((rows, D)),             # embed bias (cls/pos/patch_b)
            _const((rows, rows)),          # attention mask bias
            _const((b, rows)),             # cls pooling matrix
            _const((b, rows)),             # mean pooling matrix
            _const((1, D)),                # final norm gamma
            _const((1, D)),                # final norm beta
            _stacked((1, D)),              # ln1_g
            _stacked((1, D)),              # ln1_b
            _stacked((D, D)),              # q_w (bf16, scale folded)
            _stacked((1, D)),              # q_b
            _stacked((D, D)),              # k_w (bf16)
            _stacked((1, D)),              # k_b
            _stacked((D, D)),              # v_w (bf16)
            _stacked((1, D)),              # v_b
            _stacked((D, D)),              # proj_w (bf16)
            _stacked((1, D)),              # proj_b
            _stacked((1, D)),              # ln2_g
            _stacked((1, D)),              # ln2_b
            _stacked((D, H_HALF)),         # fc1 gate weights  (x1, bf16)
            _stacked((1, H_HALF)),         # fc1 gate bias
            _stacked((D, H_HALF)),         # fc1 value weights (x2, bf16)
            _stacked((1, H_HALF)),         # fc1 value bias
            _stacked((H_HALF, D)),         # fc2_w (bf16)
            _stacked((1, D)),              # fc2_b
        ],
        # constant output block index -> single HBM writeback after the last step
        out_specs=pl.BlockSpec((b, OUT_LANES), lambda d: (0, 0)),
        scratch_shapes=[pltpu.VMEM((rows, D), jnp.float32)],
        compiler_params=pltpu.CompilerParams(
            dimension_semantics=("arbitrary",),
            vmem_limit_bytes=32 * 1024 * 1024,
        ),
    )(
        xp,
        params["patch_w"], scatter, embed_bias, attn_bias, pool_cls, pool_mean,
        params["norm_g"], params["norm_b"],
        params["ln1_g"], params["ln1_b"],
        params["q_w"], params["q_b"], params["k_w"], params["k_b"],
        params["v_w"], params["v_b"],
        params["proj_w"], params["proj_b"],
        params["ln2_g"], params["ln2_b"],
        params["fc1g_w"], params["fc1g_b"], params["fc1v_w"], params["fc1v_b"],
        params["fc2_w"], params["fc2_b"],
    )
    return out[:, : 2 * D]


# ------------------------------ parameter init ---------------------------------
def init_params(key):
    def normal(k, shape, std=0.02):
        return (std * jax.random.normal(k, shape)).astype(jnp.float32)

    keys = iter(jax.random.split(key, 3 + 4 * DEPTH))
    scale = 1.0 / (HEAD_DIM ** 0.5)
    bf16 = jnp.bfloat16

    params = {
        "patch_w": normal(next(keys), (CPP, D)).astype(bf16),
        "patch_b": jnp.zeros((1, D), jnp.float32),
        "cls_token": normal(next(keys), (1, D)),
        "pos_embed": normal(next(keys), (N_REAL, D)),
        "norm_g": jnp.ones((1, D), jnp.float32),
        "norm_b": jnp.zeros((1, D), jnp.float32),
    }

    per_block = {name: [] for name in (
        "ln1_g", "ln1_b", "q_w", "q_b", "k_w", "k_b", "v_w", "v_b",
        "proj_w", "proj_b", "ln2_g", "ln2_b",
        "fc1g_w", "fc1g_b", "fc1v_w", "fc1v_b", "fc2_w", "fc2_b")}
    for _ in range(DEPTH):
        qkv_w = normal(next(keys), (D, 3 * D))
        fc1_w = normal(next(keys), (D, MLP_HIDDEN))       # packed SwiGLU fc1
        per_block["ln1_g"].append(jnp.ones((1, D), jnp.float32))
        per_block["ln1_b"].append(jnp.zeros((1, D), jnp.float32))
        # fold the attention scale (1/sqrt(head_dim)) into the q weights
        per_block["q_w"].append((qkv_w[:, :D] * scale).astype(bf16))
        per_block["q_b"].append(jnp.zeros((1, D), jnp.float32))
        per_block["k_w"].append(qkv_w[:, D:2 * D].astype(bf16))
        per_block["k_b"].append(jnp.zeros((1, D), jnp.float32))
        per_block["v_w"].append(qkv_w[:, 2 * D:].astype(bf16))
        per_block["v_b"].append(jnp.zeros((1, D), jnp.float32))
        per_block["proj_w"].append(normal(next(keys), (D, D)).astype(bf16))
        per_block["proj_b"].append(jnp.zeros((1, D), jnp.float32))
        per_block["ln2_g"].append(jnp.ones((1, D), jnp.float32))
        per_block["ln2_b"].append(jnp.zeros((1, D), jnp.float32))
        per_block["fc1g_w"].append(fc1_w[:, :H_HALF].astype(bf16))   # SiLU gate (x1)
        per_block["fc1g_b"].append(jnp.zeros((1, H_HALF), jnp.float32))
        per_block["fc1v_w"].append(fc1_w[:, H_HALF:].astype(bf16))   # value half (x2)
        per_block["fc1v_b"].append(jnp.zeros((1, H_HALF), jnp.float32))
        per_block["fc2_w"].append(normal(next(keys), (H_HALF, D)).astype(bf16))
        per_block["fc2_b"].append(jnp.zeros((1, D), jnp.float32))
    for name, vals in per_block.items():
        params[name] = jnp.stack(vals, axis=0)
    return params


# ------------------------- pure-JAX reference (for checking) --------------------
def virchow_reference(x, params):
    b = x.shape[0]
    nh, nw = IMG // PATCH, IMG // PATCH
    xp = (x.reshape(b, C, nh, PATCH, nw, PATCH)
           .transpose(0, 2, 4, 1, 3, 5)
           .reshape(b, NP_PATCH, CPP))
    f32 = lambda a: a.astype(jnp.float32)

    def ln(t, g, bb):
        mu = t.mean(-1, keepdims=True)
        var = ((t - mu) ** 2).mean(-1, keepdims=True)
        return (t - mu) * lax.rsqrt(var + LN_EPS) * g + bb

    tok = jnp.einsum("bpc,cd->bpd", xp, f32(params["patch_w"])) + params["patch_b"]
    cls = jnp.broadcast_to(params["cls_token"][None], (b, 1, D))
    tok = jnp.concatenate([cls, tok], axis=1) + params["pos_embed"][None]

    for i in range(DEPTH):
        h1 = ln(tok, params["ln1_g"][i], params["ln1_b"][i])
        q = jnp.einsum("bnd,de->bne", h1, f32(params["q_w"][i])) + params["q_b"][i]
        k = jnp.einsum("bnd,de->bne", h1, f32(params["k_w"][i])) + params["k_b"][i]
        v = jnp.einsum("bnd,de->bne", h1, f32(params["v_w"][i])) + params["v_b"][i]
        q = q.reshape(b, N_REAL, NHEADS, HEAD_DIM).transpose(0, 2, 1, 3)
        k = k.reshape(b, N_REAL, NHEADS, HEAD_DIM).transpose(0, 2, 1, 3)
        v = v.reshape(b, N_REAL, NHEADS, HEAD_DIM).transpose(0, 2, 1, 3)
        s = jnp.einsum("bhqd,bhkd->bhqk", q, k)   # scale already folded into q_w
        p = jax.nn.softmax(s, axis=-1)
        o = jnp.einsum("bhqk,bhkd->bhqd", p, v)
        o = o.transpose(0, 2, 1, 3).reshape(b, N_REAL, D)
        tok = tok + jnp.einsum("bnd,de->bne", o, f32(params["proj_w"][i])) + params["proj_b"][i]
        h2 = ln(tok, params["ln2_g"][i], params["ln2_b"][i])
        x1 = jnp.einsum("bnd,dh->bnh", h2, f32(params["fc1g_w"][i])) + params["fc1g_b"][i]
        x2 = jnp.einsum("bnd,dh->bnh", h2, f32(params["fc1v_w"][i])) + params["fc1v_b"][i]
        gated = jax.nn.silu(x1) * x2
        tok = tok + jnp.einsum("bnh,hd->bnd", gated, f32(params["fc2_w"][i])) + params["fc2_b"][i]

    tok = ln(tok, params["norm_g"], params["norm_b"])
    return jnp.concatenate([tok[:, 0], tok[:, 1:].mean(1)], axis=-1)


# ----------------------------------- main ---------------------------------------
if __name__ == "__main__":
    key = jax.random.PRNGKey(0)
    k_x, k_p = jax.random.split(key)
    x = jax.random.normal(k_x, (B, C, IMG, IMG), dtype=jnp.float32)
    params = init_params(k_p)

    fwd = jax.jit(virchow_forward)
    emb = fwd(x, params)
    jax.block_until_ready(emb)

    assert emb.shape == (B, 2 * D), emb.shape
    assert emb.dtype == jnp.float32
    assert bool(jnp.all(jnp.isfinite(emb)))

    ref = virchow_reference(x, params)
    max_err = float(jnp.max(jnp.abs(emb - ref)))
    assert jnp.allclose(emb, ref, rtol=5e-2, atol=5e-2), f"max_err={max_err}"

    print("KERNEL_OK")
</pallas_src>

<mosaic_0001>
module attributes {stable_mosaic.version = 11 : i64} {
  func.func @_virchow_kernel(%arg0: i32, %arg1: memref<8x192xbf16, #tpu.memory_space<vmem>>, %arg2: memref<192x32xbf16, #tpu.memory_space<vmem>>, %arg3: memref<16x8xf32, #tpu.memory_space<vmem>>, %arg4: memref<16x32xf32, #tpu.memory_space<vmem>>, %arg5: memref<16x16xf32, #tpu.memory_space<vmem>>, %arg6: memref<2x16xf32, #tpu.memory_space<vmem>>, %arg7: memref<2x16xf32, #tpu.memory_space<vmem>>, %arg8: memref<1x32xf32, #tpu.memory_space<vmem>>, %arg9: memref<1x32xf32, #tpu.memory_space<vmem>>, %arg10: memref<1x1x32xf32, #tpu.memory_space<vmem>>, %arg11: memref<1x1x32xf32, #tpu.memory_space<vmem>>, %arg12: memref<1x32x32xbf16, #tpu.memory_space<vmem>>, %arg13: memref<1x1x32xf32, #tpu.memory_space<vmem>>, %arg14: memref<1x32x32xbf16, #tpu.memory_space<vmem>>, %arg15: memref<1x1x32xf32, #tpu.memory_space<vmem>>, %arg16: memref<1x32x32xbf16, #tpu.memory_space<vmem>>, %arg17: memref<1x1x32xf32, #tpu.memory_space<vmem>>, %arg18: memref<1x32x32xbf16, #tpu.memory_space<vmem>>, %arg19: memref<1x1x32xf32, #tpu.memory_space<vmem>>, %arg20: memref<1x1x32xf32, #tpu.memory_space<vmem>>, %arg21: memref<1x1x32xf32, #tpu.memory_space<vmem>>, %arg22: memref<1x32x64xbf16, #tpu.memory_space<vmem>>, %arg23: memref<1x1x64xf32, #tpu.memory_space<vmem>>, %arg24: memref<1x32x64xbf16, #tpu.memory_space<vmem>>, %arg25: memref<1x1x64xf32, #tpu.memory_space<vmem>>, %arg26: memref<1x64x32xbf16, #tpu.memory_space<vmem>>, %arg27: memref<1x1x32xf32, #tpu.memory_space<vmem>>, %arg28: memref<2x128xf32, #tpu.memory_space<vmem>>, %arg29: memref<16x32xf32, #tpu.memory_space<vmem>>) attributes {dimension_semantics = [#tpu.dimension_semantics<arbitrary>], iteration_bounds = array<i64: 2>, scalar_prefetch = 0 : i64, scratch_operands = 1 : i64, tpu.core_type = #tpu.core_type<tc>, window_params = [{pipeline_mode = #tpu.pipeline_mode<synchronous>, transform_indices = @transform_0, window_bounds = array<i64: 8, 192>}, {pipeline_mode = #tpu.pipeline_mode<synchronous>, transform_indices = @transform_1, window_bounds = array<i64: 192, 32>}, {pipeline_mode = #tpu.pipeline_mode<synchronous>, transform_indices = @transform_2, window_bounds = array<i64: 16, 8>}, {pipeline_mode = #tpu.pipeline_mode<synchronous>, transform_indices = @transform_3, window_bounds = array<i64: 16, 32>}, {pipeline_mode = #tpu.pipeline_mode<synchronous>, transform_indices = @transform_4, window_bounds = array<i64: 16, 16>}, {pipeline_mode = #tpu.pipeline_mode<synchronous>, transform_indices = @transform_5, window_bounds = array<i64: 2, 16>}, {pipeline_mode = #tpu.pipeline_mode<synchronous>, transform_indices = @transform_6, window_bounds = array<i64: 2, 16>}, {pipeline_mode = #tpu.pipeline_mode<synchronous>, transform_indices = @transform_7, window_bounds = array<i64: 1, 32>}, {pipeline_mode = #tpu.pipeline_mode<synchronous>, transform_indices = @transform_8, window_bounds = array<i64: 1, 32>}, {transform_indices = @transform_9, window_bounds = array<i64: 1, 1, 32>}, {transform_indices = @transform_10, window_bounds = array<i64: 1, 1, 32>}, {transform_indices = @transform_11, window_bounds = array<i64: 1, 32, 32>}, {transform_indices = @transform_12, window_bounds = array<i64: 1, 1, 32>}, {transform_indices = @transform_13, window_bounds = array<i64: 1, 32, 32>}, {transform_indices = @transform_14, window_bounds = array<i64: 1, 1, 32>}, {transform_indices = @transform_15, window_bounds = array<i64: 1, 32, 32>}, {transform_indices = @transform_16, window_bounds = array<i64: 1, 1, 32>}, {transform_indices = @transform_17, window_bounds = array<i64: 1, 32, 32>}, {transform_indices = @transform_18, window_bounds = array<i64: 1, 1, 32>}, {transform_indices = @transform_19, window_bounds = array<i64: 1, 1, 32>}, {transform_indices = @transform_20, window_bounds = array<i64: 1, 1, 32>}, {transform_indices = @transform_21, window_bounds = array<i64: 1, 32, 64>}, {transform_indices = @transform_22, window_bounds = array<i64: 1, 1, 64>}, {transform_indices = @transform_23, window_bounds = array<i64: 1, 32, 64>}, {transform_indices = @transform_24, window_bounds = array<i64: 1, 1, 64>}, {transform_indices = @transform_25, window_bounds = array<i64: 1, 64, 32>}, {transform_indices = @transform_26, window_bounds = array<i64: 1, 1, 32>}, {pipeline_mode = #tpu.pipeline_mode<synchronous>, transform_indices = @transform_27, window_bounds = array<i64: 2, 128>}]} {
    %c0_i32 = arith.constant 0 : i32
    %0 = arith.cmpi eq, %arg0, %c0_i32 : i32
    %1 = arith.extui %0 : i1 to i32
    %c0_i32_0 = arith.constant 0 : i32
    %2 = arith.cmpi ne, %1, %c0_i32_0 : i32
    scf.if %2 {
      %c0_94 = arith.constant 0 : index
      %c0_95 = arith.constant 0 : index
      %188 = vector.load %arg1[%c0_94, %c0_95] : memref<8x192xbf16, #tpu.memory_space<vmem>>, vector<8x192xbf16>
      %c0_96 = arith.constant 0 : index
      %c0_97 = arith.constant 0 : index
      %189 = vector.load %arg2[%c0_96, %c0_97] : memref<192x32xbf16, #tpu.memory_space<vmem>>, vector<192x32xbf16>
      %cst_98 = arith.constant dense<0.000000e+00> : vector<8x32xf32>
      %190 = tpu.matmul %188, %189, %cst_98 {dimension_numbers = #tpu.dot_dimension_numbers<[1], [0], [0], [1], [0, 0, 1, 1], [], []>} : vector<8x192xbf16>, vector<192x32xbf16>, vector<8x32xf32> -> vector<8x32xf32>
      %c0_99 = arith.constant 0 : index
      %c0_100 = arith.constant 0 : index
      %191 = vector.load %arg3[%c0_99, %c0_100] : memref<16x8xf32, #tpu.memory_space<vmem>>, vector<16x8xf32>
      %cst_101 = arith.constant dense<0.000000e+00> : vector<16x32xf32>
      %192 = tpu.matmul %191, %190, %cst_101 {dimension_numbers = #tpu.dot_dimension_numbers<[1], [0], [0], [1], [0, 0, 1, 1], [], []>} : vector<16x8xf32>, vector<8x32xf32>, vector<16x32xf32> -> vector<16x32xf32>
      %c0_102 = arith.constant 0 : index
      %c0_103 = arith.constant 0 : index
      %193 = vector.load %arg4[%c0_102, %c0_103] : memref<16x32xf32, #tpu.memory_space<vmem>>, vector<16x32xf32>
      %194 = arith.addf %192, %193 : vector<16x32xf32>
      %c0_104 = arith.constant 0 : index
      %c0_105 = arith.constant 0 : index
      %195 = vector.load %arg29[%c0_104, %c0_105] : memref<16x32xf32, #tpu.memory_space<vmem>>, vector<16x32xf32>
      tpu.vector_store %arg29[%c0_104, %c0_105], %194 {strides = array<i32>} : memref<16x32xf32, #tpu.memory_space<vmem>>, vector<16x32xf32>,
    } else {
    }
    %c0 = arith.constant 0 : index
    %c0_1 = arith.constant 0 : index
    %3 = vector.load %arg29[%c0, %c0_1] : memref<16x32xf32, #tpu.memory_space<vmem>>, vector<16x32xf32>
    %c0_2 = arith.constant 0 : index
    %c0_3 = arith.constant 0 : index
    %c0_4 = arith.constant 0 : index
    %4 = vector.load %arg10[%c0_2, %c0_3, %c0_4] : memref<1x1x32xf32, #tpu.memory_space<vmem>>, vector<1x1x32xf32>
    %5 = vector.shape_cast %4 : vector<1x1x32xf32> to vector<1x32xf32>
    %c0_5 = arith.constant 0 : index
    %c0_6 = arith.constant 0 : index
    %c0_7 = arith.constant 0 : index
    %6 = vector.load %arg11[%c0_5, %c0_6, %c0_7] : memref<1x1x32xf32, #tpu.memory_space<vmem>>, vector<1x1x32xf32>
    %7 = vector.shape_cast %6 : vector<1x1x32xf32> to vector<1x32xf32>
    %cst = arith.constant dense<0.000000e+00> : vector<16xf32>
    %8 = vector.multi_reduction <add>, %3, %cst [1] : vector<16x32xf32> to vector<16xf32>
    %9 = vector.shape_cast %8 : vector<16xf32> to vector<16x1xf32>
    %cst_8 = arith.constant 3.200000e+01 : f32
    %10 = vector.broadcast %cst_8 : f32 to vector<16x1xf32>
    %11 = arith.divf %9, %10 : vector<16x1xf32>
    %12 = vector.broadcast %11 : vector<16x1xf32> to vector<16x32xf32>
    %13 = arith.subf %3, %12 : vector<16x32xf32>
    %14 = arith.mulf %13, %13 : vector<16x32xf32>
    %cst_9 = arith.constant dense<0.000000e+00> : vector<16xf32>
    %15 = vector.multi_reduction <add>, %14, %cst_9 [1] : vector<16x32xf32> to vector<16xf32>
    %16 = vector.shape_cast %15 : vector<16xf32> to vector<16x1xf32>
    %cst_10 = arith.constant 3.200000e+01 : f32
    %17 = vector.broadcast %cst_10 : f32 to vector<16x1xf32>
    %18 = arith.divf %16, %17 : vector<16x1xf32>
    %19 = vector.broadcast %11 : vector<16x1xf32> to vector<16x32xf32>
    %20 = arith.subf %3, %19 : vector<16x32xf32>
    %cst_11 = arith.constant 9.99999997E-7 : f32
    %21 = vector.broadcast %cst_11 : f32 to vector<16x1xf32>
    %22 = arith.addf %18, %21 : vector<16x1xf32>
    %23 = math.rsqrt %22 : vector<16x1xf32>
    %24 = vector.broadcast %23 : vector<16x1xf32> to vector<16x32xf32>
    %25 = arith.mulf %20, %24 : vector<16x32xf32>
    %26 = vector.broadcast %5 : vector<1x32xf32> to vector<16x32xf32>
    %27 = arith.mulf %25, %26 : vector<16x32xf32>
    %28 = vector.broadcast %7 : vector<1x32xf32> to vector<16x32xf32>
    %29 = arith.addf %27, %28 : vector<16x32xf32>
    %30 = arith.truncf %29 : vector<16x32xf32> to vector<16x32xbf16>
    %c0_12 = arith.constant 0 : index
    %c0_13 = arith.constant 0 : index
    %c0_14 = arith.constant 0 : index
    %31 = vector.load %arg12[%c0_12, %c0_13, %c0_14] : memref<1x32x32xbf16, #tpu.memory_space<vmem>>, vector<1x32x32xbf16>
    %32 = vector.shape_cast %31 : vector<1x32x32xbf16> to vector<32x32xbf16>
    %cst_15 = arith.constant dense<0.000000e+00> : vector<16x32xf32>
    %33 = tpu.matmul %30, %32, %cst_15 {dimension_numbers = #tpu.dot_dimension_numbers<[1], [0], [0], [1], [0, 0, 1, 1], [], []>} : vector<16x32xbf16>, vector<32x32xbf16>, vector<16x32xf32> -> vector<16x32xf32>
    %c0_16 = arith.constant 0 : index
    %c0_17 = arith.constant 0 : index
    %c0_18 = arith.constant 0 : index
    %34 = vector.load %arg13[%c0_16, %c0_17, %c0_18] : memref<1x1x32xf32, #tpu.memory_space<vmem>>, vector<1x1x32xf32>
    %35 = vector.shape_cast %34 : vector<1x1x32xf32> to vector<1x32xf32>
    %36 = vector.broadcast %35 : vector<1x32xf32> to vector<16x32xf32>
    %37 = arith.addf %33, %36 : vector<16x32xf32>
    %c0_19 = arith.constant 0 : index
    %c0_20 = arith.constant 0 : index
    %c0_21 = arith.constant 0 : index
    %38 = vector.load %arg14[%c0_19, %c0_20, %c0_21] : memref<1x32x32xbf16, #tpu.memory_space<vmem>>, vector<1x32x32xbf16>
    %39 = vector.shape_cast %38 : vector<1x32x32xbf16> to vector<32x32xbf16>
    %cst_22 = arith.constant dense<0.000000e+00> : vector<16x32xf32>
    %40 = tpu.matmul %30, %39, %cst_22 {dimension_numbers = #tpu.dot_dimension_numbers<[1], [0], [0], [1], [0, 0, 1, 1], [], []>} : vector<16x32xbf16>, vector<32x32xbf16>, vector<16x32xf32> -> vector<16x32xf32>
    %c0_23 = arith.constant 0 : index
    %c0_24 = arith.constant 0 : index
    %c0_25 = arith.constant 0 : index
    %41 = vector.load %arg15[%c0_23, %c0_24, %c0_25] : memref<1x1x32xf32, #tpu.memory_space<vmem>>, vector<1x1x32xf32>
    %42 = vector.shape_cast %41 : vector<1x1x32xf32> to vector<1x32xf32>
    %43 = vector.broadcast %42 : vector<1x32xf32> to vector<16x32xf32>
    %44 = arith.addf %40, %43 : vector<16x32xf32>
    %c0_26 = arith.constant 0 : index
    %c0_27 = arith.constant 0 : index
    %c0_28 = arith.constant 0 : index
    %45 = vector.load %arg16[%c0_26, %c0_27, %c0_28] : memref<1x32x32xbf16, #tpu.memory_space<vmem>>, vector<1x32x32xbf16>
    %46 = vector.shape_cast %45 : vector<1x32x32xbf16> to vector<32x32xbf16>
    %cst_29 = arith.constant dense<0.000000e+00> : vector<16x32xf32>
    %47 = tpu.matmul %30, %46, %cst_29 {dimension_numbers = #tpu.dot_dimension_numbers<[1], [0], [0], [1], [0, 0, 1, 1], [], []>} : vector<16x32xbf16>, vector<32x32xbf16>, vector<16x32xf32> -> vector<16x32xf32>
    %c0_30 = arith.constant 0 : index
    %c0_31 = arith.constant 0 : index
    %c0_32 = arith.constant 0 : index
    %48 = vector.load %arg17[%c0_30, %c0_31, %c0_32] : memref<1x1x32xf32, #tpu.memory_space<vmem>>, vector<1x1x32xf32>
    %49 = vector.shape_cast %48 : vector<1x1x32xf32> to vector<1x32xf32>
    %50 = vector.broadcast %49 : vector<1x32xf32> to vector<16x32xf32>
    %51 = arith.addf %47, %50 : vector<16x32xf32>
    %c0_33 = arith.constant 0 : index
    %c0_34 = arith.constant 0 : index
    %52 = vector.load %arg5[%c0_33, %c0_34] : memref<16x16xf32, #tpu.memory_space<vmem>>, vector<16x16xf32>
    %53 = vector.extract_strided_slice %37 {offsets = [0, 0], sizes = [16, 8], strides = [1, 1]} : vector<16x32xf32> to vector<16x8xf32>
    %54 = vector.extract_strided_slice %44 {offsets = [0, 0], sizes = [16, 8], strides = [1, 1]} : vector<16x32xf32> to vector<16x8xf32>
    %55 = vector.extract_strided_slice %51 {offsets = [0, 0], sizes = [16, 8], strides = [1, 1]} : vector<16x32xf32> to vector<16x8xf32>
    %cst_35 = arith.constant dense<0.000000e+00> : vector<16x16xf32>
    %56 = tpu.matmul %53, %54, %cst_35 {dimension_numbers = #tpu.dot_dimension_numbers<[1], [1], [0], [0], [0, 0, 1, 0], [], []>} : vector<16x8xf32>, vector<16x8xf32>, vector<16x16xf32> -> vector<16x16xf32>
    %57 = arith.addf %56, %52 : vector<16x16xf32>
    %cst_36 = arith.constant dense<0xFF800000> : vector<16xf32>
    %58 = vector.multi_reduction <maximumf>, %57, %cst_36 [1] : vector<16x16xf32> to vector<16xf32>
    %59 = vector.shape_cast %58 : vector<16xf32> to vector<16x1xf32>
    %60 = vector.broadcast %59 : vector<16x1xf32> to vector<16x16xf32>
    %61 = arith.subf %57, %60 : vector<16x16xf32>
    %62 = math.exp %61 : vector<16x16xf32>
    %cst_37 = arith.constant dense<0.000000e+00> : vector<16xf32>
    %63 = vector.multi_reduction <add>, %62, %cst_37 [1] : vector<16x16xf32> to vector<16xf32>
    %64 = vector.shape_cast %63 : vector<16xf32> to vector<16x1xf32>
    %65 = tpu.reciprocal %64 {approx = true} : vector<16x1xf32> -> vector<16x1xf32>
    %cst_38 = arith.constant dense<0.000000e+00> : vector<16x8xf32>
    %66 = tpu.matmul %62, %55, %cst_38 {dimension_numbers = #tpu.dot_dimension_numbers<[1], [0], [0], [1], [0, 0, 1, 1], [], []>} : vector<16x16xf32>, vector<16x8xf32>, vector<16x8xf32> -> vector<16x8xf32>
    %67 = vector.broadcast %65 : vector<16x1xf32> to vector<16x8xf32>
    %68 = arith.mulf %66, %67 : vector<16x8xf32>
    %69 = vector.extract_strided_slice %37 {offsets = [0, 8], sizes = [16, 8], strides = [1, 1]} : vector<16x32xf32> to vector<16x8xf32>
    %70 = vector.extract_strided_slice %44 {offsets = [0, 8], sizes = [16, 8], strides = [1, 1]} : vector<16x32xf32> to vector<16x8xf32>
    %71 = vector.extract_strided_slice %51 {offsets = [0, 8], sizes = [16, 8], strides = [1, 1]} : vector<16x32xf32> to vector<16x8xf32>
    %cst_39 = arith.constant dense<0.000000e+00> : vector<16x16xf32>
    %72 = tpu.matmul %69, %70, %cst_39 {dimension_numbers = #tpu.dot_dimension_numbers<[1], [1], [0], [0], [0, 0, 1, 0], [], []>} : vector<16x8xf32>, vector<16x8xf32>, vector<16x16xf32> -> vector<16x16xf32>
    %73 = arith.addf %72, %52 : vector<16x16xf32>
    %cst_40 = arith.constant dense<0xFF800000> : vector<16xf32>
    %74 = vector.multi_reduction <maximumf>, %73, %cst_40 [1] : vector<16x16xf32> to vector<16xf32>
    %75 = vector.shape_cast %74 : vector<16xf32> to vector<16x1xf32>
    %76 = vector.broadcast %75 : vector<16x1xf32> to vector<16x16xf32>
    %77 = arith.subf %73, %76 : vector<16x16xf32>
    %78 = math.exp %77 : vector<16x16xf32>
    %cst_41 = arith.constant dense<0.000000e+00> : vector<16xf32>
    %79 = vector.multi_reduction <add>, %78, %cst_41 [1] : vector<16x16xf32> to vector<16xf32>
    %80 = vector.shape_cast %79 : vector<16xf32> to vector<16x1xf32>
    %81 = tpu.reciprocal %80 {approx = true} : vector<16x1xf32> -> vector<16x1xf32>
    %cst_42 = arith.constant dense<0.000000e+00> : vector<16x8xf32>
    %82 = tpu.matmul %78, %71, %cst_42 {dimension_numbers = #tpu.dot_dimension_numbers<[1], [0], [0], [1], [0, 0, 1, 1], [], []>} : vector<16x16xf32>, vector<16x8xf32>, vector<16x8xf32> -> vector<16x8xf32>
    %83 = vector.broadcast %81 : vector<16x1xf32> to vector<16x8xf32>
    %84 = arith.mulf %82, %83 : vector<16x8xf32>
    %85 = vector.extract_strided_slice %37 {offsets = [0, 16], sizes = [16, 8], strides = [1, 1]} : vector<16x32xf32> to vector<16x8xf32>
    %86 = vector.extract_strided_slice %44 {offsets = [0, 16], sizes = [16, 8], strides = [1, 1]} : vector<16x32xf32> to vector<16x8xf32>
    %87 = vector.extract_strided_slice %51 {offsets = [0, 16], sizes = [16, 8], strides = [1, 1]} : vector<16x32xf32> to vector<16x8xf32>
    %cst_43 = arith.constant dense<0.000000e+00> : vector<16x16xf32>
    %88 = tpu.matmul %85, %86, %cst_43 {dimension_numbers = #tpu.dot_dimension_numbers<[1], [1], [0], [0], [0, 0, 1, 0], [], []>} : vector<16x8xf32>, vector<16x8xf32>, vector<16x16xf32> -> vector<16x16xf32>
    %89 = arith.addf %88, %52 : vector<16x16xf32>
    %cst_44 = arith.constant dense<0xFF800000> : vector<16xf32>
    %90 = vector.multi_reduction <maximumf>, %89, %cst_44 [1] : vector<16x16xf32> to vector<16xf32>
    %91 = vector.shape_cast %90 : vector<16xf32> to vector<16x1xf32>
    %92 = vector.broadcast %91 : vector<16x1xf32> to vector<16x16xf32>
    %93 = arith.subf %89, %92 : vector<16x16xf32>
    %94 = math.exp %93 : vector<16x16xf32>
    %cst_45 = arith.constant dense<0.000000e+00> : vector<16xf32>
    %95 = vector.multi_reduction <add>, %94, %cst_45 [1] : vector<16x16xf32> to vector<16xf32>
    %96 = vector.shape_cast %95 : vector<16xf32> to vector<16x1xf32>
    %97 = tpu.reciprocal %96 {approx = true} : vector<16x1xf32> -> vector<16x1xf32>
    %cst_46 = arith.constant dense<0.000000e+00> : vector<16x8xf32>
    %98 = tpu.matmul %94, %87, %cst_46 {dimension_numbers = #tpu.dot_dimension_numbers<[1], [0], [0], [1], [0, 0, 1, 1], [], []>} : vector<16x16xf32>, vector<16x8xf32>, vector<16x8xf32> -> vector<16x8xf32>
    %99 = vector.broadcast %97 : vector<16x1xf32> to vector<16x8xf32>
    %100 = arith.mulf %98, %99 : vector<16x8xf32>
    %101 = vector.extract_strided_slice %37 {offsets = [0, 24], sizes = [16, 8], strides = [1, 1]} : vector<16x32xf32> to vector<16x8xf32>
    %102 = vector.extract_strided_slice %44 {offsets = [0, 24], sizes = [16, 8], strides = [1, 1]} : vector<16x32xf32> to vector<16x8xf32>
    %103 = vector.extract_strided_slice %51 {offsets = [0, 24], sizes = [16, 8], strides = [1, 1]} : vector<16x32xf32> to vector<16x8xf32>
    %cst_47 = arith.constant dense<0.000000e+00> : vector<16x16xf32>
    %104 = tpu.matmul %101, %102, %cst_47 {dimension_numbers = #tpu.dot_dimension_numbers<[1], [1], [0], [0], [0, 0, 1, 0], [], []>} : vector<16x8xf32>, vector<16x8xf32>, vector<16x16xf32> -> vector<16x16xf32>
    %105 = arith.addf %104, %52 : vector<16x16xf32>
    %cst_48 = arith.constant dense<0xFF800000> : vector<16xf32>
    %106 = vector.multi_reduction <maximumf>, %105, %cst_48 [1] : vector<16x16xf32> to vector<16xf32>
    %107 = vector.shape_cast %106 : vector<16xf32> to vector<16x1xf32>
    %108 = vector.broadcast %107 : vector<16x1xf32> to vector<16x16xf32>
    %109 = arith.subf %105, %108 : vector<16x16xf32>
    %110 = math.exp %109 : vector<16x16xf32>
    %cst_49 = arith.constant dense<0.000000e+00> : vector<16xf32>
    %111 = vector.multi_reduction <add>, %110, %cst_49 [1] : vector<16x16xf32> to vector<16xf32>
    %112 = vector.shape_cast %111 : vector<16xf32> to vector<16x1xf32>
    %113 = tpu.reciprocal %112 {approx = true} : vector<16x1xf32> -> vector<16x1xf32>
    %cst_50 = arith.constant dense<0.000000e+00> : vector<16x8xf32>
    %114 = tpu.matmul %110, %103, %cst_50 {dimension_numbers = #tpu.dot_dimension_numbers<[1], [0], [0], [1], [0, 0, 1, 1], [], []>} : vector<16x16xf32>, vector<16x8xf32>, vector<16x8xf32> -> vector<16x8xf32>
    %115 = vector.broadcast %113 : vector<16x1xf32> to vector<16x8xf32>
    %116 = arith.mulf %114, %115 : vector<16x8xf32>
    %117 = tpu.concatenate %68, %84, %100, %116 in 1 : vector<16x8xf32>, vector<16x8xf32>, vector<16x8xf32>, vector<16x8xf32> -> vector<16x32xf32>
    %118 = arith.truncf %117 : vector<16x32xf32> to vector<16x32xbf16>
    %c0_51 = arith.constant 0 : index
    %c0_52 = arith.constant 0 : index
    %c0_53 = arith.constant 0 : index
    %119 = vector.load %arg18[%c0_51, %c0_52, %c0_53] : memref<1x32x32xbf16, #tpu.memory_space<vmem>>, vector<1x32x32xbf16>
    %120 = vector.shape_cast %119 : vector<1x32x32xbf16> to vector<32x32xbf16>
    %cst_54 = arith.constant dense<0.000000e+00> : vector<16x32xf32>
    %121 = tpu.matmul %118, %120, %cst_54 {dimension_numbers = #tpu.dot_dimension_numbers<[1], [0], [0], [1], [0, 0, 1, 1], [], []>} : vector<16x32xbf16>, vector<32x32xbf16>, vector<16x32xf32> -> vector<16x32xf32>
    %122 = arith.addf %3, %121 : vector<16x32xf32>
    %c0_55 = arith.constant 0 : index
    %c0_56 = arith.constant 0 : index
    %c0_57 = arith.constant 0 : index
    %123 = vector.load %arg19[%c0_55, %c0_56, %c0_57] : memref<1x1x32xf32, #tpu.memory_space<vmem>>, vector<1x1x32xf32>
    %124 = vector.shape_cast %123 : vector<1x1x32xf32> to vector<1x32xf32>
    %125 = vector.broadcast %124 : vector<1x32xf32> to vector<16x32xf32>
    %126 = arith.addf %122, %125 : vector<16x32xf32>
    %c0_58 = arith.constant 0 : index
    %c0_59 = arith.constant 0 : index
    %c0_60 = arith.constant 0 : index
    %127 = vector.load %arg20[%c0_58, %c0_59, %c0_60] : memref<1x1x32xf32, #tpu.memory_space<vmem>>, vector<1x1x32xf32>
    %128 = vector.shape_cast %127 : vector<1x1x32xf32> to vector<1x32xf32>
    %c0_61 = arith.constant 0 : index
    %c0_62 = arith.constant 0 : index
    %c0_63 = arith.constant 0 : index
    %129 = vector.load %arg21[%c0_61, %c0_62, %c0_63] : memref<1x1x32xf32, #tpu.memory_space<vmem>>, vector<1x1x32xf32>
    %130 = vector.shape_cast %129 : vector<1x1x32xf32> to vector<1x32xf32>
    %cst_64 = arith.constant dense<0.000000e+00> : vector<16xf32>
    %131 = vector.multi_reduction <add>, %126, %cst_64 [1] : vector<16x32xf32> to vector<16xf32>
    %132 = vector.shape_cast %131 : vector<16xf32> to vector<16x1xf32>
    %cst_65 = arith.constant 3.200000e+01 : f32
    %133 = vector.broadcast %cst_65 : f32 to vector<16x1xf32>
    %134 = arith.divf %132, %133 : vector<16x1xf32>
    %135 = vector.broadcast %134 : vector<16x1xf32> to vector<16x32xf32>
    %136 = arith.subf %126, %135 : vector<16x32xf32>
    %137 = arith.mulf %136, %136 : vector<16x32xf32>
    %cst_66 = arith.constant dense<0.000000e+00> : vector<16xf32>
    %138 = vector.multi_reduction <add>, %137, %cst_66 [1] : vector<16x32xf32> to vector<16xf32>
    %139 = vector.shape_cast %138 : vector<16xf32> to vector<16x1xf32>
    %cst_67 = arith.constant 3.200000e+01 : f32
    %140 = vector.broadcast %cst_67 : f32 to vector<16x1xf32>
    %141 = arith.divf %139, %140 : vector<16x1xf32>
    %142 = vector.broadcast %134 : vector<16x1xf32> to vector<16x32xf32>
    %143 = arith.subf %126, %142 : vector<16x32xf32>
    %cst_68 = arith.constant 9.99999997E-7 : f32
    %144 = vector.broadcast %cst_68 : f32 to vector<16x1xf32>
    %145 = arith.addf %141, %144 : vector<16x1xf32>
    %146 = math.rsqrt %145 : vector<16x1xf32>
    %147 = vector.broadcast %146 : vector<16x1xf32> to vector<16x32xf32>
    %148 = arith.mulf %143, %147 : vector<16x32xf32>
    %149 = vector.broadcast %128 : vector<1x32xf32> to vector<16x32xf32>
    %150 = arith.mulf %148, %149 : vector<16x32xf32>
    %151 = vector.broadcast %130 : vector<1x32xf32> to vector<16x32xf32>
    %152 = arith.addf %150, %151 : vector<16x32xf32>
    %153 = arith.truncf %152 : vector<16x32xf32> to vector<16x32xbf16>
    %c0_69 = arith.constant 0 : index
    %c0_70 = arith.constant 0 : index
    %c0_71 = arith.constant 0 : index
    %154 = vector.load %arg22[%c0_69, %c0_70, %c0_71] : memref<1x32x64xbf16, #tpu.memory_space<vmem>>, vector<1x32x64xbf16>
    %155 = vector.shape_cast %154 : vector<1x32x64xbf16> to vector<32x64xbf16>
    %cst_72 = arith.constant dense<0.000000e+00> : vector<16x64xf32>
    %156 = tpu.matmul %153, %155, %cst_72 {dimension_numbers = #tpu.dot_dimension_numbers<[1], [0], [0], [1], [0, 0, 1, 1], [], []>} : vector<16x32xbf16>, vector<32x64xbf16>, vector<16x64xf32> -> vector<16x64xf32>
    %c0_73 = arith.constant 0 : index
    %c0_74 = arith.constant 0 : index
    %c0_75 = arith.constant 0 : index
    %157 = vector.load %arg23[%c0_73, %c0_74, %c0_75] : memref<1x1x64xf32, #tpu.memory_space<vmem>>, vector<1x1x64xf32>
    %158 = vector.shape_cast %157 : vector<1x1x64xf32> to vector<1x64xf32>
    %159 = vector.broadcast %158 : vector<1x64xf32> to vector<16x64xf32>
    %160 = arith.addf %156, %159 : vector<16x64xf32>
    %c0_76 = arith.constant 0 : index
    %c0_77 = arith.constant 0 : index
    %c0_78 = arith.constant 0 : index
    %161 = vector.load %arg24[%c0_76, %c0_77, %c0_78] : memref<1x32x64xbf16, #tpu.memory_space<vmem>>, vector<1x32x64xbf16>
    %162 = vector.shape_cast %161 : vector<1x32x64xbf16> to vector<32x64xbf16>
    %cst_79 = arith.constant dense<0.000000e+00> : vector<16x64xf32>
    %163 = tpu.matmul %153, %162, %cst_79 {dimension_numbers = #tpu.dot_dimension_numbers<[1], [0], [0], [1], [0, 0, 1, 1], [], []>} : vector<16x32xbf16>, vector<32x64xbf16>, vector<16x64xf32> -> vector<16x64xf32>
    %c0_80 = arith.constant 0 : index
    %c0_81 = arith.constant 0 : index
    %c0_82 = arith.constant 0 : index
    %164 = vector.load %arg25[%c0_80, %c0_81, %c0_82] : memref<1x1x64xf32, #tpu.memory_space<vmem>>, vector<1x1x64xf32>
    %165 = vector.shape_cast %164 : vector<1x1x64xf32> to vector<1x64xf32>
    %166 = vector.broadcast %165 : vector<1x64xf32> to vector<16x64xf32>
    %167 = arith.addf %163, %166 : vector<16x64xf32>
    %168 = arith.negf %160 : vector<16x64xf32>
    %169 = math.exp %168 : vector<16x64xf32>
    %cst_83 = arith.constant 1.000000e+00 : f32
    %170 = vector.broadcast %cst_83 : f32 to vector<16x64xf32>
    %171 = arith.addf %170, %169 : vector<16x64xf32>
    %172 = arith.divf %170, %171 : vector<16x64xf32>
    %173 = arith.mulf %160, %172 : vector<16x64xf32>
    %174 = arith.mulf %173, %167 : vector<16x64xf32>
    %175 = arith.truncf %174 : vector<16x64xf32> to vector<16x64xbf16>
    %c0_84 = arith.constant 0 : index
    %c0_85 = arith.constant 0 : index
    %c0_86 = arith.constant 0 : index
    %176 = vector.load %arg26[%c0_84, %c0_85, %c0_86] : memref<1x64x32xbf16, #tpu.memory_space<vmem>>, vector<1x64x32xbf16>
    %177 = vector.shape_cast %176 : vector<1x64x32xbf16> to vector<64x32xbf16>
    %cst_87 = arith.constant dense<0.000000e+00> : vector<16x32xf32>
    %178 = tpu.matmul %175, %177, %cst_87 {dimension_numbers = #tpu.dot_dimension_numbers<[1], [0], [0], [1], [0, 0, 1, 1], [], []>} : vector<16x64xbf16>, vector<64x32xbf16>, vector<16x32xf32> -> vector<16x32xf32>
    %c0_88 = arith.constant 0 : index
    %c0_89 = arith.constant 0 : index
    %c0_90 = arith.constant 0 : index
    %179 = vector.load %arg27[%c0_88, %c0_89, %c0_90] : memref<1x1x32xf32, #tpu.memory_space<vmem>>, vector<1x1x32xf32>
    %180 = vector.shape_cast %179 : vector<1x1x32xf32> to vector<1x32xf32>
    %181 = vector.broadcast %180 : vector<1x32xf32> to vector<16x32xf32>
    %182 = arith.addf %178, %181 : vector<16x32xf32>
    %183 = arith.addf %126, %182 : vector<16x32xf32>
    %c0_91 = arith.constant 0 : index
    %c0_92 = arith.constant 0 : index
    %184 = vector.load %arg29[%c0_91, %c0_92] : memref<16x32xf32, #tpu.memory_space<vmem>>, vector<16x32xf32>
    tpu.vector_store %arg29[%c0_91, %c0_92], %183 {strides = array<i32>} : memref<16x32xf32, #tpu.memory_space<vmem>>, vector<16x32xf32>,
    %c1_i32 = arith.constant 1 : i32
    %185 = arith.cmpi eq, %arg0, %c1_i32 : i32
    %186 = arith.extui %185 : i1 to i32
    %c0_i32_93 = arith.constant 0 : i32
    %187 = arith.cmpi ne, %186, %c0_i32_93 : i32
    scf.if %187 {
      %c0_94 = arith.constant 0 : index
      %c0_95 = arith.constant 0 : index
      %188 = vector.load %arg8[%c0_94, %c0_95] : memref<1x32xf32, #tpu.memory_space<vmem>>, vector<1x32xf32>
      %c0_96 = arith.constant 0 : index
      %c0_97 = arith.constant 0 : index
      %189 = vector.load %arg9[%c0_96, %c0_97] : memref<1x32xf32, #tpu.memory_space<vmem>>, vector<1x32xf32>
      %cst_98 = arith.constant dense<0.000000e+00> : vector<16xf32>
      %190 = vector.multi_reduction <add>, %183, %cst_98 [1] : vector<16x32xf32> to vector<16xf32>
      %191 = vector.shape_cast %190 : vector<16xf32> to vector<16x1xf32>
      %cst_99 = arith.constant 3.200000e+01 : f32
      %192 = vector.broadcast %cst_99 : f32 to vector<16x1xf32>
      %193 = arith.divf %191, %192 : vector<16x1xf32>
      %194 = vector.broadcast %193 : vector<16x1xf32> to vector<16x32xf32>
      %195 = arith.subf %183, %194 : vector<16x32xf32>
      %196 = arith.mulf %195, %195 : vector<16x32xf32>
      %cst_100 = arith.constant dense<0.000000e+00> : vector<16xf32>
      %197 = vector.multi_reduction <add>, %196, %cst_100 [1] : vector<16x32xf32> to vector<16xf32>
      %198 = vector.shape_cast %197 : vector<16xf32> to vector<16x1xf32>
      %cst_101 = arith.constant 3.200000e+01 : f32
      %199 = vector.broadcast %cst_101 : f32 to vector<16x1xf32>
      %200 = arith.divf %198, %199 : vector<16x1xf32>
      %201 = vector.broadcast %193 : vector<16x1xf32> to vector<16x32xf32>
      %202 = arith.subf %183, %201 : vector<16x32xf32>
      %cst_102 = arith.constant 9.99999997E-7 : f32
      %203 = vector.broadcast %cst_102 : f32 to vector<16x1xf32>
      %204 = arith.addf %200, %203 : vector<16x1xf32>
      %205 = math.rsqrt %204 : vector<16x1xf32>
      %206 = vector.broadcast %205 : vector<16x1xf32> to vector<16x32xf32>
      %207 = arith.mulf %202, %206 : vector<16x32xf32>
      %208 = vector.broadcast %188 : vector<1x32xf32> to vector<16x32xf32>
      %209 = arith.mulf %207, %208 : vector<16x32xf32>
      %210 = vector.broadcast %189 : vector<1x32xf32> to vector<16x32xf32>
      %211 = arith.addf %209, %210 : vector<16x32xf32>
      %c0_103 = arith.constant 0 : index
      %c0_104 = arith.constant 0 : index
      %212 = vector.load %arg6[%c0_103, %c0_104] : memref<2x16xf32, #tpu.memory_space<vmem>>, vector<2x16xf32>
      %cst_105 = arith.constant dense<0.000000e+00> : vector<2x32xf32>
      %213 = tpu.matmul %212, %211, %cst_105 {dimension_numbers = #tpu.dot_dimension_numbers<[1], [0], [0], [1], [0, 0, 1, 1], [], []>} : vector<2x16xf32>, vector<16x32xf32>, vector<2x32xf32> -> vector<2x32xf32>
      %c0_106 = arith.constant 0 : index
      %c0_107 = arith.constant 0 : index
      %214 = vector.load %arg7[%c0_106, %c0_107] : memref<2x16xf32, #tpu.memory_space<vmem>>, vector<2x16xf32>
      %cst_108 = arith.constant dense<0.000000e+00> : vector<2x32xf32>
      %215 = tpu.matmul %214, %211, %cst_108 {dimension_numbers = #tpu.dot_dimension_numbers<[1], [0], [0], [1], [0, 0, 1, 1], [], []>} : vector<2x16xf32>, vector<16x32xf32>, vector<2x32xf32> -> vector<2x32xf32>
      %cst_109 = arith.constant 0.000000e+00 : f32
      %216 = vector.broadcast %cst_109 : f32 to vector<2x64xf32>
      %217 = tpu.concatenate %213, %215, %216 in 1 : vector<2x32xf32>, vector<2x32xf32>, vector<2x64xf32> -> vector<2x128xf32>
      %c0_110 = arith.constant 0 : index
      %c0_111 = arith.constant 0 : index
      %218 = vector.load %arg28[%c0_110, %c0_111] : memref<2x128xf32, #tpu.memory_space<vmem>>, vector<2x128xf32>
      tpu.vector_store %arg28[%c0_110, %c0_111], %217 {strides = array<i32>} : memref<2x128xf32, #tpu.memory_space<vmem>>, vector<2x128xf32>,
    } else {
    }
    return
  }
  func.func @transform_0(%arg0: i32) -> (i32, i32) {
    %c0_i32 = arith.constant 0 : i32
    %c0_i32_0 = arith.constant 0 : i32
    %c0_i32_1 = arith.constant 0 : i32
    return %c0_i32, %c0_i32_0 : i32, i32
  }
  func.func @transform_1(%arg0: i32) -> (i32, i32) {
    %c0_i32 = arith.constant 0 : i32
    %c0_i32_0 = arith.constant 0 : i32
    %c0_i32_1 = arith.constant 0 : i32
    return %c0_i32, %c0_i32_0 : i32, i32
  }
  func.func @transform_2(%arg0: i32) -> (i32, i32) {
    %c0_i32 = arith.constant 0 : i32
    %c0_i32_0 = arith.constant 0 : i32
    %c0_i32_1 = arith.constant 0 : i32
    return %c0_i32, %c0_i32_0 : i32, i32
  }
  func.func @transform_3(%arg0: i32) -> (i32, i32) {
    %c0_i32 = arith.constant 0 : i32
    %c0_i32_0 = arith.constant 0 : i32
    %c0_i32_1 = arith.constant 0 : i32
    return %c0_i32, %c0_i32_0 : i32, i32
  }
  func.func @transform_4(%arg0: i32) -> (i32, i32) {
    %c0_i32 = arith.constant 0 : i32
    %c0_i32_0 = arith.constant 0 : i32
    %c0_i32_1 = arith.constant 0 : i32
    return %c0_i32, %c0_i32_0 : i32, i32
  }
  func.func @transform_5(%arg0: i32) -> (i32, i32) {
    %c0_i32 = arith.constant 0 : i32
    %c0_i32_0 = arith.constant 0 : i32
    %c0_i32_1 = arith.constant 0 : i32
    return %c0_i32, %c0_i32_0 : i32, i32
  }
  func.func @transform_6(%arg0: i32) -> (i32, i32) {
    %c0_i32 = arith.constant 0 : i32
    %c0_i32_0 = arith.constant 0 : i32
    %c0_i32_1 = arith.constant 0 : i32
    return %c0_i32, %c0_i32_0 : i32, i32
  }
  func.func @transform_7(%arg0: i32) -> (i32, i32) {
    %c0_i32 = arith.constant 0 : i32
    %c0_i32_0 = arith.constant 0 : i32
    %c0_i32_1 = arith.constant 0 : i32
    return %c0_i32, %c0_i32_0 : i32, i32
  }
  func.func @transform_8(%arg0: i32) -> (i32, i32) {
    %c0_i32 = arith.constant 0 : i32
    %c0_i32_0 = arith.constant 0 : i32
    %c0_i32_1 = arith.constant 0 : i32
    return %c0_i32, %c0_i32_0 : i32, i32
  }
  func.func @transform_9(%arg0: i32) -> (i32, i32, i32) {
    %c0_i32 = arith.constant 0 : i32
    %c0_i32_0 = arith.constant 0 : i32
    %c0_i32_1 = arith.constant 0 : i32
    return %arg0, %c0_i32, %c0_i32_0 : i32, i32, i32
  }
  func.func @transform_10(%arg0: i32) -> (i32, i32, i32) {
    %c0_i32 = arith.constant 0 : i32
    %c0_i32_0 = arith.constant 0 : i32
    %c0_i32_1 = arith.constant 0 : i32
    return %arg0, %c0_i32, %c0_i32_0 : i32, i32, i32
  }
  func.func @transform_11(%arg0: i32) -> (i32, i32, i32) {
    %c0_i32 = arith.constant 0 : i32
    %c0_i32_0 = arith.constant 0 : i32
    %c0_i32_1 = arith.constant 0 : i32
    return %arg0, %c0_i32, %c0_i32_0 : i32, i32, i32
  }
  func.func @transform_12(%arg0: i32) -> (i32, i32, i32) {
    %c0_i32 = arith.constant 0 : i32
    %c0_i32_0 = arith.constant 0 : i32
    %c0_i32_1 = arith.constant 0 : i32
    return %arg0, %c0_i32, %c0_i32_0 : i32, i32, i32
  }
  func.func @transform_13(%arg0: i32) -> (i32, i32, i32) {
    %c0_i32 = arith.constant 0 : i32
    %c0_i32_0 = arith.constant 0 : i32
    %c0_i32_1 = arith.constant 0 : i32
    return %arg0, %c0_i32, %c0_i32_0 : i32, i32, i32
  }
  func.func @transform_14(%arg0: i32) -> (i32, i32, i32) {
    %c0_i32 = arith.constant 0 : i32
    %c0_i32_0 = arith.constant 0 : i32
    %c0_i32_1 = arith.constant 0 : i32
    return %arg0, %c0_i32, %c0_i32_0 : i32, i32, i32
  }
  func.func @transform_15(%arg0: i32) -> (i32, i32, i32) {
    %c0_i32 = arith.constant 0 : i32
    %c0_i32_0 = arith.constant 0 : i32
    %c0_i32_1 = arith.constant 0 : i32
    return %arg0, %c0_i32, %c0_i32_0 : i32, i32, i32
  }
  func.func @transform_16(%arg0: i32) -> (i32, i32, i32) {
    %c0_i32 = arith.constant 0 : i32
    %c0_i32_0 = arith.constant 0 : i32
    %c0_i32_1 = arith.constant 0 : i32
    return %arg0, %c0_i32, %c0_i32_0 : i32, i32, i32
  }
  func.func @transform_17(%arg0: i32) -> (i32, i32, i32) {
    %c0_i32 = arith.constant 0 : i32
    %c0_i32_0 = arith.constant 0 : i32
    %c0_i32_1 = arith.constant 0 : i32
    return %arg0, %c0_i32, %c0_i32_0 : i32, i32, i32
  }
  func.func @transform_18(%arg0: i32) -> (i32, i32, i32) {
    %c0_i32 = arith.constant 0 : i32
    %c0_i32_0 = arith.constant 0 : i32
    %c0_i32_1 = arith.constant 0 : i32
    return %arg0, %c0_i32, %c0_i32_0 : i32, i32, i32
  }
  func.func @transform_19(%arg0: i32) -> (i32, i32, i32) {
    %c0_i32 = arith.constant 0 : i32
    %c0_i32_0 = arith.constant 0 : i32
    %c0_i32_1 = arith.constant 0 : i32
    return %arg0, %c0_i32, %c0_i32_0 : i32, i32, i32
  }
  func.func @transform_20(%arg0: i32) -> (i32, i32, i32) {
    %c0_i32 = arith.constant 0 : i32
    %c0_i32_0 = arith.constant 0 : i32
    %c0_i32_1 = arith.constant 0 : i32
    return %arg0, %c0_i32, %c0_i32_0 : i32, i32, i32
  }
  func.func @transform_21(%arg0: i32) -> (i32, i32, i32) {
    %c0_i32 = arith.constant 0 : i32
    %c0_i32_0 = arith.constant 0 : i32
    %c0_i32_1 = arith.constant 0 : i32
    return %arg0, %c0_i32, %c0_i32_0 : i32, i32, i32
  }
  func.func @transform_22(%arg0: i32) -> (i32, i32, i32) {
    %c0_i32 = arith.constant 0 : i32
    %c0_i32_0 = arith.constant 0 : i32
    %c0_i32_1 = arith.constant 0 : i32
    return %arg0, %c0_i32, %c0_i32_0 : i32, i32, i32
  }
  func.func @transform_23(%arg0: i32) -> (i32, i32, i32) {
    %c0_i32 = arith.constant 0 : i32
    %c0_i32_0 = arith.constant 0 : i32
    %c0_i32_1 = arith.constant 0 : i32
    return %arg0, %c0_i32, %c0_i32_0 : i32, i32, i32
  }
  func.func @transform_24(%arg0: i32) -> (i32, i32, i32) {
    %c0_i32 = arith.constant 0 : i32
    %c0_i32_0 = arith.constant 0 : i32
    %c0_i32_1 = arith.constant 0 : i32
    return %arg0, %c0_i32, %c0_i32_0 : i32, i32, i32
  }
  func.func @transform_25(%arg0: i32) -> (i32, i32, i32) {
    %c0_i32 = arith.constant 0 : i32
    %c0_i32_0 = arith.constant 0 : i32
    %c0_i32_1 = arith.constant 0 : i32
    return %arg0, %c0_i32, %c0_i32_0 : i32, i32, i32
  }
  func.func @transform_26(%arg0: i32) -> (i32, i32, i32) {
    %c0_i32 = arith.constant 0 : i32
    %c0_i32_0 = arith.constant 0 : i32
    %c0_i32_1 = arith.constant 0 : i32
    return %arg0, %c0_i32, %c0_i32_0 : i32, i32, i32
  }
  func.func @transform_27(%arg0: i32) -> (i32, i32) {
    %c0_i32 = arith.constant 0 : i32
    %c0_i32_0 = arith.constant 0 : i32
    %c0_i32_1 = arith.constant 0 : i32
    return %c0_i32, %c0_i32_0 : i32, i32
  }
}

</mosaic_0001>

<llo_original>
// kernel: virchow_forward.1
$region0: #{virchow_forward.1}
  #allocation0 [shape = 'u32[]', space=smem, size = 0x4, offset = 0x4, fixed_abs, tag = 'smem constant byte address 0x4 - core index']
  #allocation1 [shape = 'u32[144,128]{1,0:T(1,128)}', space=vmem, size = 0x12000, scoped, tag = 'internal scratch']
  #allocation2 [shape = 'f32[16,32]{1,0:T(8,128)}', space=vmem, size = 0x2000, scoped, tag = 'scratch operand']
  %s0 = inlined_call_operand.vmem [shape: bf16[8,192], index: 0, kind: input, shape index: {}]
  %s1 = inlined_call_operand.vmem [shape: bf16[192,32], index: 1, kind: input, shape index: {}]
  %s2 = inlined_call_operand.vmem [shape: f32[16,8], index: 2, kind: input, shape index: {}]
  %s3 = inlined_call_operand.vmem [shape: f32[16,32], index: 3, kind: input, shape index: {}]
  %s4 = inlined_call_operand.vmem [shape: f32[16,16], index: 4, kind: input, shape index: {}]
  %s5 = inlined_call_operand.vmem [shape: f32[2,16], index: 5, kind: input, shape index: {}]
  %s6 = inlined_call_operand.vmem [shape: f32[2,16], index: 6, kind: input, shape index: {}]
  %s7 = inlined_call_operand.vmem [shape: f32[1,32], index: 7, kind: input, shape index: {}]
  %s8 = inlined_call_operand.vmem [shape: f32[1,32], index: 8, kind: input, shape index: {}]
  %s9 = inlined_call_operand.vmem [shape: f32[2,1,32], index: 9, kind: input, shape index: {}]
  %s10 = inlined_call_operand.vmem [shape: f32[2,1,32], index: 10, kind: input, shape index: {}]
  %s11 = inlined_call_operand.vmem [shape: bf16[2,32,32], index: 11, kind: input, shape index: {}]
  %s12 = inlined_call_operand.vmem [shape: f32[2,1,32], index: 12, kind: input, shape index: {}]
  %s13 = inlined_call_operand.vmem [shape: bf16[2,32,32], index: 13, kind: input, shape index: {}]
  %s14 = inlined_call_operand.vmem [shape: f32[2,1,32], index: 14, kind: input, shape index: {}]
  %s15 = inlined_call_operand.vmem [shape: bf16[2,32,32], index: 15, kind: input, shape index: {}]
  %s16 = inlined_call_operand.vmem [shape: f32[2,1,32], index: 16, kind: input, shape index: {}]
  %s17 = inlined_call_operand.vmem [shape: bf16[2,32,32], index: 17, kind: input, shape index: {}]
  %s18 = inlined_call_operand.vmem [shape: f32[2,1,32], index: 18, kind: input, shape index: {}]
  %s19 = inlined_call_operand.vmem [shape: f32[2,1,32], index: 19, kind: input, shape index: {}]
  %s20 = inlined_call_operand.vmem [shape: f32[2,1,32], index: 20, kind: input, shape index: {}]
  %s21 = inlined_call_operand.vmem [shape: bf16[2,32,64], index: 21, kind: input, shape index: {}]
  %s22 = inlined_call_operand.vmem [shape: f32[2,1,64], index: 22, kind: input, shape index: {}]
  %s23 = inlined_call_operand.vmem [shape: bf16[2,32,64], index: 23, kind: input, shape index: {}]
  %s24 = inlined_call_operand.vmem [shape: f32[2,1,64], index: 24, kind: input, shape index: {}]
  %s25 = inlined_call_operand.vmem [shape: bf16[2,64,32], index: 25, kind: input, shape index: {}]
  %s26 = inlined_call_operand.vmem [shape: f32[2,1,32], index: 26, kind: input, shape index: {}]
  %s27 = inlined_call_operand.hbm [shape: f32[2,128], index: 27, kind: output, shape index: {}]
  %s28 = sld [smem:[#allocation0]]
  $region149: #{virchow_forward.1} parent=0
    _
  %s30 = ssub.s32 1, %s28
  %s31 = scalar_select 0, %s30, %s28
  $region1: #{virchow_forward.1} parent=0
    #allocation3 [shape = 'u8[1024]{0}', space=vmem, size = 0x400, scoped, tag = 'output window, operand 0, single buffered']
    #allocation4 [shape = 's32[2]{0}', space=sflag, size = 0x8, scoped, tag = 'scoped memory for virchow_forward.1']
    %32 = vsyncpa [#allocation4], 0
    loop: start=0, step=1, limit=4
    $region2: #{virchow_forward.1} parent=1 // loop_pre_header
      _
    $region3: #{virchow_forward.1} parent=1 // loop_header
      %s34 = sphi 0, %s38
      %p35 = scmp.ge.s32.totalorder %s34, 4
      %s42 = sphi 0, %s42
      %s44 = sphi 0, %s42
      %s45 = sphi 0, %s44
      %s59 = sphi 0, %s45
      %s63 = sphi 0, %s63
      %s65 = sphi 0, %s63
      %s66 = sphi 0, %s65
      %s80 = sphi 0, %s66
      %s84 = sphi 0, %s84
      %s86 = sphi 0, %s84
      %s87 = sphi 0, %s86
      %s101 = sphi 0, %s87
      %s105 = sphi 0, %s105
      %s107 = sphi 0, %s105
      %s108 = sphi 0, %s107
      %s122 = sphi 0, %s108
      %s126 = sphi 0, %s126
      %s128 = sphi 0, %s126
      %s129 = sphi 0, %s128
      %s143 = sphi 0, %s129
      %s147 = sphi 0, %s147
      %s149 = sphi 0, %s147
      %s150 = sphi 0, %s149
      %s164 = sphi 0, %s150
      %s168 = sphi 0, %s168
      %s170 = sphi 0, %s168
      %s171 = sphi 0, %s170
      %s185 = sphi 0, %s171
      %s189 = sphi 0, %s189
      %s191 = sphi 0, %s189
      %s192 = sphi 0, %s191
      %s206 = sphi 0, %s192
      %s210 = sphi 0, %s210
      %s212 = sphi 0, %s210
      %s213 = sphi 0, %s212
      %s227 = sphi 0, %s213
      %s233 = sphi 0, %s235
      %s236 = sphi 0, %s233
      %s237 = sphi 0, %s236
      %s253 = sphi 0, %s237
      %s259 = sphi 0, %s261
      %s262 = sphi 0, %s259
      %s263 = sphi 0, %s262
      %s279 = sphi 0, %s263
      %s285 = sphi 0, %s287
      %s288 = sphi 0, %s285
      %s289 = sphi 0, %s288
      %s305 = sphi 0, %s289
      %s311 = sphi 0, %s313
      %s314 = sphi 0, %s311
      %s315 = sphi 0, %s314
      %s331 = sphi 0, %s315
      %s337 = sphi 0, %s339
      %s340 = sphi 0, %s337
      %s341 = sphi 0, %s340
      %s357 = sphi 0, %s341
      %s363 = sphi 0, %s365
      %s366 = sphi 0, %s363
      %s367 = sphi 0, %s366
      %s383 = sphi 0, %s367
      %s389 = sphi 0, %s391
      %s392 = sphi 0, %s389
      %s393 = sphi 0, %s392
      %s409 = sphi 0, %s393
      %s415 = sphi 0, %s417
      %s418 = sphi 0, %s415
      %s419 = sphi 0, %s418
      %s435 = sphi 0, %s419
      %s441 = sphi 0, %s443
      %s444 = sphi 0, %s441
      %s445 = sphi 0, %s444
      %s461 = sphi 0, %s445
      %s467 = sphi 0, %s469
      %s470 = sphi 0, %s467
      %s471 = sphi 0, %s470
      %s487 = sphi 0, %s471
      %s493 = sphi 0, %s495
      %s496 = sphi 0, %s493
      %s497 = sphi 0, %s496
      %s513 = sphi 0, %s497
      %s519 = sphi 0, %s521
      %s522 = sphi 0, %s519
      %s523 = sphi 0, %s522
      %s539 = sphi 0, %s523
      %s545 = sphi 0, %s547
      %s548 = sphi 0, %s545
      %s549 = sphi 0, %s548
      %s565 = sphi 0, %s549
      %s571 = sphi 0, %s573
      %s574 = sphi 0, %s571
      %s575 = sphi 0, %s574
      %s591 = sphi 0, %s575
      %s597 = sphi 0, %s599
      %s600 = sphi 0, %s597
      %s601 = sphi 0, %s600
      %s617 = sphi 0, %s601
      %s623 = sphi 0, %s625
      %s626 = sphi 0, %s623
      %s627 = sphi 0, %s626
      %s643 = sphi 0, %s627
      %s649 = sphi 0, %s651
      %s652 = sphi 0, %s649
      %s653 = sphi 0, %s652
      %s669 = sphi 0, %s653
      %s675 = sphi 0, %s677
      %s678 = sphi 0, %s675
      %s679 = sphi 0, %s678
      %s695 = sphi 0, %s679
      %s699 = sphi 0, %s699
      %s701 = sphi 0, %s699
      %s702 = sphi 0, %s701
      %s716 = sphi 0, %s702
    $region4: #{virchow_forward.1} parent=1 // loop_header_branch
      %37 = sbr.rel (%p35) target = $region8
    $region5: #{virchow_forward.1} parent=1 // loop_body
      %s39 = ssub.s32 %s34, 1
      %s40 = ssub.s32 %s34, 2
      %s41 = sadd.s32 %s34, 1
      %s43 = sadd.s32 %s42, 1
      %p46 = scmp.eq.s32.totalorder %s34, 1
      %p47 = scmp.ne.s32.totalorder %s42, %s44
      %p48 = scmp.eq.s32.totalorder %s34, 0
      %p49 = por %p47, %p48
      %p50 = scmp.ne.s32.totalorder %s42, %s44
      %p51 = scmp.eq.s32.totalorder %s39, 1
      %p52 = por %p50, %p51
      %p53 = scmp.ne.s32.totalorder %s44, %s45
      %p54 = scmp.eq.s32.totalorder %s39, 0
      %p55 = por %p53, %p54
      %p56 = scmp.ne.s32.totalorder %s44, %s45
      %p57 = scmp.eq.s32.totalorder %s40, 1
      %p58 = por %p56, %p57
      %p60 = scmp.ne.s32.totalorder %s45, %s59
      %p61 = scmp.eq.s32.totalorder %s40, 0
      %p62 = por %p60, %p61
      %s64 = sadd.s32 %s63, 1
      %p67 = scmp.eq.s32.totalorder %s34, 1
      %p68 = scmp.ne.s32.totalorder %s63, %s65
      %p69 = scmp.eq.s32.totalorder %s34, 0
      %p70 = por %p68, %p69
      %p71 = scmp.ne.s32.totalorder %s63, %s65
      %p72 = scmp.eq.s32.totalorder %s39, 1
      %p73 = por %p71, %p72
      %p74 = scmp.ne.s32.totalorder %s65, %s66
      %p75 = scmp.eq.s32.totalorder %s39, 0
      %p76 = por %p74, %p75
      %p77 = scmp.ne.s32.totalorder %s65, %s66
      %p78 = scmp.eq.s32.totalorder %s40, 1
      %p79 = por %p77, %p78
      %p81 = scmp.ne.s32.totalorder %s66, %s80
      %p82 = scmp.eq.s32.totalorder %s40, 0
      %p83 = por %p81, %p82
      %s85 = sadd.s32 %s84, 1
      %p88 = scmp.eq.s32.totalorder %s34, 1
      %p89 = scmp.ne.s32.totalorder %s84, %s86
      %p90 = scmp.eq.s32.totalorder %s34, 0
      %p91 = por %p89, %p90
      %p92 = scmp.ne.s32.totalorder %s84, %s86
      %p93 = scmp.eq.s32.totalorder %s39, 1
      %p94 = por %p92, %p93
      %p95 = scmp.ne.s32.totalorder %s86, %s87
      %p96 = scmp.eq.s32.totalorder %s39, 0
      %p97 = por %p95, %p96
      %p98 = scmp.ne.s32.totalorder %s86, %s87
      %p99 = scmp.eq.s32.totalorder %s40, 1
      %p100 = por %p98, %p99
      %p102 = scmp.ne.s32.totalorder %s87, %s101
      %p103 = scmp.eq.s32.totalorder %s40, 0
      %p104 = por %p102, %p103
      %s106 = sadd.s32 %s105, 1
      %p109 = scmp.eq.s32.totalorder %s34, 1
      %p110 = scmp.ne.s32.totalorder %s105, %s107
      %p111 = scmp.eq.s32.totalorder %s34, 0
      %p112 = por %p110, %p111
      %p113 = scmp.ne.s32.totalorder %s105, %s107
      %p114 = scmp.eq.s32.totalorder %s39, 1
      %p115 = por %p113, %p114
      %p116 = scmp.ne.s32.totalorder %s107, %s108
      %p117 = scmp.eq.s32.totalorder %s39, 0
      %p118 = por %p116, %p117
      %p119 = scmp.ne.s32.totalorder %s107, %s108
      %p120 = scmp.eq.s32.totalorder %s40, 1
      %p121 = por %p119, %p120
      %p123 = scmp.ne.s32.totalorder %s108, %s122
      %p124 = scmp.eq.s32.totalorder %s40, 0
      %p125 = por %p123, %p124
      %s127 = sadd.s32 %s126, 1
      %p130 = scmp.eq.s32.totalorder %s34, 1
      %p131 = scmp.ne.s32.totalorder %s126, %s128
      %p132 = scmp.eq.s32.totalorder %s34, 0
      %p133 = por %p131, %p132
      %p134 = scmp.ne.s32.totalorder %s126, %s128
      %p135 = scmp.eq.s32.totalorder %s39, 1
      %p136 = por %p134, %p135
      %p137 = scmp.ne.s32.totalorder %s128, %s129
      %p138 = scmp.eq.s32.totalorder %s39, 0
      %p139 = por %p137, %p138
      %p140 = scmp.ne.s32.totalorder %s128, %s129
      %p141 = scmp.eq.s32.totalorder %s40, 1
      %p142 = por %p140, %p141
      %p144 = scmp.ne.s32.totalorder %s129, %s143
      %p145 = scmp.eq.s32.totalorder %s40, 0
      %p146 = por %p144, %p145
      %s148 = sadd.s32 %s147, 1
      %p151 = scmp.eq.s32.totalorder %s34, 1
      %p152 = scmp.ne.s32.totalorder %s147, %s149
      %p153 = scmp.eq.s32.totalorder %s34, 0
      %p154 = por %p152, %p153
      %p155 = scmp.ne.s32.totalorder %s147, %s149
      %p156 = scmp.eq.s32.totalorder %s39, 1
      %p157 = por %p155, %p156
      %p158 = scmp.ne.s32.totalorder %s149, %s150
      %p159 = scmp.eq.s32.totalorder %s39, 0
      %p160 = por %p158, %p159
      %p161 = scmp.ne.s32.totalorder %s149, %s150
      %p162 = scmp.eq.s32.totalorder %s40, 1
      %p163 = por %p161, %p162
      %p165 = scmp.ne.s32.totalorder %s150, %s164
      %p166 = scmp.eq.s32.totalorder %s40, 0
      %p167 = por %p165, %p166
      %s169 = sadd.s32 %s168, 1
      %p172 = scmp.eq.s32.totalorder %s34, 1
      %p173 = scmp.ne.s32.totalorder %s168, %s170
      %p174 = scmp.eq.s32.totalorder %s34, 0
      %p175 = por %p173, %p174
      %p176 = scmp.ne.s32.totalorder %s168, %s170
      %p177 = scmp.eq.s32.totalorder %s39, 1
      %p178 = por %p176, %p177
      %p179 = scmp.ne.s32.totalorder %s170, %s171
      %p180 = scmp.eq.s32.totalorder %s39, 0
      %p181 = por %p179, %p180
      %p182 = scmp.ne.s32.totalorder %s170, %s171
      %p183 = scmp.eq.s32.totalorder %s40, 1
      %p184 = por %p182, %p183
      %p186 = scmp.ne.s32.totalorder %s171, %s185
      %p187 = scmp.eq.s32.totalorder %s40, 0
      %p188 = por %p186, %p187
      %s190 = sadd.s32 %s189, 1
      %p193 = scmp.eq.s32.totalorder %s34, 1
      %p194 = scmp.ne.s32.totalorder %s189, %s191
      %p195 = scmp.eq.s32.totalorder %s34, 0
      %p196 = por %p194, %p195
      %p197 = scmp.ne.s32.totalorder %s189, %s191
      %p198 = scmp.eq.s32.totalorder %s39, 1
      %p199 = por %p197, %p198
      %p200 = scmp.ne.s32.totalorder %s191, %s192
      %p201 = scmp.eq.s32.totalorder %s39, 0
      %p202 = por %p200, %p201
      %p203 = scmp.ne.s32.totalorder %s191, %s192
      %p204 = scmp.eq.s32.totalorder %s40, 1
      %p205 = por %p203, %p204
      %p207 = scmp.ne.s32.totalorder %s192, %s206
      %p208 = scmp.eq.s32.totalorder %s40, 0
      %p209 = por %p207, %p208
      %s211 = sadd.s32 %s210, 1
      %p214 = scmp.eq.s32.totalorder %s34, 1
      %p215 = scmp.ne.s32.totalorder %s210, %s212
      %p216 = scmp.eq.s32.totalorder %s34, 0
      %p217 = por %p215, %p216
      %p218 = scmp.ne.s32.totalorder %s210, %s212
      %p219 = scmp.eq.s32.totalorder %s39, 1
      %p220 = por %p218, %p219
      %p221 = scmp.ne.s32.totalorder %s212, %s213
      %p222 = scmp.eq.s32.totalorder %s39, 0
      %p223 = por %p221, %p222
      %p224 = scmp.ne.s32.totalorder %s212, %s213
      %p225 = scmp.eq.s32.totalorder %s40, 1
      %p226 = por %p224, %p225
      %p228 = scmp.ne.s32.totalorder %s213, %s227
      %p229 = scmp.eq.s32.totalorder %s40, 0
      %p230 = por %p228, %p229
      %s231 = ssub.s32 %s34, %s41
      %p232 = scmp.eq.s32.totalorder %s231, 0
      %s234 = sadd.s32 %s233, 1
      %s235 = scalar_select %p232, %s233, %s234
      %p238 = pneg %p232
      %p239 = scmp.eq.s32.totalorder %s34, 1
      %p240 = por %p238, %p239
      %p241 = scmp.ne.s32.totalorder %s233, %s236
      %p242 = scmp.eq.s32.totalorder %s34, 0
      %p243 = por %p241, %p242
      %p244 = scmp.ne.s32.totalorder %s233, %s236
      %p245 = scmp.eq.s32.totalorder %s39, 1
      %p246 = por %p244, %p245
      %p247 = scmp.ne.s32.totalorder %s236, %s237
      %p248 = scmp.eq.s32.totalorder %s39, 0
      %p249 = por %p247, %p248
      %p250 = scmp.ne.s32.totalorder %s236, %s237
      %p251 = scmp.eq.s32.totalorder %s40, 1
      %p252 = por %p250, %p251
      %p254 = scmp.ne.s32.totalorder %s237, %s253
      %p255 = scmp.eq.s32.totalorder %s40, 0
      %p256 = por %p254, %p255
      %s257 = ssub.s32 %s34, %s41
      %p258 = scmp.eq.s32.totalorder %s257, 0
      %s260 = sadd.s32 %s259, 1
      %s261 = scalar_select %p258, %s259, %s260
      %p264 = pneg %p258
      %p265 = scmp.eq.s32.totalorder %s34, 1
      %p266 = por %p264, %p265
      %p267 = scmp.ne.s32.totalorder %s259, %s262
      %p268 = scmp.eq.s32.totalorder %s34, 0
      %p269 = por %p267, %p268
      %p270 = scmp.ne.s32.totalorder %s259, %s262
      %p271 = scmp.eq.s32.totalorder %s39, 1
      %p272 = por %p270, %p271
      %p273 = scmp.ne.s32.totalorder %s262, %s263
      %p274 = scmp.eq.s32.totalorder %s39, 0
      %p275 = por %p273, %p274
      %p276 = scmp.ne.s32.totalorder %s262, %s263
      %p277 = scmp.eq.s32.totalorder %s40, 1
      %p278 = por %p276, %p277
      %p280 = scmp.ne.s32.totalorder %s263, %s279
      %p281 = scmp.eq.s32.totalorder %s40, 0
      %p282 = por %p280, %p281
      %s283 = ssub.s32 %s34, %s41
      %p284 = scmp.eq.s32.totalorder %s283, 0
      %s286 = sadd.s32 %s285, 1
      %s287 = scalar_select %p284, %s285, %s286
      %p290 = pneg %p284
      %p291 = scmp.eq.s32.totalorder %s34, 1
      %p292 = por %p290, %p291
      %p293 = scmp.ne.s32.totalorder %s285, %s288
      %p294 = scmp.eq.s32.totalorder %s34, 0
      %p295 = por %p293, %p294
      %p296 = scmp.ne.s32.totalorder %s285, %s288
      %p297 = scmp.eq.s32.totalorder %s39, 1
      %p298 = por %p296, %p297
      %p299 = scmp.ne.s32.totalorder %s288, %s289
      %p300 = scmp.eq.s32.totalorder %s39, 0
      %p301 = por %p299, %p300
      %p302 = scmp.ne.s32.totalorder %s288, %s289
      %p303 = scmp.eq.s32.totalorder %s40, 1
      %p304 = por %p302, %p303
      %p306 = scmp.ne.s32.totalorder %s289, %s305
      %p307 = scmp.eq.s32.totalorder %s40, 0
      %p308 = por %p306, %p307
      %s309 = ssub.s32 %s34, %s41
      %p310 = scmp.eq.s32.totalorder %s309, 0
      %s312 = sadd.s32 %s311, 1
      %s313 = scalar_select %p310, %s311, %s312
      %p316 = pneg %p310
      %p317 = scmp.eq.s32.totalorder %s34, 1
      %p318 = por %p316, %p317
      %p319 = scmp.ne.s32.totalorder %s311, %s314
      %p320 = scmp.eq.s32.totalorder %s34, 0
      %p321 = por %p319, %p320
      %p322 = scmp.ne.s32.totalorder %s311, %s314
      %p323 = scmp.eq.s32.totalorder %s39, 1
      %p324 = por %p322, %p323
      %p325 = scmp.ne.s32.totalorder %s314, %s315
      %p326 = scmp.eq.s32.totalorder %s39, 0
      %p327 = por %p325, %p326
      %p328 = scmp.ne.s32.totalorder %s314, %s315
      %p329 = scmp.eq.s32.totalorder %s40, 1
      %p330 = por %p328, %p329
      %p332 = scmp.ne.s32.totalorder %s315, %s331
      %p333 = scmp.eq.s32.totalorder %s40, 0
      %p334 = por %p332, %p333
      %s335 = ssub.s32 %s34, %s41
      %p336 = scmp.eq.s32.totalorder %s335, 0
      %s338 = sadd.s32 %s337, 1
      %s339 = scalar_select %p336, %s337, %s338
      %p342 = pneg %p336
      %p343 = scmp.eq.s32.totalorder %s34, 1
      %p344 = por %p342, %p343
      %p345 = scmp.ne.s32.totalorder %s337, %s340
      %p346 = scmp.eq.s32.totalorder %s34, 0
      %p347 = por %p345, %p346
      %p348 = scmp.ne.s32.totalorder %s337, %s340
      %p349 = scmp.eq.s32.totalorder %s39, 1
      %p350 = por %p348, %p349
      %p351 = scmp.ne.s32.totalorder %s340, %s341
      %p352 = scmp.eq.s32.totalorder %s39, 0
      %p353 = por %p351, %p352
      %p354 = scmp.ne.s32.totalorder %s340, %s341
      %p355 = scmp.eq.s32.totalorder %s40, 1
      %p356 = por %p354, %p355
      %p358 = scmp.ne.s32.totalorder %s341, %s357
      %p359 = scmp.eq.s32.totalorder %s40, 0
      %p360 = por %p358, %p359
      %s361 = ssub.s32 %s34, %s41
      %p362 = scmp.eq.s32.totalorder %s361, 0
      %s364 = sadd.s32 %s363, 1
      %s365 = scalar_select %p362, %s363, %s364
      %p368 = pneg %p362
      %p369 = scmp.eq.s32.totalorder %s34, 1
      %p370 = por %p368, %p369
      %p371 = scmp.ne.s32.totalorder %s363, %s366
      %p372 = scmp.eq.s32.totalorder %s34, 0
      %p373 = por %p371, %p372
      %p374 = scmp.ne.s32.totalorder %s363, %s366
      %p375 = scmp.eq.s32.totalorder %s39, 1
      %p376 = por %p374, %p375
      %p377 = scmp.ne.s32.totalorder %s366, %s367
      %p378 = scmp.eq.s32.totalorder %s39, 0
      %p379 = por %p377, %p378
      %p380 = scmp.ne.s32.totalorder %s366, %s367
      %p381 = scmp.eq.s32.totalorder %s40, 1
      %p382 = por %p380, %p381
      %p384 = scmp.ne.s32.totalorder %s367, %s383
      %p385 = scmp.eq.s32.totalorder %s40, 0
      %p386 = por %p384, %p385
      %s387 = ssub.s32 %s34, %s41
      %p388 = scmp.eq.s32.totalorder %s387, 0
      %s390 = sadd.s32 %s389, 1
      %s391 = scalar_select %p388, %s389, %s390
      %p394 = pneg %p388
      %p395 = scmp.eq.s32.totalorder %s34, 1
      %p396 = por %p394, %p395
      %p397 = scmp.ne.s32.totalorder %s389, %s392
      %p398 = scmp.eq.s32.totalorder %s34, 0
      %p399 = por %p397, %p398
      %p400 = scmp.ne.s32.totalorder %s389, %s392
      %p401 = scmp.eq.s32.totalorder %s39, 1
      %p402 = por %p400, %p401
      %p403 = scmp.ne.s32.totalorder %s392, %s393
      %p404 = scmp.eq.s32.totalorder %s39, 0
      %p405 = por %p403, %p404
      %p406 = scmp.ne.s32.totalorder %s392, %s393
      %p407 = scmp.eq.s32.totalorder %s40, 1
      %p408 = por %p406, %p407
      %p410 = scmp.ne.s32.totalorder %s393, %s409
      %p411 = scmp.eq.s32.totalorder %s40, 0
      %p412 = por %p410, %p411
      %s413 = ssub.s32 %s34, %s41
      %p414 = scmp.eq.s32.totalorder %s413, 0
      %s416 = sadd.s32 %s415, 1
      %s417 = scalar_select %p414, %s415, %s416
      %p420 = pneg %p414
      %p421 = scmp.eq.s32.totalorder %s34, 1
      %p422 = por %p420, %p421
      %p423 = scmp.ne.s32.totalorder %s415, %s418
      %p424 = scmp.eq.s32.totalorder %s34, 0
      %p425 = por %p423, %p424
      %p426 = scmp.ne.s32.totalorder %s415, %s418
      %p427 = scmp.eq.s32.totalorder %s39, 1
      %p428 = por %p426, %p427
      %p429 = scmp.ne.s32.totalorder %s418, %s419
      %p430 = scmp.eq.s32.totalorder %s39, 0
      %p431 = por %p429, %p430
      %p432 = scmp.ne.s32.totalorder %s418, %s419
      %p433 = scmp.eq.s32.totalorder %s40, 1
      %p434 = por %p432, %p433
      %p436 = scmp.ne.s32.totalorder %s419, %s435
      %p437 = scmp.eq.s32.totalorder %s40, 0
      %p438 = por %p436, %p437
      %s439 = ssub.s32 %s34, %s41
      %p440 = scmp.eq.s32.totalorder %s439, 0
      %s442 = sadd.s32 %s441, 1
      %s443 = scalar_select %p440, %s441, %s442
      %p446 = pneg %p440
      %p447 = scmp.eq.s32.totalorder %s34, 1
      %p448 = por %p446, %p447
      %p449 = scmp.ne.s32.totalorder %s441, %s444
      %p450 = scmp.eq.s32.totalorder %s34, 0
      %p451 = por %p449, %p450
      %p452 = scmp.ne.s32.totalorder %s441, %s444
      %p453 = scmp.eq.s32.totalorder %s39, 1
      %p454 = por %p452, %p453
      %p455 = scmp.ne.s32.totalorder %s444, %s445
      %p456 = scmp.eq.s32.totalorder %s39, 0
      %p457 = por %p455, %p456
      %p458 = scmp.ne.s32.totalorder %s444, %s445
      %p459 = scmp.eq.s32.totalorder %s40, 1
      %p460 = por %p458, %p459
      %p462 = scmp.ne.s32.totalorder %s445, %s461
      %p463 = scmp.eq.s32.totalorder %s40, 0
      %p464 = por %p462, %p463
      %s465 = ssub.s32 %s34, %s41
      %p466 = scmp.eq.s32.totalorder %s465, 0
      %s468 = sadd.s32 %s467, 1
      %s469 = scalar_select %p466, %s467, %s468
      %p472 = pneg %p466
      %p473 = scmp.eq.s32.totalorder %s34, 1
      %p474 = por %p472, %p473
      %p475 = scmp.ne.s32.totalorder %s467, %s470
      %p476 = scmp.eq.s32.totalorder %s34, 0
      %p477 = por %p475, %p476
      %p478 = scmp.ne.s32.totalorder %s467, %s470
      %p479 = scmp.eq.s32.totalorder %s39, 1
      %p480 = por %p478, %p479
      %p481 = scmp.ne.s32.totalorder %s470, %s471
      %p482 = scmp.eq.s32.totalorder %s39, 0
      %p483 = por %p481, %p482
      %p484 = scmp.ne.s32.totalorder %s470, %s471
      %p485 = scmp.eq.s32.totalorder %s40, 1
      %p486 = por %p484, %p485
      %p488 = scmp.ne.s32.totalorder %s471, %s487
      %p489 = scmp.eq.s32.totalorder %s40, 0
      %p490 = por %p488, %p489
      %s491 = ssub.s32 %s34, %s41
      %p492 = scmp.eq.s32.totalorder %s491, 0
      %s494 = sadd.s32 %s493, 1
      %s495 = scalar_select %p492, %s493, %s494
      %p498 = pneg %p492
      %p499 = scmp.eq.s32.totalorder %s34, 1
      %p500 = por %p498, %p499
      %p501 = scmp.ne.s32.totalorder %s493, %s496
      %p502 = scmp.eq.s32.totalorder %s34, 0
      %p503 = por %p501, %p502
      %p504 = scmp.ne.s32.totalorder %s493, %s496
      %p505 = scmp.eq.s32.totalorder %s39, 1
      %p506 = por %p504, %p505
      %p507 = scmp.ne.s32.totalorder %s496, %s497
      %p508 = scmp.eq.s32.totalorder %s39, 0
      %p509 = por %p507, %p508
      %p510 = scmp.ne.s32.totalorder %s496, %s497
      %p511 = scmp.eq.s32.totalorder %s40, 1
      %p512 = por %p510, %p511
      %p514 = scmp.ne.s32.totalorder %s497, %s513
      %p515 = scmp.eq.s32.totalorder %s40, 0
      %p516 = por %p514, %p515
      %s517 = ssub.s32 %s34, %s41
      %p518 = scmp.eq.s32.totalorder %s517, 0
      %s520 = sadd.s32 %s519, 1
      %s521 = scalar_select %p518, %s519, %s520
      %p524 = pneg %p518
      %p525 = scmp.eq.s32.totalorder %s34, 1
      %p526 = por %p524, %p525
      %p527 = scmp.ne.s32.totalorder %s519, %s522
      %p528 = scmp.eq.s32.totalorder %s34, 0
      %p529 = por %p527, %p528
      %p530 = scmp.ne.s32.totalorder %s519, %s522
      %p531 = scmp.eq.s32.totalorder %s39, 1
      %p532 = por %p530, %p531
      %p533 = scmp.ne.s32.totalorder %s522, %s523
      %p534 = scmp.eq.s32.totalorder %s39, 0
      %p535 = por %p533, %p534
      %p536 = scmp.ne.s32.totalorder %s522, %s523
      %p537 = scmp.eq.s32.totalorder %s40, 1
      %p538 = por %p536, %p537
      %p540 = scmp.ne.s32.totalorder %s523, %s539
      %p541 = scmp.eq.s32.totalorder %s40, 0
      %p542 = por %p540, %p541
      %s543 = ssub.s32 %s34, %s41
      %p544 = scmp.eq.s32.totalorder %s543, 0
      %s546 = sadd.s32 %s545, 1
      %s547 = scalar_select %p544, %s545, %s546
      %p550 = pneg %p544
      %p551 = scmp.eq.s32.totalorder %s34, 1
      %p552 = por %p550, %p551
      %p553 = scmp.ne.s32.totalorder %s545, %s548
      %p554 = scmp.eq.s32.totalorder %s34, 0
      %p555 = por %p553, %p554
      %p556 = scmp.ne.s32.totalorder %s545, %s548
      %p557 = scmp.eq.s32.totalorder %s39, 1
      %p558 = por %p556, %p557
      %p559 = scmp.ne.s32.totalorder %s548, %s549
      %p560 = scmp.eq.s32.totalorder %s39, 0
      %p561 = por %p559, %p560
      %p562 = scmp.ne.s32.totalorder %s548, %s549
      %p563 = scmp.eq.s32.totalorder %s40, 1
      %p564 = por %p562, %p563
      %p566 = scmp.ne.s32.totalorder %s549, %s565
      %p567 = scmp.eq.s32.totalorder %s40, 0
      %p568 = por %p566, %p567
      %s569 = ssub.s32 %s34, %s41
      %p570 = scmp.eq.s32.totalorder %s569, 0
      %s572 = sadd.s32 %s571, 1
      %s573 = scalar_select %p570, %s571, %s572
      %p576 = pneg %p570
      %p577 = scmp.eq.s32.totalorder %s34, 1
      %p578 = por %p576, %p577
      %p579 = scmp.ne.s32.totalorder %s571, %s574
      %p580 = scmp.eq.s32.totalorder %s34, 0
      %p581 = por %p579, %p580
      %p582 = scmp.ne.s32.totalorder %s571, %s574
      %p583 = scmp.eq.s32.totalorder %s39, 1
      %p584 = por %p582, %p583
      %p585 = scmp.ne.s32.totalorder %s574, %s575
      %p586 = scmp.eq.s32.totalorder %s39, 0
      %p587 = por %p585, %p586
      %p588 = scmp.ne.s32.totalorder %s574, %s575
      %p589 = scmp.eq.s32.totalorder %s40, 1
      %p590 = por %p588, %p589
      %p592 = scmp.ne.s32.totalorder %s575, %s591
      %p593 = scmp.eq.s32.totalorder %s40, 0
      %p594 = por %p592, %p593
      %s595 = ssub.s32 %s34, %s41
      %p596 = scmp.eq.s32.totalorder %s595, 0
      %s598 = sadd.s32 %s597, 1
      %s599 = scalar_select %p596, %s597, %s598
      %p602 = pneg %p596
      %p603 = scmp.eq.s32.totalorder %s34, 1
      %p604 = por %p602, %p603
      %p605 = scmp.ne.s32.totalorder %s597, %s600
      %p606 = scmp.eq.s32.totalorder %s34, 0
      %p607 = por %p605, %p606
      %p608 = scmp.ne.s32.totalorder %s597, %s600
      %p609 = scmp.eq.s32.totalorder %s39, 1
      %p610 = por %p608, %p609
      %p611 = scmp.ne.s32.totalorder %s600, %s601
      %p612 = scmp.eq.s32.totalorder %s39, 0
      %p613 = por %p611, %p612
      %p614 = scmp.ne.s32.totalorder %s600, %s601
      %p615 = scmp.eq.s32.totalorder %s40, 1
      %p616 = por %p614, %p615
      %p618 = scmp.ne.s32.totalorder %s601, %s617
      %p619 = scmp.eq.s32.totalorder %s40, 0
      %p620 = por %p618, %p619
      %s621 = ssub.s32 %s34, %s41
      %p622 = scmp.eq.s32.totalorder %s621, 0
      %s624 = sadd.s32 %s623, 1
      %s625 = scalar_select %p622, %s623, %s624
      %p628 = pneg %p622
      %p629 = scmp.eq.s32.totalorder %s34, 1
      %p630 = por %p628, %p629
      %p631 = scmp.ne.s32.totalorder %s623, %s626
      %p632 = scmp.eq.s32.totalorder %s34, 0
      %p633 = por %p631, %p632
      %p634 = scmp.ne.s32.totalorder %s623, %s626
      %p635 = scmp.eq.s32.totalorder %s39, 1
      %p636 = por %p634, %p635
      %p637 = scmp.ne.s32.totalorder %s626, %s627
      %p638 = scmp.eq.s32.totalorder %s39, 0
      %p639 = por %p637, %p638
      %p640 = scmp.ne.s32.totalorder %s626, %s627
      %p641 = scmp.eq.s32.totalorder %s40, 1
      %p642 = por %p640, %p641
      %p644 = scmp.ne.s32.totalorder %s627, %s643
      %p645 = scmp.eq.s32.totalorder %s40, 0
      %p646 = por %p644, %p645
      %s647 = ssub.s32 %s34, %s41
      %p648 = scmp.eq.s32.totalorder %s647, 0
      %s650 = sadd.s32 %s649, 1
      %s651 = scalar_select %p648, %s649, %s650
      %p654 = pneg %p648
      %p655 = scmp.eq.s32.totalorder %s34, 1
      %p656 = por %p654, %p655
      %p657 = scmp.ne.s32.totalorder %s649, %s652
      %p658 = scmp.eq.s32.totalorder %s34, 0
      %p659 = por %p657, %p658
      %p660 = scmp.ne.s32.totalorder %s649, %s652
      %p661 = scmp.eq.s32.totalorder %s39, 1
      %p662 = por %p660, %p661
      %p663 = scmp.ne.s32.totalorder %s652, %s653
      %p664 = scmp.eq.s32.totalorder %s39, 0
      %p665 = por %p663, %p664
      %p666 = scmp.ne.s32.totalorder %s652, %s653
      %p667 = scmp.eq.s32.totalorder %s40, 1
      %p668 = por %p666, %p667
      %p670 = scmp.ne.s32.totalorder %s653, %s669
      %p671 = scmp.eq.s32.totalorder %s40, 0
      %p672 = por %p670, %p671
      %s673 = ssub.s32 %s34, %s41
      %p674 = scmp.eq.s32.totalorder %s673, 0
      %s676 = sadd.s32 %s675, 1
      %s677 = scalar_select %p674, %s675, %s676
      %p680 = pneg %p674
      %p681 = scmp.eq.s32.totalorder %s34, 1
      %p682 = por %p680, %p681
      %p683 = scmp.ne.s32.totalorder %s675, %s678
      %p684 = scmp.eq.s32.totalorder %s34, 0
      %p685 = por %p683, %p684
      %p686 = scmp.ne.s32.totalorder %s675, %s678
      %p687 = scmp.eq.s32.totalorder %s39, 1
      %p688 = por %p686, %p687
      %p689 = scmp.ne.s32.totalorder %s678, %s679
      %p690 = scmp.eq.s32.totalorder %s39, 0
      %p691 = por %p689, %p690
      %p692 = scmp.ne.s32.totalorder %s678, %s679
      %p693 = scmp.eq.s32.totalorder %s40, 1
      %p694 = por %p692, %p693
      %p696 = scmp.ne.s32.totalorder %s679, %s695
      %p697 = scmp.eq.s32.totalorder %s40, 0
      %p698 = por %p696, %p697
      %s700 = sadd.s32 %s699, 1
      %p703 = scmp.eq.s32.totalorder %s34, 1
      %p704 = scmp.ne.s32.totalorder %s699, %s701
      %p705 = scmp.eq.s32.totalorder %s34, 0
      %p706 = por %p704, %p705
      %p707 = scmp.ne.s32.totalorder %s699, %s701
      %p708 = scmp.eq.s32.totalorder %s39, 1
      %p709 = por %p707, %p708
      %p710 = scmp.ne.s32.totalorder %s701, %s702
      %p711 = scmp.eq.s32.totalorder %s39, 0
      %p712 = por %p710, %p711
      %p713 = scmp.ne.s32.totalorder %s701, %s702
      %p714 = scmp.eq.s32.totalorder %s40, 1
      %p715 = por %p713, %p714
      %p717 = scmp.ne.s32.totalorder %s702, %s716
      %p718 = scmp.eq.s32.totalorder %s40, 0
      %p719 = por %p717, %p718
      %p720 = scmp.le.s32.totalorder 1, %s34
      %p721 = scmp.lt.s32.totalorder %s34, 3
      %p722 = pnand %p720, %p721
      %p723 = pneg %p722
      // Predicated region
      $region9: #{virchow_forward.1} parent=5 // pred_check
        _
      $region10: #{virchow_forward.1} parent=5 // pred_check_branch
        %725 = sbr.rel (%p722) target = $region12
      $region11: #{virchow_forward.1} parent=5 // pred_region
        %s726 = ssub.s32 %s34, 1
        // Predicated region
        $region13: #{virchow_forward.1} parent=11 // pred_check
          %p727 = pneg %p55
        $region14: #{virchow_forward.1} parent=11 // pred_check_branch
          %729 = sbr.rel (%p727) target = $region16
        $region15: #{virchow_forward.1} parent=11 // pred_region
          _
        $region16: #{virchow_forward.1} parent=11 // pred_fallthru
          _
        // Predicated region
        $region17: #{virchow_forward.1} parent=11 // pred_check
          %p730 = pneg %p76
        $region18: #{virchow_forward.1} parent=11 // pred_check_branch
          %732 = sbr.rel (%p730) target = $region20
        $region19: #{virchow_forward.1} parent=11 // pred_region
          _
        $region20: #{virchow_forward.1} parent=11 // pred_fallthru
          _
        // Predicated region
        $region21: #{virchow_forward.1} parent=11 // pred_check
          %p733 = pneg %p97
        $region22: #{virchow_forward.1} parent=11 // pred_check_branch
          %735 = sbr.rel (%p733) target = $region24
        $region23: #{virchow_forward.1} parent=11 // pred_region
          _
        $region24: #{virchow_forward.1} parent=11 // pred_fallthru
          _
        // Predicated region
        $region25: #{virchow_forward.1} parent=11 // pred_check
          %p736 = pneg %p118
        $region26: #{virchow_forward.1} parent=11 // pred_check_branch
          %738 = sbr.rel (%p736) target = $region28
        $region27: #{virchow_forward.1} parent=11 // pred_region
          _
        $region28: #{virchow_forward.1} parent=11 // pred_fallthru
          _
        // Predicated region
        $region29: #{virchow_forward.1} parent=11 // pred_check
          %p739 = pneg %p139
        $region30: #{virchow_forward.1} parent=11 // pred_check_branch
          %741 = sbr.rel (%p739) target = $region32
        $region31: #{virchow_forward.1} parent=11 // pred_region
          _
        $region32: #{virchow_forward.1} parent=11 // pred_fallthru
          _
        // Predicated region
        $region33: #{virchow_forward.1} parent=11 // pred_check
          %p742 = pneg %p160
        $region34: #{virchow_forward.1} parent=11 // pred_check_branch
          %744 = sbr.rel (%p742) target = $region36
        $region35: #{virchow_forward.1} parent=11 // pred_region
          _
        $region36: #{virchow_forward.1} parent=11 // pred_fallthru
          _
        // Predicated region
        $region37: #{virchow_forward.1} parent=11 // pred_check
          %p745 = pneg %p181
        $region38: #{virchow_forward.1} parent=11 // pred_check_branch
          %747 = sbr.rel (%p745) target = $region40
        $region39: #{virchow_forward.1} parent=11 // pred_region
          _
        $region40: #{virchow_forward.1} parent=11 // pred_fallthru
          _
        // Predicated region
        $region41: #{virchow_forward.1} parent=11 // pred_check
          %p748 = pneg %p202
        $region42: #{virchow_forward.1} parent=11 // pred_check_branch
          %750 = sbr.rel (%p748) target = $region44
        $region43: #{virchow_forward.1} parent=11 // pred_region
          _
        $region44: #{virchow_forward.1} parent=11 // pred_fallthru
          _
        // Predicated region
        $region45: #{virchow_forward.1} parent=11 // pred_check
          %p751 = pneg %p223
        $region46: #{virchow_forward.1} parent=11 // pred_check_branch
          %753 = sbr.rel (%p751) target = $region48
        $region47: #{virchow_forward.1} parent=11 // pred_region
          _
        $region48: #{virchow_forward.1} parent=11 // pred_fallthru
          _
      $region12: #{virchow_forward.1} parent=5 // pred_fallthru
        _
      %p754 = scmp.lt.s32.totalorder %s34, 2
      // Predicated region
      $region49: #{virchow_forward.1} parent=5 // pred_check
        %p755 = pneg %p754
      $region50: #{virchow_forward.1} parent=5 // pred_check_branch
        %757 = sbr.rel (%p755) target = $region52
      $region51: #{virchow_forward.1} parent=5 // pred_region
        // Predicated region
        $region53: #{virchow_forward.1} parent=51 // pred_check
          %p758 = pneg %p243
        $region54: #{virchow_forward.1} parent=51 // pred_check_branch
          %760 = sbr.rel (%p758) target = $region56
        $region55: #{virchow_forward.1} parent=51 // pred_region
          %p761 = scmp.lt.s32.totalorder %s34, 1
          %s762 = scalar_select %p761, %s34, 1
          %s763 = scalar_lea.vmem %s9, %s762
        $region56: #{virchow_forward.1} parent=51 // pred_fallthru
          _
        // Predicated region
        $region57: #{virchow_forward.1} parent=51 // pred_check
          %p764 = pneg %p269
        $region58: #{virchow_forward.1} parent=51 // pred_check_branch
          %766 = sbr.rel (%p764) target = $region60
        $region59: #{virchow_forward.1} parent=51 // pred_region
          %p767 = scmp.lt.s32.totalorder %s34, 1
          %s768 = scalar_select %p767, %s34, 1
          %s769 = scalar_lea.vmem %s10, %s768
        $region60: #{virchow_forward.1} parent=51 // pred_fallthru
          _
        // Predicated region
        $region61: #{virchow_forward.1} parent=51 // pred_check
          %p770 = pneg %p295
        $region62: #{virchow_forward.1} parent=51 // pred_check_branch
          %772 = sbr.rel (%p770) target = $region64
        $region63: #{virchow_forward.1} parent=51 // pred_region
          %p773 = scmp.lt.s32.totalorder %s34, 1
          %s774 = scalar_select %p773, %s34, 1
          %s775 = smul.addr %s774, 4
          %s776 = smul.addr %s775, 4
          %s777 = scalar_lea.vmem %s11, %s776
        $region64: #{virchow_forward.1} parent=51 // pred_fallthru
          _
        // Predicated region
        $region65: #{virchow_forward.1} parent=51 // pred_check
          %p778 = pneg %p321
        $region66: #{virchow_forward.1} parent=51 // pred_check_branch
          %780 = sbr.rel (%p778) target = $region68
        $region67: #{virchow_forward.1} parent=51 // pred_region
          %p781 = scmp.lt.s32.totalorder %s34, 1
          %s782 = scalar_select %p781, %s34, 1
          %s783 = scalar_lea.vmem %s12, %s782
        $region68: #{virchow_forward.1} parent=51 // pred_fallthru
          _
        // Predicated region
        $region69: #{virchow_forward.1} parent=51 // pred_check
          %p784 = pneg %p347
        $region70: #{virchow_forward.1} parent=51 // pred_check_branch
          %786 = sbr.rel (%p784) target = $region72
        $region71: #{virchow_forward.1} parent=51 // pred_region
          %p787 = scmp.lt.s32.totalorder %s34, 1
          %s788 = scalar_select %p787, %s34, 1
          %s789 = smul.addr %s788, 4
          %s790 = smul.addr %s789, 4
          %s791 = scalar_lea.vmem %s13, %s790
        $region72: #{virchow_forward.1} parent=51 // pred_fallthru
          _
        // Predicated region
        $region73: #{virchow_forward.1} parent=51 // pred_check
          %p792 = pneg %p373
        $region74: #{virchow_forward.1} parent=51 // pred_check_branch
          %794 = sbr.rel (%p792) target = $region76
        $region75: #{virchow_forward.1} parent=51 // pred_region
          %p795 = scmp.lt.s32.totalorder %s34, 1
          %s796 = scalar_select %p795, %s34, 1
          %s797 = scalar_lea.vmem %s14, %s796
        $region76: #{virchow_forward.1} parent=51 // pred_fallthru
          _
        // Predicated region
        $region77: #{virchow_forward.1} parent=51 // pred_check
          %p798 = pneg %p399
        $region78: #{virchow_forward.1} parent=51 // pred_check_branch
          %800 = sbr.rel (%p798) target = $region80
        $region79: #{virchow_forward.1} parent=51 // pred_region
          %p801 = scmp.lt.s32.totalorder %s34, 1
          %s802 = scalar_select %p801, %s34, 1
          %s803 = smul.addr %s802, 4
          %s804 = smul.addr %s803, 4
          %s805 = scalar_lea.vmem %s15, %s804
        $region80: #{virchow_forward.1} parent=51 // pred_fallthru
          _
        // Predicated region
        $region81: #{virchow_forward.1} parent=51 // pred_check
          %p806 = pneg %p425
        $region82: #{virchow_forward.1} parent=51 // pred_check_branch
          %808 = sbr.rel (%p806) target = $region84
        $region83: #{virchow_forward.1} parent=51 // pred_region
          %p809 = scmp.lt.s32.totalorder %s34, 1
          %s810 = scalar_select %p809, %s34, 1
          %s811 = scalar_lea.vmem %s16, %s810
        $region84: #{virchow_forward.1} parent=51 // pred_fallthru
          _
        // Predicated region
        $region85: #{virchow_forward.1} parent=51 // pred_check
          %p812 = pneg %p451
        $region86: #{virchow_forward.1} parent=51 // pred_check_branch
          %814 = sbr.rel (%p812) target = $region88
        $region87: #{virchow_forward.1} parent=51 // pred_region
          %p815 = scmp.lt.s32.totalorder %s34, 1
          %s816 = scalar_select %p815, %s34, 1
          %s817 = smul.addr %s816, 4
          %s818 = smul.addr %s817, 4
          %s819 = scalar_lea.vmem %s17, %s818
        $region88: #{virchow_forward.1} parent=51 // pred_fallthru
          _
        // Predicated region
        $region89: #{virchow_forward.1} parent=51 // pred_check
          %p820 = pneg %p477
        $region90: #{virchow_forward.1} parent=51 // pred_check_branch
          %822 = sbr.rel (%p820) target = $region92
        $region91: #{virchow_forward.1} parent=51 // pred_region
          %p823 = scmp.lt.s32.totalorder %s34, 1
          %s824 = scalar_select %p823, %s34, 1
          %s825 = scalar_lea.vmem %s18, %s824
        $region92: #{virchow_forward.1} parent=51 // pred_fallthru
          _
        // Predicated region
        $region93: #{virchow_forward.1} parent=51 // pred_check
          %p826 = pneg %p503
        $region94: #{virchow_forward.1} parent=51 // pred_check_branch
          %828 = sbr.rel (%p826) target = $region96
        $region95: #{virchow_forward.1} parent=51 // pred_region
          %p829 = scmp.lt.s32.totalorder %s34, 1
          %s830 = scalar_select %p829, %s34, 1
          %s831 = scalar_lea.vmem %s19, %s830
        $region96: #{virchow_forward.1} parent=51 // pred_fallthru
          _
        // Predicated region
        $region97: #{virchow_forward.1} parent=51 // pred_check
          %p832 = pneg %p529
        $region98: #{virchow_forward.1} parent=51 // pred_check_branch
          %834 = sbr.rel (%p832) target = $region100
        $region99: #{virchow_forward.1} parent=51 // pred_region
          %p835 = scmp.lt.s32.totalorder %s34, 1
          %s836 = scalar_select %p835, %s34, 1
          %s837 = scalar_lea.vmem %s20, %s836
        $region100: #{virchow_forward.1} parent=51 // pred_fallthru
          _
        // Predicated region
        $region101: #{virchow_forward.1} parent=51 // pred_check
          %p838 = pneg %p555
        $region102: #{virchow_forward.1} parent=51 // pred_check_branch
          %840 = sbr.rel (%p838) target = $region104
        $region103: #{virchow_forward.1} parent=51 // pred_region
          %p841 = scmp.lt.s32.totalorder %s34, 1
          %s842 = scalar_select %p841, %s34, 1
          %s843 = smul.addr %s842, 4
          %s844 = smul.addr %s843, 4
          %s845 = scalar_lea.vmem %s21, %s844
        $region104: #{virchow_forward.1} parent=51 // pred_fallthru
          _
        // Predicated region
        $region105: #{virchow_forward.1} parent=51 // pred_check
          %p846 = pneg %p581
        $region106: #{virchow_forward.1} parent=51 // pred_check_branch
          %848 = sbr.rel (%p846) target = $region108
        $region107: #{virchow_forward.1} parent=51 // pred_region
          %p849 = scmp.lt.s32.totalorder %s34, 1
          %s850 = scalar_select %p849, %s34, 1
          %s851 = scalar_lea.vmem %s22, %s850
        $region108: #{virchow_forward.1} parent=51 // pred_fallthru
          _
        // Predicated region
        $region109: #{virchow_forward.1} parent=51 // pred_check
          %p852 = pneg %p607
        $region110: #{virchow_forward.1} parent=51 // pred_check_branch
          %854 = sbr.rel (%p852) target = $region112
        $region111: #{virchow_forward.1} parent=51 // pred_region
          %p855 = scmp.lt.s32.totalorder %s34, 1
          %s856 = scalar_select %p855, %s34, 1
          %s857 = smul.addr %s856, 4
          %s858 = smul.addr %s857, 4
          %s859 = scalar_lea.vmem %s23, %s858
        $region112: #{virchow_forward.1} parent=51 // pred_fallthru
          _
        // Predicated region
        $region113: #{virchow_forward.1} parent=51 // pred_check
          %p860 = pneg %p633
        $region114: #{virchow_forward.1} parent=51 // pred_check_branch
          %862 = sbr.rel (%p860) target = $region116
        $region115: #{virchow_forward.1} parent=51 // pred_region
          %p863 = scmp.lt.s32.totalorder %s34, 1
          %s864 = scalar_select %p863, %s34, 1
          %s865 = scalar_lea.vmem %s24, %s864
        $region116: #{virchow_forward.1} parent=51 // pred_fallthru
          _
        // Predicated region
        $region117: #{virchow_forward.1} parent=51 // pred_check
          %p866 = pneg %p659
        $region118: #{virchow_forward.1} parent=51 // pred_check_branch
          %868 = sbr.rel (%p866) target = $region120
        $region119: #{virchow_forward.1} parent=51 // pred_region
          %p869 = scmp.lt.s32.totalorder %s34, 1
          %s870 = scalar_select %p869, %s34, 1
          %s871 = smul.addr %s870, 8
          %s872 = smul.addr %s871, 4
          %s873 = scalar_lea.vmem %s25, %s872
        $region120: #{virchow_forward.1} parent=51 // pred_fallthru
          _
        // Predicated region
        $region121: #{virchow_forward.1} parent=51 // pred_check
          %p874 = pneg %p685
        $region122: #{virchow_forward.1} parent=51 // pred_check_branch
          %876 = sbr.rel (%p874) target = $region124
        $region123: #{virchow_forward.1} parent=51 // pred_region
          %p877 = scmp.lt.s32.totalorder %s34, 1
          %s878 = scalar_select %p877, %s34, 1
          %s879 = scalar_lea.vmem %s26, %s878
        $region124: #{virchow_forward.1} parent=51 // pred_fallthru
          _
      $region52: #{virchow_forward.1} parent=5 // pred_fallthru
        _
      %p880 = scmp.le.s32.totalorder 1, %s34
      %p881 = scmp.lt.s32.totalorder %s34, 3
      %p882 = pnand %p880, %p881
      %p883 = pneg %p882
      // Predicated region
      $region125: #{virchow_forward.1} parent=5 // pred_check
        _
      $region126: #{virchow_forward.1} parent=5 // pred_check_branch
        %885 = sbr.rel (%p882) target = $region128
      $region127: #{virchow_forward.1} parent=5 // pred_region
        %s886 = ssub.s32 %s34, 1
        %p887 = pneg %p55
        %p888 = pneg %p52
        %p889 = pneg %p76
        %p890 = pneg %p73
        %p891 = pneg %p97
        %p892 = pneg %p94
        %p893 = pneg %p118
        %p894 = pneg %p115
        %p895 = pneg %p139
        %p896 = pneg %p136
        %p897 = pneg %p160
        %p898 = pneg %p157
        %p899 = pneg %p181
        %p900 = pneg %p178
        %p901 = pneg %p202
        %p902 = pneg %p199
        %p903 = pneg %p223
        %p904 = pneg %p220
        %p905 = scmp.lt.s32.totalorder %s39, 1
        %s906 = scalar_select %p905, %s39, 1
        %s907 = scalar_lea.vmem %s9, %s906
        %p908 = pneg %p249
        %p909 = pneg %p246
        %p910 = scmp.lt.s32.totalorder %s39, 1
        %s911 = scalar_select %p910, %s39, 1
        %s912 = scalar_lea.vmem %s10, %s911
        %p913 = pneg %p275
        %p914 = pneg %p272
        %p915 = scmp.lt.s32.totalorder %s39, 1
        %s916 = scalar_select %p915, %s39, 1
        %s917 = smul.addr %s916, 4
        %s918 = smul.addr %s917, 4
        %s919 = scalar_lea.vmem %s11, %s918
        %p920 = pneg %p301
        %p921 = pneg %p298
        %p922 = scmp.lt.s32.totalorder %s39, 1
        %s923 = scalar_select %p922, %s39, 1
        %s924 = scalar_lea.vmem %s12, %s923
        %p925 = pneg %p327
        %p926 = pneg %p324
        %p927 = scmp.lt.s32.totalorder %s39, 1
        %s928 = scalar_select %p927, %s39, 1
        %s929 = smul.addr %s928, 4
        %s930 = smul.addr %s929, 4
        %s931 = scalar_lea.vmem %s13, %s930
        %p932 = pneg %p353
        %p933 = pneg %p350
        %p934 = scmp.lt.s32.totalorder %s39, 1
        %s935 = scalar_select %p934, %s39, 1
        %s936 = scalar_lea.vmem %s14, %s935
        %p937 = pneg %p379
        %p938 = pneg %p376
        %p939 = scmp.lt.s32.totalorder %s39, 1
        %s940 = scalar_select %p939, %s39, 1
        %s941 = smul.addr %s940, 4
        %s942 = smul.addr %s941, 4
        %s943 = scalar_lea.vmem %s15, %s942
        %p944 = pneg %p405
        %p945 = pneg %p402
        %p946 = scmp.lt.s32.totalorder %s39, 1
        %s947 = scalar_select %p946, %s39, 1
        %s948 = scalar_lea.vmem %s16, %s947
        %p949 = pneg %p431
        %p950 = pneg %p428
        %p951 = scmp.lt.s32.totalorder %s39, 1
        %s952 = scalar_select %p951, %s39, 1
        %s953 = smul.addr %s952, 4
        %s954 = smul.addr %s953, 4
        %s955 = scalar_lea.vmem %s17, %s954
        %p956 = pneg %p457
        %p957 = pneg %p454
        %p958 = scmp.lt.s32.totalorder %s39, 1
        %s959 = scalar_select %p958, %s39, 1
        %s960 = scalar_lea.vmem %s18, %s959
        %p961 = pneg %p483
        %p962 = pneg %p480
        %p963 = scmp.lt.s32.totalorder %s39, 1
        %s964 = scalar_select %p963, %s39, 1
        %s965 = scalar_lea.vmem %s19, %s964
        %p966 = pneg %p509
        %p967 = pneg %p506
        %p968 = scmp.lt.s32.totalorder %s39, 1
        %s969 = scalar_select %p968, %s39, 1
        %s970 = scalar_lea.vmem %s20, %s969
        %p971 = pneg %p535
        %p972 = pneg %p532
        %p973 = scmp.lt.s32.totalorder %s39, 1
        %s974 = scalar_select %p973, %s39, 1
        %s975 = smul.addr %s974, 4
        %s976 = smul.addr %s975, 4
        %s977 = scalar_lea.vmem %s21, %s976
        %p978 = pneg %p561
        %p979 = pneg %p558
        %p980 = scmp.lt.s32.totalorder %s39, 1
        %s981 = scalar_select %p980, %s39, 1
        %s982 = scalar_lea.vmem %s22, %s981
        %p983 = pneg %p587
        %p984 = pneg %p584
        %p985 = scmp.lt.s32.totalorder %s39, 1
        %s986 = scalar_select %p985, %s39, 1
        %s987 = smul.addr %s986, 4
        %s988 = smul.addr %s987, 4
        %s989 = scalar_lea.vmem %s23, %s988
        %p990 = pneg %p613
        %p991 = pneg %p610
        %p992 = scmp.lt.s32.totalorder %s39, 1
        %s993 = scalar_select %p992, %s39, 1
        %s994 = scalar_lea.vmem %s24, %s993
        %p995 = pneg %p639
        %p996 = pneg %p636
        %p997 = scmp.lt.s32.totalorder %s39, 1
        %s998 = scalar_select %p997, %s39, 1
        %s999 = smul.addr %s998, 8
        %s1000 = smul.addr %s999, 4
        %s1001 = scalar_lea.vmem %s25, %s1000
        %p1002 = pneg %p665
        %p1003 = pneg %p662
        %p1004 = scmp.lt.s32.totalorder %s39, 1
        %s1005 = scalar_select %p1004, %s39, 1
        %s1006 = scalar_lea.vmem %s26, %s1005
        %p1007 = pneg %p691
        %p1008 = pneg %p688
        %p1009 = pneg %p712
        %p1010 = pneg %p709
        %p1011 = scmp.lt.s32.totalorder %s39, 1
        %s1012 = scalar_select %p1011, %s39, 1
        %s1013 = scalar_lea.vmem %s9, %s1012
        %p1014 = scmp.lt.s32.totalorder %s39, 1
        %s1015 = scalar_select %p1014, %s39, 1
        %s1016 = scalar_lea.vmem %s10, %s1015
        %p1017 = scmp.lt.s32.totalorder %s39, 1
        %s1018 = scalar_select %p1017, %s39, 1
        %s1019 = smul.addr %s1018, 4
        %s1020 = smul.addr %s1019, 4
        %s1021 = scalar_lea.vmem %s11, %s1020
        %p1022 = scmp.lt.s32.totalorder %s39, 1
        %s1023 = scalar_select %p1022, %s39, 1
        %s1024 = scalar_lea.vmem %s12, %s1023
        %p1025 = scmp.lt.s32.totalorder %s39, 1
        %s1026 = scalar_select %p1025, %s39, 1
        %s1027 = smul.addr %s1026, 4
        %s1028 = smul.addr %s1027, 4
        %s1029 = scalar_lea.vmem %s13, %s1028
        %p1030 = scmp.lt.s32.totalorder %s39, 1
        %s1031 = scalar_select %p1030, %s39, 1
        %s1032 = scalar_lea.vmem %s14, %s1031
        %p1033 = scmp.lt.s32.totalorder %s39, 1
        %s1034 = scalar_select %p1033, %s39, 1
        %s1035 = smul.addr %s1034, 4
        %s1036 = smul.addr %s1035, 4
        %s1037 = scalar_lea.vmem %s15, %s1036
        %p1038 = scmp.lt.s32.totalorder %s39, 1
        %s1039 = scalar_select %p1038, %s39, 1
        %s1040 = scalar_lea.vmem %s16, %s1039
        %p1041 = scmp.lt.s32.totalorder %s39, 1
        %s1042 = scalar_select %p1041, %s39, 1
        %s1043 = smul.addr %s1042, 4
        %s1044 = smul.addr %s1043, 4
        %s1045 = scalar_lea.vmem %s17, %s1044
        %p1046 = scmp.lt.s32.totalorder %s39, 1
        %s1047 = scalar_select %p1046, %s39, 1
        %s1048 = scalar_lea.vmem %s18, %s1047
        %p1049 = scmp.lt.s32.totalorder %s39, 1
        %s1050 = scalar_select %p1049, %s39, 1
        %s1051 = scalar_lea.vmem %s19, %s1050
        %p1052 = scmp.lt.s32.totalorder %s39, 1
        %s1053 = scalar_select %p1052, %s39, 1
        %s1054 = scalar_lea.vmem %s20, %s1053
        %p1055 = scmp.lt.s32.totalorder %s39, 1
        %s1056 = scalar_select %p1055, %s39, 1
        %s1057 = smul.addr %s1056, 4
        %s1058 = smul.addr %s1057, 4
        %s1059 = scalar_lea.vmem %s21, %s1058
        %p1060 = scmp.lt.s32.totalorder %s39, 1
        %s1061 = scalar_select %p1060, %s39, 1
        %s1062 = scalar_lea.vmem %s22, %s1061
        %p1063 = scmp.lt.s32.totalorder %s39, 1
        %s1064 = scalar_select %p1063, %s39, 1
        %s1065 = smul.addr %s1064, 4
        %s1066 = smul.addr %s1065, 4
        %s1067 = scalar_lea.vmem %s23, %s1066
        %p1068 = scmp.lt.s32.totalorder %s39, 1
        %s1069 = scalar_select %p1068, %s39, 1
        %s1070 = scalar_lea.vmem %s24, %s1069
        %p1071 = scmp.lt.s32.totalorder %s39, 1
        %s1072 = scalar_select %p1071, %s39, 1
        %s1073 = smul.addr %s1072, 8
        %s1074 = smul.addr %s1073, 4
        %s1075 = scalar_lea.vmem %s25, %s1074
        %p1076 = scmp.lt.s32.totalorder %s39, 1
        %s1077 = scalar_select %p1076, %s39, 1
        %s1078 = scalar_lea.vmem %s26, %s1077
        %p1080 = scmp.eq.s32.totalorder %s39, 0
        // Predicated region
        $region129: #{virchow_forward.1} parent=127 // pred_check
          %p1081 = pneg %p1080
        $region130: #{virchow_forward.1} parent=127 // pred_check_branch
          %1083 = sbr.rel (%p1081) target = $region132
        $region131: #{virchow_forward.1} parent=127 // pred_region
          %v1084 = vld [vmem:[%s0] sm:$0xff]
          %v1085 = vld [vmem:[%s1] sm:$0xf]
          %v1086 = vld [vmem:[%s1 + $0x4] sm:$0xf]
          %v1087 = vld [vmem:[%s1 + $0x8] sm:$0xf]
          %v1088 = vld [vmem:[%s1 + $0xc] sm:$0xf]
          %v1089 = vld [vmem:[%s1 + $0x10] sm:$0xf]
          %v1090 = vld [vmem:[%s1 + $0x14] sm:$0xf]
          %v1091 = vld [vmem:[%s1 + $0x18] sm:$0xf]
          %v1092 = vld [vmem:[%s1 + $0x1c] sm:$0xf]
          %v1093 = vld [vmem:[%s1 + $0x20] sm:$0xf]
          %v1094 = vld [vmem:[%s1 + $0x24] sm:$0xf]
          %v1095 = vld [vmem:[%s1 + $0x28] sm:$0xf]
          %v1096 = vld [vmem:[%s1 + $0x2c] sm:$0xf]
          %v1097 = vld [vmem:[%s1 + $0x30] sm:$0xf]
          %v1098 = vld [vmem:[%s1 + $0x34] sm:$0xf]
          %v1099 = vld [vmem:[%s1 + $0x38] sm:$0xf]
          %v1100 = vld [vmem:[%s1 + $0x3c] sm:$0xf]
          %v1101 = vld [vmem:[%s1 + $0x40] sm:$0xf]
          %v1102 = vld [vmem:[%s1 + $0x44] sm:$0xf]
          %v1103 = vld [vmem:[%s1 + $0x48] sm:$0xf]
          %v1104 = vld [vmem:[%s1 + $0x4c] sm:$0xf]
          %v1105 = vld [vmem:[%s1 + $0x50] sm:$0xf]
          %v1106 = vld [vmem:[%s1 + $0x54] sm:$0xf]
          %v1107 = vld [vmem:[%s1 + $0x58] sm:$0xf]
          %v1108 = vld [vmem:[%s1 + $0x5c] sm:$0xf]
          %v1110 = vunpack.c.l.b16 %v1084
          %v1111 = vunpack.c.h.b16 %v1084
          %v1112 = vpack.c.b16 %v1110, %v1110
          %v1113 = vpack.c.b16 %v1111, %v1111
          %v1139 = vunpack.c.l.b16 %v1085
          %v1140 = vunpack.c.l.b16 %v1086
          %v1141 = vunpack.c.l.b16 %v1087
          %v1142 = vunpack.c.l.b16 %v1088
          %v1143 = vunpack.c.l.b16 %v1089
          %v1144 = vunpack.c.l.b16 %v1090
          %v1145 = vunpack.c.l.b16 %v1091
          %v1146 = vunpack.c.l.b16 %v1092
          %v1147 = vunpack.c.l.b16 %v1093
          %v1148 = vunpack.c.l.b16 %v1094
          %v1149 = vunpack.c.l.b16 %v1095
          %v1150 = vunpack.c.l.b16 %v1096
          %v1151 = vunpack.c.l.b16 %v1097
          %v1152 = vunpack.c.l.b16 %v1098
          %v1153 = vunpack.c.l.b16 %v1099
          %v1154 = vunpack.c.l.b16 %v1100
          %v1155 = vunpack.c.l.b16 %v1101
          %v1156 = vunpack.c.l.b16 %v1102
          %v1157 = vunpack.c.l.b16 %v1103
          %v1158 = vunpack.c.l.b16 %v1104
          %v1159 = vunpack.c.l.b16 %v1105
          %v1160 = vunpack.c.l.b16 %v1106
          %v1161 = vunpack.c.l.b16 %v1107
          %v1162 = vunpack.c.l.b16 %v1108
          %v1163 = vpack.c.b16 %v1140, %v1139
          %v1164 = vpack.c.b16 %v1142, %v1141
          %v1165 = vpack.c.b16 %v1144, %v1143
          %v1166 = vpack.c.b16 %v1146, %v1145
          %v1167 = vpack.c.b16 %v1148, %v1147
          %v1168 = vpack.c.b16 %v1150, %v1149
          %v1169 = vpack.c.b16 %v1152, %v1151
          %v1170 = vpack.c.b16 %v1154, %v1153
          %v1171 = vpack.c.b16 %v1156, %v1155
          %v1172 = vpack.c.b16 %v1158, %v1157
          %v1173 = vpack.c.b16 %v1160, %v1159
          %v1174 = vpack.c.b16 %v1162, %v1161
          %vm1187 = vcmask 523264
          %v1189 = vsel %vm1187, %v1113, 0
          %1191 = vmatprep.subr.bf16.mxu0 0
          %1192 = vmatpush1.bf16.msra.mxu0 %v1163
          %1193 = vmatprep.subr.bf16.mxu0 0
          %1194 = vmatpush1.bf16.msra.mxu0 %v1164
          %1195 = vmatprep.subr.bf16.mxu0 0
          %1196 = vmatpush1.bf16.msra.mxu0 %v1165
          %1197 = vmatprep.subr.bf16.mxu0 0
          %1198 = vmatpush1.bf16.msra.mxu0 %v1166
          %1199 = vmatprep.subr.bf16.mxu0 0
          %1200 = vmatpush1.bf16.msra.mxu0 %v1167
          %1201 = vmatprep.subr.bf16.mxu0 0
          %1202 = vmatpush1.bf16.msra.mxu0 %v1168
          %1203 = vmatprep.subr.bf16.mxu0 0
          %1204 = vmatpush1.bf16.msra.mxu0 %v1169
          %1205 = vmatprep.subr.bf16.mxu0 0
          %1206 = vmatpush1.bf16.msra.mxu0 %v1170
          %1207 = vmatprep.subr.bf16.mxu0 0
          %1208 = vmatpush1.bf16.msra.mxu0 %v1171
          %1209 = vmatprep.subr.bf16.mxu0 0
          %1210 = vmatpush1.bf16.msra.mxu0 %v1172
          %1211 = vmatprep.subr.bf16.mxu0 0
          %1212 = vmatpush1.bf16.msra.mxu0 %v1173
          %1213 = vmatprep.subr.bf16.mxu0 0
          %1214 = vmatpush1.bf16.msra.mxu0 %v1174
          %1215 = vmatprep.subr.bf16.mxu0 0
          %1216 = vmatpush1.bf16.msra.mxu0 0
          %1217 = vmatprep.subr.bf16.mxu0 0
          %1218 = vmatpush1.bf16.msra.mxu0 0
          %1219 = vmatprep.subr.bf16.mxu0 0
          %1220 = vmatpush1.bf16.msra.mxu0 0
          %1221 = vmatprep.subr.bf16.mxu0 0
          %1222 = vmatpush1.bf16.msra.mxu0 0
          %1223 = vmatprep.mubr.bf16.mxu0 %v1189
          %1224 = vmatmul.mubr.bf16.gmra.mrb[0].mxu0 %v1112
          %v1225 = vpop.f32.mrb[0].mxu0
          %v1226 = vadd.f32 0.0, %v1225
          %v1227 = vpop.f32.mrb[0].mxu0
          %v1228 = vpop.f32.mrb[0].mxu0
          %v1229 = vpop.f32.mrb[0].mxu0
          %1230 = vdwg.mxu0
          %v1231 = vld [vmem:[%s2] sm:$0xff]
          %v1232 = vld [vmem:[%s2 + $0x8] sm:$0xff]
          %v1233 = vld [vmem:[%s3] sm:$0xff]
          %v1234 = vld [vmem:[%s3 + $0x8] sm:$0xff]
          %vm1235 = vcmask 64512
          %v1237 = vsel %vm1235, %v1231, 0
          %v1240 = vsel %vm1235, %v1232, 0
          %1242 = vmatprep.subr.mxu0 0.0
          %1243 = vmatpush1.msra.mxu0 %v1226
          %1244 = vmatprep.subr.mxu0 0.0
          %1245 = vmatpush1.msra.mxu0 0.0
          %1246 = vmatprep.subr.mxu0 0.0
          %1247 = vmatpush1.msra.mxu0 0.0
          %1248 = vmatprep.subr.mxu0 0.0
          %1249 = vmatpush1.msra.mxu0 0.0
          %1250 = vmatprep.subr.mxu0 0.0
          %1251 = vmatpush1.msra.mxu0 0.0
          %1252 = vmatprep.subr.mxu0 0.0
          %1253 = vmatpush1.msra.mxu0 0.0
          %1254 = vmatprep.subr.mxu0 0.0
          %1255 = vmatpush1.msra.mxu0 0.0
          %1256 = vmatprep.subr.mxu0 0.0
          %1257 = vmatpush1.msra.mxu0 0.0
          %1258 = vmatprep.subr.mxu0 0.0
          %1259 = vmatpush1.msra.mxu0 0.0
          %1260 = vmatprep.subr.mxu0 0.0
          %1261 = vmatpush1.msra.mxu0 0.0
          %1262 = vmatprep.subr.mxu0 0.0
          %1263 = vmatpush1.msra.mxu0 0.0
          %1264 = vmatprep.subr.mxu0 0.0
          %1265 = vmatpush1.msra.mxu0 0.0
          %1266 = vmatprep.subr.mxu0 0.0
          %1267 = vmatpush1.msra.mxu0 0.0
          %1268 = vmatprep.subr.mxu0 0.0
          %1269 = vmatpush1.msra.mxu0 0.0
          %1270 = vmatprep.subr.mxu0 0.0
          %1271 = vmatpush1.msra.mxu0 0.0
          %1272 = vmatprep.subr.mxu0 0.0
          %1273 = vmatpush1.msra.mxu0 0.0
          %1274 = vmatprep.subr.mxu0 0.0
          %1275 = vmatpush1.msra.mxu0 0.0
          %1276 = vmatprep.subr.mxu0 0.0
          %1277 = vmatpush1.msra.mxu0 0.0
          %1278 = vmatprep.subr.mxu0 0.0
          %1279 = vmatpush1.msra.mxu0 0.0
          %1280 = vmatprep.subr.mxu0 0.0
          %1281 = vmatpush1.msra.mxu0 0.0
          %1282 = vmatprep.subr.mxu0 0.0
          %1283 = vmatpush1.msra.mxu0 0.0
          %1284 = vmatprep.subr.mxu0 0.0
          %1285 = vmatpush1.msra.mxu0 0.0
          %1286 = vmatprep.subr.mxu0 0.0
          %1287 = vmatpush1.msra.mxu0 0.0
          %1288 = vmatprep.subr.mxu0 0.0
          %1289 = vmatpush1.msra.mxu0 0.0
          %1290 = vmatprep.subr.mxu0 0.0
          %1291 = vmatpush1.msra.mxu0 0.0
          %1292 = vmatprep.subr.mxu0 0.0
          %1293 = vmatpush1.msra.mxu0 0.0
          %1294 = vmatprep.subr.mxu0 0.0
          %1295 = vmatpush1.msra.mxu0 0.0
          %1296 = vmatprep.subr.mxu0 0.0
          %1297 = vmatpush1.msra.mxu0 0.0
          %1298 = vmatprep.subr.mxu0 0.0
          %1299 = vmatpush1.msra.mxu0 0.0
          %1300 = vmatprep.subr.mxu0 0.0
          %1301 = vmatpush1.msra.mxu0 0.0
          %1302 = vmatprep.subr.mxu0 0.0
          %1303 = vmatpush1.msra.mxu0 0.0
          %1304 = vmatprep.subr.mxu0 0.0
          %1305 = vmatpush1.msra.mxu0 0.0
          %1306 = vmatprep.mubr.f32.mxu0 0.0
          %1307 = vmatmul.mubr.f32.gmra.mrb[0].mxu0 %v1237
          %v1308 = vpop.f32.mrb[0].mxu0
          %v1309 = vadd.f32 %v1233, %v1308
          %v1310 = vpop.f32.mrb[0].mxu0
          %1311 = vmatprep.mubr.f32.mxu0 0.0
          %1312 = vmatmul.mubr.f32.gmra.mrb[0].mxu0 %v1240
          %v1313 = vpop.f32.mrb[0].mxu0
          %v1314 = vadd.f32 %v1234, %v1313
          %v1315 = vpop.f32.mrb[0].mxu0
          %1316 = vdwg.mxu0
          %vm1317 = vcmask 261120
          %1318 = vst.msk [vmem:[#allocation2] sm:$0xff] %vm1317, %v1309
          %1319 = vst.msk [vmem:[#allocation2 + $0x8] sm:$0xff] %vm1317, %v1314
        $region132: #{virchow_forward.1} parent=127 // pred_fallthru
          _
        %v1320 = vld [vmem:[#allocation2] sm:$0xff]
        %v1321 = vld [vmem:[#allocation2 + $0x8] sm:$0xff]
        %v1322 = vld [vmem:[%s1013] sm:$0x1]
        %v1323 = vld [vmem:[%s1016] sm:$0x1]
        %vm1324 = vcmask 261120
        %v1325 = vsel %vm1324, %v1320, 0.0
        %1326 = vadd.xlane.f32.xlu0 %v1325
        %v1327 = vpop.xlane.xlu0 %1326
        %v1328 = vsel %vm1324, %v1321, 0.0
        %1329 = vadd.xlane.f32.xlu0 %v1328
        %v1330 = vpop.xlane.xlu0 %1329
        %v1331 = vrcp.pop 32.0
        %v1332 = vmul.f32 %v1327, %v1331
        %v1333 = vmul.f32 %v1330, %v1331
        %v1334 = vsub.f32 %v1320, %v1332
        %v1335 = vsub.f32 %v1321, %v1333
        %v1336 = vmul.f32 %v1334, %v1334
        %v1337 = vmul.f32 %v1335, %v1335
        %v1338 = vsel %vm1324, %v1336, 0.0
        %1339 = vadd.xlane.f32.xlu0 %v1338
        %v1340 = vpop.xlane.xlu0 %1339
        %v1341 = vsel %vm1324, %v1337, 0.0
        %1342 = vadd.xlane.f32.xlu0 %v1341
        %v1343 = vpop.xlane.xlu0 %1342
        %v1344 = vmul.f32 %v1340, %v1331
        %v1345 = vmul.f32 %v1343, %v1331
        %v1346 = vadd.f32 %v1344, 1e-06
        %v1347 = vadd.f32 %v1345, 1e-06
        %v1348 = vrsqrt.pop %v1346
        %v1349 = vrsqrt.pop %v1347
        %v1350 = vmul.f32 %v1334, %v1348
        %v1351 = vmul.f32 %v1335, %v1349
        %v1353 = vlaneseq
        %v1354 = vshrl.u32 %v1353, 7
        %v1355 = vsub.s32 0, %v1354
        %v1356 = vrot.slane %v1322, %v1355
        %v1358 = vmul.f32 %v1350, %v1356
        %v1359 = vmul.f32 %v1351, %v1356
        %v1361 = vlaneseq
        %v1362 = vshrl.u32 %v1361, 7
        %v1363 = vsub.s32 0, %v1362
        %v1364 = vrot.slane %v1323, %v1363
        %v1366 = vadd.f32 %v1358, %v1364
        %v1367 = vadd.f32 %v1359, %v1364
        %v1368 = vpack.c.bf16 %v1367, %v1366
        %v1369 = vld [vmem:[%s1021] sm:$0xf]
        %v1370 = vld [vmem:[%s1021 + $0x4] sm:$0xf]
        %v1371 = vld [vmem:[%s1021 + $0x8] sm:$0xf]
        %v1372 = vld [vmem:[%s1021 + $0xc] sm:$0xf]
        %v1373 = vld [vmem:[%s1024] sm:$0x1]
        %v1375 = vlaneseq
        %v1376 = vshrl.u32 %v1375, 7
        %v1377 = vsub.s32 0, %v1376
        %v1378 = vrot.slane %v1373, %v1377
        %v1384 = vunpack.c.l.b16 %v1369
        %v1385 = vunpack.c.l.b16 %v1370
        %v1386 = vunpack.c.l.b16 %v1371
        %v1387 = vunpack.c.l.b16 %v1372
        %v1388 = vpack.c.b16 %v1385, %v1384
        %v1389 = vpack.c.b16 %v1387, %v1386
        %v1393 = vsel %vm1324, %v1368, 0
        %1395 = vmatprep.subr.bf16.mxu0 0
        %1396 = vmatpush1.bf16.msra.mxu0 %v1388
        %1397 = vmatprep.subr.bf16.mxu0 0
        %1398 = vmatpush1.bf16.msra.mxu0 %v1389
        %1399 = vmatprep.subr.bf16.mxu0 0
        %1400 = vmatpush1.bf16.msra.mxu0 0
        %1401 = vmatprep.subr.bf16.mxu0 0
        %1402 = vmatpush1.bf16.msra.mxu0 0
        %1403 = vmatprep.subr.bf16.mxu0 0
        %1404 = vmatpush1.bf16.msra.mxu0 0
        %1405 = vmatprep.subr.bf16.mxu0 0
        %1406 = vmatpush1.bf16.msra.mxu0 0
        %1407 = vmatprep.subr.bf16.mxu0 0
        %1408 = vmatpush1.bf16.msra.mxu0 0
        %1409 = vmatprep.subr.bf16.mxu0 0
        %1410 = vmatpush1.bf16.msra.mxu0 0
        %1411 = vmatprep.subr.bf16.mxu0 0
        %1412 = vmatpush1.bf16.msra.mxu0 0
        %1413 = vmatprep.subr.bf16.mxu0 0
        %1414 = vmatpush1.bf16.msra.mxu0 0
        %1415 = vmatprep.subr.bf16.mxu0 0
        %1416 = vmatpush1.bf16.msra.mxu0 0
        %1417 = vmatprep.subr.bf16.mxu0 0
        %1418 = vmatpush1.bf16.msra.mxu0 0
        %1419 = vmatprep.subr.bf16.mxu0 0
        %1420 = vmatpush1.bf16.msra.mxu0 0
        %1421 = vmatprep.subr.bf16.mxu0 0
        %1422 = vmatpush1.bf16.msra.mxu0 0
        %1423 = vmatprep.subr.bf16.mxu0 0
        %1424 = vmatpush1.bf16.msra.mxu0 0
        %1425 = vmatprep.subr.bf16.mxu0 0
        %1426 = vmatpush1.bf16.msra.mxu0 0
        %1427 = vmatprep.mubr.bf16.mxu0 0
        %1428 = vmatmul.mubr.bf16.gmra.mrb[0].mxu0 %v1393
        %v1429 = vpop.f32.mrb[0].mxu0
        %v1430 = vadd.f32 %v1378, %v1429
        %v1431 = vpop.f32.mrb[0].mxu0
        %v1432 = vpop.f32.mrb[0].mxu0
        %v1433 = vadd.f32 %v1378, %v1432
        %v1434 = vpop.f32.mrb[0].mxu0
        %1435 = vdwg.mxu0
        %v1436 = vld [vmem:[%s1029] sm:$0xf]
        %v1437 = vld [vmem:[%s1029 + $0x4] sm:$0xf]
        %v1438 = vld [vmem:[%s1029 + $0x8] sm:$0xf]
        %v1439 = vld [vmem:[%s1029 + $0xc] sm:$0xf]
        %v1440 = vld [vmem:[%s1032] sm:$0x1]
        %v1442 = vlaneseq
        %v1443 = vshrl.u32 %v1442, 7
        %v1444 = vsub.s32 0, %v1443
        %v1445 = vrot.slane %v1440, %v1444
        %v1451 = vunpack.c.l.b16 %v1436
        %v1452 = vunpack.c.l.b16 %v1437
        %v1453 = vunpack.c.l.b16 %v1438
        %v1454 = vunpack.c.l.b16 %v1439
        %v1455 = vpack.c.b16 %v1452, %v1451
        %v1456 = vpack.c.b16 %v1454, %v1453
        %1459 = vmatprep.subr.bf16.mxu0 0
        %1460 = vmatpush1.bf16.msra.mxu0 %v1455
        %1461 = vmatprep.subr.bf16.mxu0 0
        %1462 = vmatpush1.bf16.msra.mxu0 %v1456
        %1463 = vmatprep.subr.bf16.mxu0 0
        %1464 = vmatpush1.bf16.msra.mxu0 0
        %1465 = vmatprep.subr.bf16.mxu0 0
        %1466 = vmatpush1.bf16.msra.mxu0 0
        %1467 = vmatprep.subr.bf16.mxu0 0
        %1468 = vmatpush1.bf16.msra.mxu0 0
        %1469 = vmatprep.subr.bf16.mxu0 0
        %1470 = vmatpush1.bf16.msra.mxu0 0
        %1471 = vmatprep.subr.bf16.mxu0 0
        %1472 = vmatpush1.bf16.msra.mxu0 0
        %1473 = vmatprep.subr.bf16.mxu0 0
        %1474 = vmatpush1.bf16.msra.mxu0 0
        %1475 = vmatprep.subr.bf16.mxu0 0
        %1476 = vmatpush1.bf16.msra.mxu0 0
        %1477 = vmatprep.subr.bf16.mxu0 0
        %1478 = vmatpush1.bf16.msra.mxu0 0
        %1479 = vmatprep.subr.bf16.mxu0 0
        %1480 = vmatpush1.bf16.msra.mxu0 0
        %1481 = vmatprep.subr.bf16.mxu0 0
        %1482 = vmatpush1.bf16.msra.mxu0 0
        %1483 = vmatprep.subr.bf16.mxu0 0
        %1484 = vmatpush1.bf16.msra.mxu0 0
        %1485 = vmatprep.subr.bf16.mxu0 0
        %1486 = vmatpush1.bf16.msra.mxu0 0
        %1487 = vmatprep.subr.bf16.mxu0 0
        %1488 = vmatpush1.bf16.msra.mxu0 0
        %1489 = vmatprep.subr.bf16.mxu0 0
        %1490 = vmatpush1.bf16.msra.mxu0 0
        %1491 = vmatprep.mubr.bf16.mxu0 0
        %1492 = vmatmul.mubr.bf16.gmra.mrb[0].mxu0 %v1393
        %v1493 = vpop.f32.mrb[0].mxu0
        %v1494 = vadd.f32 %v1445, %v1493
        %v1495 = vpop.f32.mrb[0].mxu0
        %v1496 = vpop.f32.mrb[0].mxu0
        %v1497 = vadd.f32 %v1445, %v1496
        %v1498 = vpop.f32.mrb[0].mxu0
        %1499 = vdwg.mxu0
        %v1500 = vld [vmem:[%s1037] sm:$0xf]
        %v1501 = vld [vmem:[%s1037 + $0x4] sm:$0xf]
        %v1502 = vld [vmem:[%s1037 + $0x8] sm:$0xf]
        %v1503 = vld [vmem:[%s1037 + $0xc] sm:$0xf]
        %v1504 = vld [vmem:[%s1040] sm:$0x1]
        %v1506 = vlaneseq
        %v1507 = vshrl.u32 %v1506, 7
        %v1508 = vsub.s32 0, %v1507
        %v1509 = vrot.slane %v1504, %v1508
        %v1515 = vunpack.c.l.b16 %v1500
        %v1516 = vunpack.c.l.b16 %v1501
        %v1517 = vunpack.c.l.b16 %v1502
        %v1518 = vunpack.c.l.b16 %v1503
        %v1519 = vpack.c.b16 %v1516, %v1515
        %v1520 = vpack.c.b16 %v1518, %v1517
        %1523 = vmatprep.subr.bf16.mxu0 0
        %1524 = vmatpush1.bf16.msra.mxu0 %v1519
        %1525 = vmatprep.subr.bf16.mxu0 0
        %1526 = vmatpush1.bf16.msra.mxu0 %v1520
        %1527 = vmatprep.subr.bf16.mxu0 0
        %1528 = vmatpush1.bf16.msra.mxu0 0
        %1529 = vmatprep.subr.bf16.mxu0 0
        %1530 = vmatpush1.bf16.msra.mxu0 0
        %1531 = vmatprep.subr.bf16.mxu0 0
        %1532 = vmatpush1.bf16.msra.mxu0 0
        %1533 = vmatprep.subr.bf16.mxu0 0
        %1534 = vmatpush1.bf16.msra.mxu0 0
        %1535 = vmatprep.subr.bf16.mxu0 0
        %1536 = vmatpush1.bf16.msra.mxu0 0
        %1537 = vmatprep.subr.bf16.mxu0 0
        %1538 = vmatpush1.bf16.msra.mxu0 0
        %1539 = vmatprep.subr.bf16.mxu0 0
        %1540 = vmatpush1.bf16.msra.mxu0 0
        %1541 = vmatprep.subr.bf16.mxu0 0
        %1542 = vmatpush1.bf16.msra.mxu0 0
        %1543 = vmatprep.subr.bf16.mxu0 0
        %1544 = vmatpush1.bf16.msra.mxu0 0
        %1545 = vmatprep.subr.bf16.mxu0 0
        %1546 = vmatpush1.bf16.msra.mxu0 0
        %1547 = vmatprep.subr.bf16.mxu0 0
        %1548 = vmatpush1.bf16.msra.mxu0 0
        %1549 = vmatprep.subr.bf16.mxu0 0
        %1550 = vmatpush1.bf16.msra.mxu0 0
        %1551 = vmatprep.subr.bf16.mxu0 0
        %1552 = vmatpush1.bf16.msra.mxu0 0
        %1553 = vmatprep.subr.bf16.mxu0 0
        %1554 = vmatpush1.bf16.msra.mxu0 0
        %1555 = vmatprep.mubr.bf16.mxu0 0
        %1556 = vmatmul.mubr.bf16.gmra.mrb[0].mxu0 %v1393
        %v1557 = vpop.f32.mrb[0].mxu0
        %v1558 = vadd.f32 %v1509, %v1557
        %v1559 = vpop.f32.mrb[0].mxu0
        %v1560 = vpop.f32.mrb[0].mxu0
        %v1561 = vadd.f32 %v1509, %v1560
        %v1562 = vpop.f32.mrb[0].mxu0
        %1563 = vdwg.mxu0
        %v1564 = vld [vmem:[%s4] sm:$0xff]
        %v1565 = vld [vmem:[%s4 + $0x8] sm:$0xff]
        %vm1566 = vcmask 64512
        %v1568 = vsel %vm1566, %v1430, 0
        %v1571 = vsel %vm1566, %v1433, 0
        %v1574 = vsel %vm1566, %v1494, 0
        %v1577 = vsel %vm1566, %v1497, 0
        %1579 = vmatprep.subr.mxu0 0.0
        %1580 = vmatpush1.xpose.msra.mxu0 %v1574
        %1581 = vmatprep.subr.mxu0 0.0
        %1582 = vmatpush1.xpose.msra.mxu0 %v1577
        %1583 = vmatprep.subr.mxu0 0.0
        %1584 = vmatpush1.xpose.msra.mxu0 0.0
        %1585 = vmatprep.subr.mxu0 0.0
        %1586 = vmatpush1.xpose.msra.mxu0 0.0
        %1587 = vmatprep.subr.mxu0 0.0
        %1588 = vmatpush1.xpose.msra.mxu0 0.0
        %1589 = vmatprep.subr.mxu0 0.0
        %1590 = vmatpush1.xpose.msra.mxu0 0.0
        %1591 = vmatprep.subr.mxu0 0.0
        %1592 = vmatpush1.xpose.msra.mxu0 0.0
        %1593 = vmatprep.subr.mxu0 0.0
        %1594 = vmatpush1.xpose.msra.mxu0 0.0
        %1595 = vmatprep.subr.mxu0 0.0
        %1596 = vmatpush1.xpose.msra.mxu0 0.0
        %1597 = vmatprep.subr.mxu0 0.0
        %1598 = vmatpush1.xpose.msra.mxu0 0.0
        %1599 = vmatprep.subr.mxu0 0.0
        %1600 = vmatpush1.xpose.msra.mxu0 0.0
        %1601 = vmatprep.subr.mxu0 0.0
        %1602 = vmatpush1.xpose.msra.mxu0 0.0
        %1603 = vmatprep.subr.mxu0 0.0
        %1604 = vmatpush1.xpose.msra.mxu0 0.0
        %1605 = vmatprep.subr.mxu0 0.0
        %1606 = vmatpush1.xpose.msra.mxu0 0.0
        %1607 = vmatprep.subr.mxu0 0.0
        %1608 = vmatpush1.xpose.msra.mxu0 0.0
        %1609 = vmatprep.subr.mxu0 0.0
        %1610 = vmatpush1.xpose.msra.mxu0 0.0
        %1611 = vmatprep.subr.mxu0 0.0
        %1612 = vmatpush1.xpose.msra.mxu0 0.0
        %1613 = vmatprep.subr.mxu0 0.0
        %1614 = vmatpush1.xpose.msra.mxu0 0.0
        %1615 = vmatprep.subr.mxu0 0.0
        %1616 = vmatpush1.xpose.msra.mxu0 0.0
        %1617 = vmatprep.subr.mxu0 0.0
        %1618 = vmatpush1.xpose.msra.mxu0 0.0
        %1619 = vmatprep.subr.mxu0 0.0
        %1620 = vmatpush1.xpose.msra.mxu0 0.0
        %1621 = vmatprep.subr.mxu0 0.0
        %1622 = vmatpush1.xpose.msra.mxu0 0.0
        %1623 = vmatprep.subr.mxu0 0.0
        %1624 = vmatpush1.xpose.msra.mxu0 0.0
        %1625 = vmatprep.subr.mxu0 0.0
        %1626 = vmatpush1.xpose.msra.mxu0 0.0
        %1627 = vmatprep.subr.mxu0 0.0
        %1628 = vmatpush1.xpose.msra.mxu0 0.0
        %1629 = vmatprep.subr.mxu0 0.0
        %1630 = vmatpush1.xpose.msra.mxu0 0.0
        %1631 = vmatprep.subr.mxu0 0.0
        %1632 = vmatpush1.xpose.msra.mxu0 0.0
        %1633 = vmatprep.subr.mxu0 0.0
        %1634 = vmatpush1.xpose.msra.mxu0 0.0
        %1635 = vmatprep.subr.mxu0 0.0
        %1636 = vmatpush1.xpose.msra.mxu0 0.0
        %1637 = vmatprep.subr.mxu0 0.0
        %1638 = vmatpush1.xpose.msra.mxu0 0.0
        %1639 = vmatprep.subr.mxu0 0.0
        %1640 = vmatpush1.xpose.msra.mxu0 0.0
        %1641 = vmatprep.subr.mxu0 0.0
        %1642 = vmatpush1.xpose.msra.mxu0 0.0
        %1643 = vmatprep.mubr.f32.mxu0 0.0
        %1644 = vmatmul.mubr.f32.gmra.mrb[0].mxu0 %v1568
        %v1645 = vpop.f32.mrb[0].mxu0
        %v1646 = vadd.f32 %v1564, %v1645
        %v1647 = vpop.f32.mrb[0].mxu0
        %1648 = vmatprep.mubr.f32.mxu0 0.0
        %1649 = vmatmul.mubr.f32.gmra.mrb[0].mxu0 %v1571
        %v1650 = vpop.f32.mrb[0].mxu0
        %v1651 = vadd.f32 %v1565, %v1650
        %v1652 = vpop.f32.mrb[0].mxu0
        %1653 = vdwg.mxu0
        %vm1654 = vcmask 130048
        %v1655 = vsel %vm1654, %v1646, -inf
        %1656 = vmax.xlane.f32.xlu0 %v1655
        %v1657 = vpop.xlane.xlu0 %1656
        %v1658 = vsel %vm1654, %v1651, -inf
        %1659 = vmax.xlane.f32.xlu0 %v1658
        %v1660 = vpop.xlane.xlu0 %1659
        %v1661 = vsub.f32 %v1646, %v1657
        %v1662 = vsub.f32 %v1651, %v1660
        %v1663 = vmul.f32 %v1661, 1.442695
        %v1664 = vpow.pop %v1663
        %v1665 = vmul.f32 %v1662, 1.442695
        %v1666 = vpow.pop %v1665
        %v1667 = vsel %vm1654, %v1664, 0.0
        %1668 = vadd.xlane.f32.xlu0 %v1667
        %v1669 = vpop.xlane.xlu0 %1668
        %v1670 = vsel %vm1654, %v1666, 0.0
        %1671 = vadd.xlane.f32.xlu0 %v1670
        %v1672 = vpop.xlane.xlu0 %1671
        %v1673 = vrcp.pop %v1669
        %v1674 = vrcp.pop %v1672
        %v1676 = vsel %vm1654, %v1664, 0
        %v1679 = vsel %vm1654, %v1666, 0
        %1681 = vmatprep.subr.mxu0 0.0
        %1682 = vmatpush1.msra.mxu0 %v1558
        %1683 = vmatprep.subr.mxu0 0.0
        %1684 = vmatpush1.msra.mxu0 %v1561
        %1685 = vmatprep.subr.mxu0 0.0
        %1686 = vmatpush1.msra.mxu0 0.0
        %1687 = vmatprep.subr.mxu0 0.0
        %1688 = vmatpush1.msra.mxu0 0.0
        %1689 = vmatprep.subr.mxu0 0.0
        %1690 = vmatpush1.msra.mxu0 0.0
        %1691 = vmatprep.subr.mxu0 0.0
        %1692 = vmatpush1.msra.mxu0 0.0
        %1693 = vmatprep.subr.mxu0 0.0
        %1694 = vmatpush1.msra.mxu0 0.0
        %1695 = vmatprep.subr.mxu0 0.0
        %1696 = vmatpush1.msra.mxu0 0.0
        %1697 = vmatprep.subr.mxu0 0.0
        %1698 = vmatpush1.msra.mxu0 0.0
        %1699 = vmatprep.subr.mxu0 0.0
        %1700 = vmatpush1.msra.mxu0 0.0
        %1701 = vmatprep.subr.mxu0 0.0
        %1702 = vmatpush1.msra.mxu0 0.0
        %1703 = vmatprep.subr.mxu0 0.0
        %1704 = vmatpush1.msra.mxu0 0.0
        %1705 = vmatprep.subr.mxu0 0.0
        %1706 = vmatpush1.msra.mxu0 0.0
        %1707 = vmatprep.subr.mxu0 0.0
        %1708 = vmatpush1.msra.mxu0 0.0
        %1709 = vmatprep.subr.mxu0 0.0
        %1710 = vmatpush1.msra.mxu0 0.0
        %1711 = vmatprep.subr.mxu0 0.0
        %1712 = vmatpush1.msra.mxu0 0.0
        %1713 = vmatprep.subr.mxu0 0.0
        %1714 = vmatpush1.msra.mxu0 0.0
        %1715 = vmatprep.subr.mxu0 0.0
        %1716 = vmatpush1.msra.mxu0 0.0
        %1717 = vmatprep.subr.mxu0 0.0
        %1718 = vmatpush1.msra.mxu0 0.0
        %1719 = vmatprep.subr.mxu0 0.0
        %1720 = vmatpush1.msra.mxu0 0.0
        %1721 = vmatprep.subr.mxu0 0.0
        %1722 = vmatpush1.msra.mxu0 0.0
        %1723 = vmatprep.subr.mxu0 0.0
        %1724 = vmatpush1.msra.mxu0 0.0
        %1725 = vmatprep.subr.mxu0 0.0
        %1726 = vmatpush1.msra.mxu0 0.0
        %1727 = vmatprep.subr.mxu0 0.0
        %1728 = vmatpush1.msra.mxu0 0.0
        %1729 = vmatprep.subr.mxu0 0.0
        %1730 = vmatpush1.msra.mxu0 0.0
        %1731 = vmatprep.subr.mxu0 0.0
        %1732 = vmatpush1.msra.mxu0 0.0
        %1733 = vmatprep.subr.mxu0 0.0
        %1734 = vmatpush1.msra.mxu0 0.0
        %1735 = vmatprep.subr.mxu0 0.0
        %1736 = vmatpush1.msra.mxu0 0.0
        %1737 = vmatprep.subr.mxu0 0.0
        %1738 = vmatpush1.msra.mxu0 0.0
        %1739 = vmatprep.subr.mxu0 0.0
        %1740 = vmatpush1.msra.mxu0 0.0
        %1741 = vmatprep.subr.mxu0 0.0
        %1742 = vmatpush1.msra.mxu0 0.0
        %1743 = vmatprep.subr.mxu0 0.0
        %1744 = vmatpush1.msra.mxu0 0.0
        %1745 = vmatprep.mubr.f32.mxu0 0.0
        %1746 = vmatmul.mubr.f32.gmra.mrb[0].mxu0 %v1676
        %v1747 = vpop.f32.mrb[0].mxu0
        %v1748 = vadd.f32 0.0, %v1747
        %v1749 = vpop.f32.mrb[0].mxu0
        %1750 = vmatprep.mubr.f32.mxu0 0.0
        %1751 = vmatmul.mubr.f32.gmra.mrb[0].mxu0 %v1679
        %v1752 = vpop.f32.mrb[0].mxu0
        %v1753 = vadd.f32 0.0, %v1752
        %v1754 = vpop.f32.mrb[0].mxu0
        %1755 = vdwg.mxu0
        %v1756 = vmul.f32 %v1748, %v1673
        %v1757 = vmul.f32 %v1753, %v1674
        %1758 = vrot.lane.b32.xlu0 %v1430, 120
        %v1759 = vpop.permute.xlu0 %1758
        %1760 = vrot.lane.b32.xlu0 %v1433, 120
        %v1761 = vpop.permute.xlu0 %1760
        %1762 = vrot.lane.b32.xlu0 %v1494, 120
        %v1763 = vpop.permute.xlu0 %1762
        %1764 = vrot.lane.b32.xlu0 %v1497, 120
        %v1765 = vpop.permute.xlu0 %1764
        %v1766 = vsel %vm1566, %v1759, 0
        %v1768 = vsel %vm1566, %v1761, 0
        %v1770 = vsel %vm1566, %v1763, 0
        %v1772 = vsel %vm1566, %v1765, 0
        %1774 = vmatprep.subr.mxu0 0.0
        %1775 = vmatpush1.xpose.msra.mxu0 %v1770
        %1776 = vmatprep.subr.mxu0 0.0
        %1777 = vmatpush1.xpose.msra.mxu0 %v1772
        %1778 = vmatprep.subr.mxu0 0.0
        %1779 = vmatpush1.xpose.msra.mxu0 0.0
        %1780 = vmatprep.subr.mxu0 0.0
        %1781 = vmatpush1.xpose.msra.mxu0 0.0
        %1782 = vmatprep.subr.mxu0 0.0
        %1783 = vmatpush1.xpose.msra.mxu0 0.0
        %1784 = vmatprep.subr.mxu0 0.0
        %1785 = vmatpush1.xpose.msra.mxu0 0.0
        %1786 = vmatprep.subr.mxu0 0.0
        %1787 = vmatpush1.xpose.msra.mxu0 0.0
        %1788 = vmatprep.subr.mxu0 0.0
        %1789 = vmatpush1.xpose.msra.mxu0 0.0
        %1790 = vmatprep.subr.mxu0 0.0
        %1791 = vmatpush1.xpose.msra.mxu0 0.0
        %1792 = vmatprep.subr.mxu0 0.0
        %1793 = vmatpush1.xpose.msra.mxu0 0.0
        %1794 = vmatprep.subr.mxu0 0.0
        %1795 = vmatpush1.xpose.msra.mxu0 0.0
        %1796 = vmatprep.subr.mxu0 0.0
        %1797 = vmatpush1.xpose.msra.mxu0 0.0
        %1798 = vmatprep.subr.mxu0 0.0
        %1799 = vmatpush1.xpose.msra.mxu0 0.0
        %1800 = vmatprep.subr.mxu0 0.0
        %1801 = vmatpush1.xpose.msra.mxu0 0.0
        %1802 = vmatprep.subr.mxu0 0.0
        %1803 = vmatpush1.xpose.msra.mxu0 0.0
        %1804 = vmatprep.subr.mxu0 0.0
        %1805 = vmatpush1.xpose.msra.mxu0 0.0
        %1806 = vmatprep.subr.mxu0 0.0
        %1807 = vmatpush1.xpose.msra.mxu0 0.0
        %1808 = vmatprep.subr.mxu0 0.0
        %1809 = vmatpush1.xpose.msra.mxu0 0.0
        %1810 = vmatprep.subr.mxu0 0.0
        %1811 = vmatpush1.xpose.msra.mxu0 0.0
        %1812 = vmatprep.subr.mxu0 0.0
        %1813 = vmatpush1.xpose.msra.mxu0 0.0
        %1814 = vmatprep.subr.mxu0 0.0
        %1815 = vmatpush1.xpose.msra.mxu0 0.0
        %1816 = vmatprep.subr.mxu0 0.0
        %1817 = vmatpush1.xpose.msra.mxu0 0.0
        %1818 = vmatprep.subr.mxu0 0.0
        %1819 = vmatpush1.xpose.msra.mxu0 0.0
        %1820 = vmatprep.subr.mxu0 0.0
        %1821 = vmatpush1.xpose.msra.mxu0 0.0
        %1822 = vmatprep.subr.mxu0 0.0
        %1823 = vmatpush1.xpose.msra.mxu0 0.0
        %1824 = vmatprep.subr.mxu0 0.0
        %1825 = vmatpush1.xpose.msra.mxu0 0.0
        %1826 = vmatprep.subr.mxu0 0.0
        %1827 = vmatpush1.xpose.msra.mxu0 0.0
        %1828 = vmatprep.subr.mxu0 0.0
        %1829 = vmatpush1.xpose.msra.mxu0 0.0
        %1830 = vmatprep.subr.mxu0 0.0
        %1831 = vmatpush1.xpose.msra.mxu0 0.0
        %1832 = vmatprep.subr.mxu0 0.0
        %1833 = vmatpush1.xpose.msra.mxu0 0.0
        %1834 = vmatprep.subr.mxu0 0.0
        %1835 = vmatpush1.xpose.msra.mxu0 0.0
        %1836 = vmatprep.subr.mxu0 0.0
        %1837 = vmatpush1.xpose.msra.mxu0 0.0
        %1838 = vmatprep.mubr.f32.mxu0 0.0
        %1839 = vmatmul.mubr.f32.gmra.mrb[0].mxu0 %v1766
        %v1840 = vpop.f32.mrb[0].mxu0
        %v1841 = vadd.f32 %v1564, %v1840
        %v1842 = vpop.f32.mrb[0].mxu0
        %1843 = vmatprep.mubr.f32.mxu0 0.0
        %1844 = vmatmul.mubr.f32.gmra.mrb[0].mxu0 %v1768
        %v1845 = vpop.f32.mrb[0].mxu0
        %v1846 = vadd.f32 %v1565, %v1845
        %v1847 = vpop.f32.mrb[0].mxu0
        %1848 = vdwg.mxu0
        %v1849 = vsel %vm1654, %v1841, -inf
        %1850 = vmax.xlane.f32.xlu0 %v1849
        %v1851 = vpop.xlane.xlu0 %1850
        %v1852 = vsel %vm1654, %v1846, -inf
        %1853 = vmax.xlane.f32.xlu0 %v1852
        %v1854 = vpop.xlane.xlu0 %1853
        %v1855 = vsub.f32 %v1841, %v1851
        %v1856 = vsub.f32 %v1846, %v1854
        %v1857 = vmul.f32 %v1855, 1.442695
        %v1858 = vpow.pop %v1857
        %v1859 = vmul.f32 %v1856, 1.442695
        %v1860 = vpow.pop %v1859
        %v1861 = vsel %vm1654, %v1858, 0.0
        %1862 = vadd.xlane.f32.xlu0 %v1861
        %v1863 = vpop.xlane.xlu0 %1862
        %v1864 = vsel %vm1654, %v1860, 0.0
        %1865 = vadd.xlane.f32.xlu0 %v1864
        %v1866 = vpop.xlane.xlu0 %1865
        %v1867 = vrcp.pop %v1863
        %v1868 = vrcp.pop %v1866
        %1871 = vrot.lane.b32.xlu0 %v1558, 120
        %v1872 = vpop.permute.xlu0 %1871
        %1873 = vrot.lane.b32.xlu0 %v1561, 120
        %v1874 = vpop.permute.xlu0 %1873
        %v1878 = vsel %vm1654, %v1858, 0
        %v1881 = vsel %vm1654, %v1860, 0
        %1883 = vmatprep.subr.mxu0 0.0
        %1884 = vmatpush1.msra.mxu0 %v1872
        %1885 = vmatprep.subr.mxu0 0.0
        %1886 = vmatpush1.msra.mxu0 %v1874
        %1887 = vmatprep.subr.mxu0 0.0
        %1888 = vmatpush1.msra.mxu0 0.0
        %1889 = vmatprep.subr.mxu0 0.0
        %1890 = vmatpush1.msra.mxu0 0.0
        %1891 = vmatprep.subr.mxu0 0.0
        %1892 = vmatpush1.msra.mxu0 0.0
        %1893 = vmatprep.subr.mxu0 0.0
        %1894 = vmatpush1.msra.mxu0 0.0
        %1895 = vmatprep.subr.mxu0 0.0
        %1896 = vmatpush1.msra.mxu0 0.0
        %1897 = vmatprep.subr.mxu0 0.0
        %1898 = vmatpush1.msra.mxu0 0.0
        %1899 = vmatprep.subr.mxu0 0.0
        %1900 = vmatpush1.msra.mxu0 0.0
        %1901 = vmatprep.subr.mxu0 0.0
        %1902 = vmatpush1.msra.mxu0 0.0
        %1903 = vmatprep.subr.mxu0 0.0
        %1904 = vmatpush1.msra.mxu0 0.0
        %1905 = vmatprep.subr.mxu0 0.0
        %1906 = vmatpush1.msra.mxu0 0.0
        %1907 = vmatprep.subr.mxu0 0.0
        %1908 = vmatpush1.msra.mxu0 0.0
        %1909 = vmatprep.subr.mxu0 0.0
        %1910 = vmatpush1.msra.mxu0 0.0
        %1911 = vmatprep.subr.mxu0 0.0
        %1912 = vmatpush1.msra.mxu0 0.0
        %1913 = vmatprep.subr.mxu0 0.0
        %1914 = vmatpush1.msra.mxu0 0.0
        %1915 = vmatprep.subr.mxu0 0.0
        %1916 = vmatpush1.msra.mxu0 0.0
        %1917 = vmatprep.subr.mxu0 0.0
        %1918 = vmatpush1.msra.mxu0 0.0
        %1919 = vmatprep.subr.mxu0 0.0
        %1920 = vmatpush1.msra.mxu0 0.0
        %1921 = vmatprep.subr.mxu0 0.0
        %1922 = vmatpush1.msra.mxu0 0.0
        %1923 = vmatprep.subr.mxu0 0.0
        %1924 = vmatpush1.msra.mxu0 0.0
        %1925 = vmatprep.subr.mxu0 0.0
        %1926 = vmatpush1.msra.mxu0 0.0
        %1927 = vmatprep.subr.mxu0 0.0
        %1928 = vmatpush1.msra.mxu0 0.0
        %1929 = vmatprep.subr.mxu0 0.0
        %1930 = vmatpush1.msra.mxu0 0.0
        %1931 = vmatprep.subr.mxu0 0.0
        %1932 = vmatpush1.msra.mxu0 0.0
        %1933 = vmatprep.subr.mxu0 0.0
        %1934 = vmatpush1.msra.mxu0 0.0
        %1935 = vmatprep.subr.mxu0 0.0
        %1936 = vmatpush1.msra.mxu0 0.0
        %1937 = vmatprep.subr.mxu0 0.0
        %1938 = vmatpush1.msra.mxu0 0.0
        %1939 = vmatprep.subr.mxu0 0.0
        %1940 = vmatpush1.msra.mxu0 0.0
        %1941 = vmatprep.subr.mxu0 0.0
        %1942 = vmatpush1.msra.mxu0 0.0
        %1943 = vmatprep.subr.mxu0 0.0
        %1944 = vmatpush1.msra.mxu0 0.0
        %1945 = vmatprep.subr.mxu0 0.0
        %1946 = vmatpush1.msra.mxu0 0.0
        %1947 = vmatprep.mubr.f32.mxu0 0.0
        %1948 = vmatmul.mubr.f32.gmra.mrb[0].mxu0 %v1878
        %v1949 = vpop.f32.mrb[0].mxu0
        %v1950 = vadd.f32 0.0, %v1949
        %v1951 = vpop.f32.mrb[0].mxu0
        %1952 = vmatprep.mubr.f32.mxu0 0.0
        %1953 = vmatmul.mubr.f32.gmra.mrb[0].mxu0 %v1881
        %v1954 = vpop.f32.mrb[0].mxu0
        %v1955 = vadd.f32 0.0, %v1954
        %v1956 = vpop.f32.mrb[0].mxu0
        %1957 = vdwg.mxu0
        %v1958 = vmul.f32 %v1950, %v1867
        %v1959 = vmul.f32 %v1955, %v1868
        %1960 = vrot.lane.b32.xlu0 %v1430, 112
        %v1961 = vpop.permute.xlu0 %1960
        %1962 = vrot.lane.b32.xlu0 %v1433, 112
        %v1963 = vpop.permute.xlu0 %1962
        %1964 = vrot.lane.b32.xlu0 %v1494, 112
        %v1965 = vpop.permute.xlu0 %1964
        %1966 = vrot.lane.b32.xlu0 %v1497, 112
        %v1967 = vpop.permute.xlu0 %1966
        %v1968 = vsel %vm1566, %v1961, 0
        %v1970 = vsel %vm1566, %v1963, 0
        %v1972 = vsel %vm1566, %v1965, 0
        %v1974 = vsel %vm1566, %v1967, 0
        %1976 = vmatprep.subr.mxu0 0.0
        %1977 = vmatpush1.xpose.msra.mxu0 %v1972
        %1978 = vmatprep.subr.mxu0 0.0
        %1979 = vmatpush1.xpose.msra.mxu0 %v1974
        %1980 = vmatprep.subr.mxu0 0.0
        %1981 = vmatpush1.xpose.msra.mxu0 0.0
        %1982 = vmatprep.subr.mxu0 0.0
        %1983 = vmatpush1.xpose.msra.mxu0 0.0
        %1984 = vmatprep.subr.mxu0 0.0
        %1985 = vmatpush1.xpose.msra.mxu0 0.0
        %1986 = vmatprep.subr.mxu0 0.0
        %1987 = vmatpush1.xpose.msra.mxu0 0.0
        %1988 = vmatprep.subr.mxu0 0.0
        %1989 = vmatpush1.xpose.msra.mxu0 0.0
        %1990 = vmatprep.subr.mxu0 0.0
        %1991 = vmatpush1.xpose.msra.mxu0 0.0
        %1992 = vmatprep.subr.mxu0 0.0
        %1993 = vmatpush1.xpose.msra.mxu0 0.0
        %1994 = vmatprep.subr.mxu0 0.0
        %1995 = vmatpush1.xpose.msra.mxu0 0.0
        %1996 = vmatprep.subr.mxu0 0.0
        %1997 = vmatpush1.xpose.msra.mxu0 0.0
        %1998 = vmatprep.subr.mxu0 0.0
        %1999 = vmatpush1.xpose.msra.mxu0 0.0
        %2000 = vmatprep.subr.mxu0 0.0
        %2001 = vmatpush1.xpose.msra.mxu0 0.0
        %2002 = vmatprep.subr.mxu0 0.0
        %2003 = vmatpush1.xpose.msra.mxu0 0.0
        %2004 = vmatprep.subr.mxu0 0.0
        %2005 = vmatpush1.xpose.msra.mxu0 0.0
        %2006 = vmatprep.subr.mxu0 0.0
        %2007 = vmatpush1.xpose.msra.mxu0 0.0
        %2008 = vmatprep.subr.mxu0 0.0
        %2009 = vmatpush1.xpose.msra.mxu0 0.0
        %2010 = vmatprep.subr.mxu0 0.0
        %2011 = vmatpush1.xpose.msra.mxu0 0.0
        %2012 = vmatprep.subr.mxu0 0.0
        %2013 = vmatpush1.xpose.msra.mxu0 0.0
        %2014 = vmatprep.subr.mxu0 0.0
        %2015 = vmatpush1.xpose.msra.mxu0 0.0
        %2016 = vmatprep.subr.mxu0 0.0
        %2017 = vmatpush1.xpose.msra.mxu0 0.0
        %2018 = vmatprep.subr.mxu0 0.0
        %2019 = vmatpush1.xpose.msra.mxu0 0.0
        %2020 = vmatprep.subr.mxu0 0.0
        %2021 = vmatpush1.xpose.msra.mxu0 0.0
        %2022 = vmatprep.subr.mxu0 0.0
        %2023 = vmatpush1.xpose.msra.mxu0 0.0
        %2024 = vmatprep.subr.mxu0 0.0
        %2025 = vmatpush1.xpose.msra.mxu0 0.0
        %2026 = vmatprep.subr.mxu0 0.0
        %2027 = vmatpush1.xpose.msra.mxu0 0.0
        %2028 = vmatprep.subr.mxu0 0.0
        %2029 = vmatpush1.xpose.msra.mxu0 0.0
        %2030 = vmatprep.subr.mxu0 0.0
        %2031 = vmatpush1.xpose.msra.mxu0 0.0
        %2032 = vmatprep.subr.mxu0 0.0
        %2033 = vmatpush1.xpose.msra.mxu0 0.0
        %2034 = vmatprep.subr.mxu0 0.0
        %2035 = vmatpush1.xpose.msra.mxu0 0.0
        %2036 = vmatprep.subr.mxu0 0.0
        %2037 = vmatpush1.xpose.msra.mxu0 0.0
        %2038 = vmatprep.subr.mxu0 0.0
        %2039 = vmatpush1.xpose.msra.mxu0 0.0
        %2040 = vmatprep.mubr.f32.mxu0 0.0
        %2041 = vmatmul.mubr.f32.gmra.mrb[0].mxu0 %v1968
        %v2042 = vpop.f32.mrb[0].mxu0
        %v2043 = vadd.f32 %v1564, %v2042
        %v2044 = vpop.f32.mrb[0].mxu0
        %2045 = vmatprep.mubr.f32.mxu0 0.0
        %2046 = vmatmul.mubr.f32.gmra.mrb[0].mxu0 %v1970
        %v2047 = vpop.f32.mrb[0].mxu0
        %v2048 = vadd.f32 %v1565, %v2047
        %v2049 = vpop.f32.mrb[0].mxu0
        %2050 = vdwg.mxu0
        %v2051 = vsel %vm1654, %v2043, -inf
        %2052 = vmax.xlane.f32.xlu0 %v2051
        %v2053 = vpop.xlane.xlu0 %2052
        %v2054 = vsel %vm1654, %v2048, -inf
        %2055 = vmax.xlane.f32.xlu0 %v2054
        %v2056 = vpop.xlane.xlu0 %2055
        %v2057 = vsub.f32 %v2043, %v2053
        %v2058 = vsub.f32 %v2048, %v2056
        %v2059 = vmul.f32 %v2057, 1.442695
        %v2060 = vpow.pop %v2059
        %v2061 = vmul.f32 %v2058, 1.442695
        %v2062 = vpow.pop %v2061
        %v2063 = vsel %vm1654, %v2060, 0.0
        %2064 = vadd.xlane.f32.xlu0 %v2063
        %v2065 = vpop.xlane.xlu0 %2064
        %v2066 = vsel %vm1654, %v2062, 0.0
        %2067 = vadd.xlane.f32.xlu0 %v2066
        %v2068 = vpop.xlane.xlu0 %2067
        %v2069 = vrcp.pop %v2065
        %v2070 = vrcp.pop %v2068
        %2071 = vrot.lane.b32.xlu0 %v1558, 112
        %v2072 = vpop.permute.xlu0 %2071
        %2073 = vrot.lane.b32.xlu0 %v1561, 112
        %v2074 = vpop.permute.xlu0 %2073
        %v2078 = vsel %vm1654, %v2060, 0
        %v2081 = vsel %vm1654, %v2062, 0
        %2083 = vmatprep.subr.mxu0 0.0
        %2084 = vmatpush1.msra.mxu0 %v2072
        %2085 = vmatprep.subr.mxu0 0.0
        %2086 = vmatpush1.msra.mxu0 %v2074
        %2087 = vmatprep.subr.mxu0 0.0
        %2088 = vmatpush1.msra.mxu0 0.0
        %2089 = vmatprep.subr.mxu0 0.0
        %2090 = vmatpush1.msra.mxu0 0.0
        %2091 = vmatprep.subr.mxu0 0.0
        %2092 = vmatpush1.msra.mxu0 0.0
        %2093 = vmatprep.subr.mxu0 0.0
        %2094 = vmatpush1.msra.mxu0 0.0
        %2095 = vmatprep.subr.mxu0 0.0
        %2096 = vmatpush1.msra.mxu0 0.0
        %2097 = vmatprep.subr.mxu0 0.0
        %2098 = vmatpush1.msra.mxu0 0.0
        %2099 = vmatprep.subr.mxu0 0.0
        %2100 = vmatpush1.msra.mxu0 0.0
        %2101 = vmatprep.subr.mxu0 0.0
        %2102 = vmatpush1.msra.mxu0 0.0
        %2103 = vmatprep.subr.mxu0 0.0
        %2104 = vmatpush1.msra.mxu0 0.0
        %2105 = vmatprep.subr.mxu0 0.0
        %2106 = vmatpush1.msra.mxu0 0.0
        %2107 = vmatprep.subr.mxu0 0.0
        %2108 = vmatpush1.msra.mxu0 0.0
        %2109 = vmatprep.subr.mxu0 0.0
        %2110 = vmatpush1.msra.mxu0 0.0
        %2111 = vmatprep.subr.mxu0 0.0
        %2112 = vmatpush1.msra.mxu0 0.0
        %2113 = vmatprep.subr.mxu0 0.0
        %2114 = vmatpush1.msra.mxu0 0.0
        %2115 = vmatprep.subr.mxu0 0.0
        %2116 = vmatpush1.msra.mxu0 0.0
        %2117 = vmatprep.subr.mxu0 0.0
        %2118 = vmatpush1.msra.mxu0 0.0
        %2119 = vmatprep.subr.mxu0 0.0
        %2120 = vmatpush1.msra.mxu0 0.0
        %2121 = vmatprep.subr.mxu0 0.0
        %2122 = vmatpush1.msra.mxu0 0.0
        %2123 = vmatprep.subr.mxu0 0.0
        %2124 = vmatpush1.msra.mxu0 0.0
        %2125 = vmatprep.subr.mxu0 0.0
        %2126 = vmatpush1.msra.mxu0 0.0
        %2127 = vmatprep.subr.mxu0 0.0
        %2128 = vmatpush1.msra.mxu0 0.0
        %2129 = vmatprep.subr.mxu0 0.0
        %2130 = vmatpush1.msra.mxu0 0.0
        %2131 = vmatprep.subr.mxu0 0.0
        %2132 = vmatpush1.msra.mxu0 0.0
        %2133 = vmatprep.subr.mxu0 0.0
        %2134 = vmatpush1.msra.mxu0 0.0
        %2135 = vmatprep.subr.mxu0 0.0
        %2136 = vmatpush1.msra.mxu0 0.0
        %2137 = vmatprep.subr.mxu0 0.0
        %2138 = vmatpush1.msra.mxu0 0.0
        %2139 = vmatprep.subr.mxu0 0.0
        %2140 = vmatpush1.msra.mxu0 0.0
        %2141 = vmatprep.subr.mxu0 0.0
        %2142 = vmatpush1.msra.mxu0 0.0
        %2143 = vmatprep.subr.mxu0 0.0
        %2144 = vmatpush1.msra.mxu0 0.0
        %2145 = vmatprep.subr.mxu0 0.0
        %2146 = vmatpush1.msra.mxu0 0.0
        %2147 = vmatprep.mubr.f32.mxu0 0.0
        %2148 = vmatmul.mubr.f32.gmra.mrb[0].mxu0 %v2078
        %v2149 = vpop.f32.mrb[0].mxu0
        %v2150 = vadd.f32 0.0, %v2149
        %v2151 = vpop.f32.mrb[0].mxu0
        %2152 = vmatprep.mubr.f32.mxu0 0.0
        %2153 = vmatmul.mubr.f32.gmra.mrb[0].mxu0 %v2081
        %v2154 = vpop.f32.mrb[0].mxu0
        %v2155 = vadd.f32 0.0, %v2154
        %v2156 = vpop.f32.mrb[0].mxu0
        %2157 = vdwg.mxu0
        %v2158 = vmul.f32 %v2150, %v2069
        %v2159 = vmul.f32 %v2155, %v2070
        %2160 = vrot.lane.b32.xlu0 %v1430, 104
        %v2161 = vpop.permute.xlu0 %2160
        %2162 = vrot.lane.b32.xlu0 %v1433, 104
        %v2163 = vpop.permute.xlu0 %2162
        %2164 = vrot.lane.b32.xlu0 %v1494, 104
        %v2165 = vpop.permute.xlu0 %2164
        %2166 = vrot.lane.b32.xlu0 %v1497, 104
        %v2167 = vpop.permute.xlu0 %2166
        %v2168 = vsel %vm1566, %v2161, 0
        %v2170 = vsel %vm1566, %v2163, 0
        %v2172 = vsel %vm1566, %v2165, 0
        %v2174 = vsel %vm1566, %v2167, 0
        %2176 = vmatprep.subr.mxu0 0.0
        %2177 = vmatpush1.xpose.msra.mxu0 %v2172
        %2178 = vmatprep.subr.mxu0 0.0
        %2179 = vmatpush1.xpose.msra.mxu0 %v2174
        %2180 = vmatprep.subr.mxu0 0.0
        %2181 = vmatpush1.xpose.msra.mxu0 0.0
        %2182 = vmatprep.subr.mxu0 0.0
        %2183 = vmatpush1.xpose.msra.mxu0 0.0
        %2184 = vmatprep.subr.mxu0 0.0
        %2185 = vmatpush1.xpose.msra.mxu0 0.0
        %2186 = vmatprep.subr.mxu0 0.0
        %2187 = vmatpush1.xpose.msra.mxu0 0.0
        %2188 = vmatprep.subr.mxu0 0.0
        %2189 = vmatpush1.xpose.msra.mxu0 0.0
        %2190 = vmatprep.subr.mxu0 0.0
        %2191 = vmatpush1.xpose.msra.mxu0 0.0
        %2192 = vmatprep.subr.mxu0 0.0
        %2193 = vmatpush1.xpose.msra.mxu0 0.0
        %2194 = vmatprep.subr.mxu0 0.0
        %2195 = vmatpush1.xpose.msra.mxu0 0.0
        %2196 = vmatprep.subr.mxu0 0.0
        %2197 = vmatpush1.xpose.msra.mxu0 0.0
        %2198 = vmatprep.subr.mxu0 0.0
        %2199 = vmatpush1.xpose.msra.mxu0 0.0
        %2200 = vmatprep.subr.mxu0 0.0
        %2201 = vmatpush1.xpose.msra.mxu0 0.0
        %2202 = vmatprep.subr.mxu0 0.0
        %2203 = vmatpush1.xpose.msra.mxu0 0.0
        %2204 = vmatprep.subr.mxu0 0.0
        %2205 = vmatpush1.xpose.msra.mxu0 0.0
        %2206 = vmatprep.subr.mxu0 0.0
        %2207 = vmatpush1.xpose.msra.mxu0 0.0
        %2208 = vmatprep.subr.mxu0 0.0
        %2209 = vmatpush1.xpose.msra.mxu0 0.0
        %2210 = vmatprep.subr.mxu0 0.0
        %2211 = vmatpush1.xpose.msra.mxu0 0.0
        %2212 = vmatprep.subr.mxu0 0.0
        %2213 = vmatpush1.xpose.msra.mxu0 0.0
        %2214 = vmatprep.subr.mxu0 0.0
        %2215 = vmatpush1.xpose.msra.mxu0 0.0
        %2216 = vmatprep.subr.mxu0 0.0
        %2217 = vmatpush1.xpose.msra.mxu0 0.0
        %2218 = vmatprep.subr.mxu0 0.0
        %2219 = vmatpush1.xpose.msra.mxu0 0.0
        %2220 = vmatprep.subr.mxu0 0.0
        %2221 = vmatpush1.xpose.msra.mxu0 0.0
        %2222 = vmatprep.subr.mxu0 0.0
        %2223 = vmatpush1.xpose.msra.mxu0 0.0
        %2224 = vmatprep.subr.mxu0 0.0
        %2225 = vmatpush1.xpose.msra.mxu0 0.0
        %2226 = vmatprep.subr.mxu0 0.0
        %2227 = vmatpush1.xpose.msra.mxu0 0.0
        %2228 = vmatprep.subr.mxu0 0.0
        %2229 = vmatpush1.xpose.msra.mxu0 0.0
        %2230 = vmatprep.subr.mxu0 0.0
        %2231 = vmatpush1.xpose.msra.mxu0 0.0
        %2232 = vmatprep.subr.mxu0 0.0
        %2233 = vmatpush1.xpose.msra.mxu0 0.0
        %2234 = vmatprep.subr.mxu0 0.0
        %2235 = vmatpush1.xpose.msra.mxu0 0.0
        %2236 = vmatprep.subr.mxu0 0.0
        %2237 = vmatpush1.xpose.msra.mxu0 0.0
        %2238 = vmatprep.subr.mxu0 0.0
        %2239 = vmatpush1.xpose.msra.mxu0 0.0
        %2240 = vmatprep.mubr.f32.mxu0 0.0
        %2241 = vmatmul.mubr.f32.gmra.mrb[0].mxu0 %v2168
        %v2242 = vpop.f32.mrb[0].mxu0
        %v2243 = vadd.f32 %v1564, %v2242
        %v2244 = vpop.f32.mrb[0].mxu0
        %2245 = vmatprep.mubr.f32.mxu0 0.0
        %2246 = vmatmul.mubr.f32.gmra.mrb[0].mxu0 %v2170
        %v2247 = vpop.f32.mrb[0].mxu0
        %v2248 = vadd.f32 %v1565, %v2247
        %v2249 = vpop.f32.mrb[0].mxu0
        %2250 = vdwg.mxu0
        %v2251 = vsel %vm1654, %v2243, -inf
        %2252 = vmax.xlane.f32.xlu0 %v2251
        %v2253 = vpop.xlane.xlu0 %2252
        %v2254 = vsel %vm1654, %v2248, -inf
        %2255 = vmax.xlane.f32.xlu0 %v2254
        %v2256 = vpop.xlane.xlu0 %2255
        %v2257 = vsub.f32 %v2243, %v2253
        %v2258 = vsub.f32 %v2248, %v2256
        %v2259 = vmul.f32 %v2257, 1.442695
        %v2260 = vpow.pop %v2259
        %v2261 = vmul.f32 %v2258, 1.442695
        %v2262 = vpow.pop %v2261
        %v2263 = vsel %vm1654, %v2260, 0.0
        %2264 = vadd.xlane.f32.xlu0 %v2263
        %v2265 = vpop.xlane.xlu0 %2264
        %v2266 = vsel %vm1654, %v2262, 0.0
        %2267 = vadd.xlane.f32.xlu0 %v2266
        %v2268 = vpop.xlane.xlu0 %2267
        %v2269 = vrcp.pop %v2265
        %v2270 = vrcp.pop %v2268
        %2271 = vrot.lane.b32.xlu0 %v1558, 104
        %v2272 = vpop.permute.xlu0 %2271
        %2273 = vrot.lane.b32.xlu0 %v1561, 104
        %v2274 = vpop.permute.xlu0 %2273
        %v2278 = vsel %vm1654, %v2260, 0
        %v2281 = vsel %vm1654, %v2262, 0
        %2283 = vmatprep.subr.mxu0 0.0
        %2284 = vmatpush1.msra.mxu0 %v2272
        %2285 = vmatprep.subr.mxu0 0.0
        %2286 = vmatpush1.msra.mxu0 %v2274
        %2287 = vmatprep.subr.mxu0 0.0
        %2288 = vmatpush1.msra.mxu0 0.0
        %2289 = vmatprep.subr.mxu0 0.0
        %2290 = vmatpush1.msra.mxu0 0.0
        %2291 = vmatprep.subr.mxu0 0.0
        %2292 = vmatpush1.msra.mxu0 0.0
        %2293 = vmatprep.subr.mxu0 0.0
        %2294 = vmatpush1.msra.mxu0 0.0
        %2295 = vmatprep.subr.mxu0 0.0
        %2296 = vmatpush1.msra.mxu0 0.0
        %2297 = vmatprep.subr.mxu0 0.0
        %2298 = vmatpush1.msra.mxu0 0.0
        %2299 = vmatprep.subr.mxu0 0.0
        %2300 = vmatpush1.msra.mxu0 0.0
        %2301 = vmatprep.subr.mxu0 0.0
        %2302 = vmatpush1.msra.mxu0 0.0
        %2303 = vmatprep.subr.mxu0 0.0
        %2304 = vmatpush1.msra.mxu0 0.0
        %2305 = vmatprep.subr.mxu0 0.0
        %2306 = vmatpush1.msra.mxu0 0.0
        %2307 = vmatprep.subr.mxu0 0.0
        %2308 = vmatpush1.msra.mxu0 0.0
        %2309 = vmatprep.subr.mxu0 0.0
        %2310 = vmatpush1.msra.mxu0 0.0
        %2311 = vmatprep.subr.mxu0 0.0
        %2312 = vmatpush1.msra.mxu0 0.0
        %2313 = vmatprep.subr.mxu0 0.0
        %2314 = vmatpush1.msra.mxu0 0.0
        %2315 = vmatprep.subr.mxu0 0.0
        %2316 = vmatpush1.msra.mxu0 0.0
        %2317 = vmatprep.subr.mxu0 0.0
        %2318 = vmatpush1.msra.mxu0 0.0
        %2319 = vmatprep.subr.mxu0 0.0
        %2320 = vmatpush1.msra.mxu0 0.0
        %2321 = vmatprep.subr.mxu0 0.0
        %2322 = vmatpush1.msra.mxu0 0.0
        %2323 = vmatprep.subr.mxu0 0.0
        %2324 = vmatpush1.msra.mxu0 0.0
        %2325 = vmatprep.subr.mxu0 0.0
        %2326 = vmatpush1.msra.mxu0 0.0
        %2327 = vmatprep.subr.mxu0 0.0
        %2328 = vmatpush1.msra.mxu0 0.0
        %2329 = vmatprep.subr.mxu0 0.0
        %2330 = vmatpush1.msra.mxu0 0.0
        %2331 = vmatprep.subr.mxu0 0.0
        %2332 = vmatpush1.msra.mxu0 0.0
        %2333 = vmatprep.subr.mxu0 0.0
        %2334 = vmatpush1.msra.mxu0 0.0
        %2335 = vmatprep.subr.mxu0 0.0
        %2336 = vmatpush1.msra.mxu0 0.0
        %2337 = vmatprep.subr.mxu0 0.0
        %2338 = vmatpush1.msra.mxu0 0.0
        %2339 = vmatprep.subr.mxu0 0.0
        %2340 = vmatpush1.msra.mxu0 0.0
        %2341 = vmatprep.subr.mxu0 0.0
        %2342 = vmatpush1.msra.mxu0 0.0
        %2343 = vmatprep.subr.mxu0 0.0
        %2344 = vmatpush1.msra.mxu0 0.0
        %2345 = vmatprep.subr.mxu0 0.0
        %2346 = vmatpush1.msra.mxu0 0.0
        %2347 = vmatprep.mubr.f32.mxu0 0.0
        %2348 = vmatmul.mubr.f32.gmra.mrb[0].mxu0 %v2278
        %v2349 = vpop.f32.mrb[0].mxu0
        %v2350 = vadd.f32 0.0, %v2349
        %v2351 = vpop.f32.mrb[0].mxu0
        %2352 = vmatprep.mubr.f32.mxu0 0.0
        %2353 = vmatmul.mubr.f32.gmra.mrb[0].mxu0 %v2281
        %v2354 = vpop.f32.mrb[0].mxu0
        %v2355 = vadd.f32 0.0, %v2354
        %v2356 = vpop.f32.mrb[0].mxu0
        %2357 = vdwg.mxu0
        %v2358 = vmul.f32 %v2350, %v2269
        %v2359 = vmul.f32 %v2355, %v2270
        %2362 = vrot.lane.b32.xlu0 %v1958, 8
        %v2363 = vpop.permute.xlu0 %2362
        %2364 = vrot.lane.b32.xlu0 %v1959, 8
        %v2365 = vpop.permute.xlu0 %2364
        %2370 = vrot.lane.b32.xlu0 %v2158, 16
        %v2371 = vpop.permute.xlu0 %2370
        %2372 = vrot.lane.b32.xlu0 %v2159, 16
        %v2373 = vpop.permute.xlu0 %2372
        %2378 = vrot.lane.b32.xlu0 %v2358, 24
        %v2379 = vpop.permute.xlu0 %2378
        %2380 = vrot.lane.b32.xlu0 %v2359, 24
        %v2381 = vpop.permute.xlu0 %2380
        %v2384 = vsel %vm1566, %v1756, %v2363
        %v2385 = vsel %vm1566, %v1757, %v2365
        %v2386 = vsel %vm1654, %v2384, %v2371
        %v2387 = vsel %vm1654, %v2385, %v2373
        %vm2388 = vcmask 195584
        %v2389 = vsel %vm2388, %v2386, %v2379
        %v2390 = vsel %vm2388, %v2387, %v2381
        %v2391 = vpack.c.bf16 %v2390, %v2389
        %v2392 = vld [vmem:[%s1045] sm:$0xf]
        %v2393 = vld [vmem:[%s1045 + $0x4] sm:$0xf]
        %v2394 = vld [vmem:[%s1045 + $0x8] sm:$0xf]
        %v2395 = vld [vmem:[%s1045 + $0xc] sm:$0xf]
        %v2400 = vunpack.c.l.b16 %v2392
        %v2401 = vunpack.c.l.b16 %v2393
        %v2402 = vunpack.c.l.b16 %v2394
        %v2403 = vunpack.c.l.b16 %v2395
        %v2404 = vpack.c.b16 %v2401, %v2400
        %v2405 = vpack.c.b16 %v2403, %v2402
        %v2409 = vsel %vm1324, %v2391, 0
        %2411 = vmatprep.subr.bf16.mxu0 0
        %2412 = vmatpush1.bf16.msra.mxu0 %v2404
        %2413 = vmatprep.subr.bf16.mxu0 0
        %2414 = vmatpush1.bf16.msra.mxu0 %v2405
        %2415 = vmatprep.subr.bf16.mxu0 0
        %2416 = vmatpush1.bf16.msra.mxu0 0
        %2417 = vmatprep.subr.bf16.mxu0 0
        %2418 = vmatpush1.bf16.msra.mxu0 0
        %2419 = vmatprep.subr.bf16.mxu0 0
        %2420 = vmatpush1.bf16.msra.mxu0 0
        %2421 = vmatprep.subr.bf16.mxu0 0
        %2422 = vmatpush1.bf16.msra.mxu0 0
        %2423 = vmatprep.subr.bf16.mxu0 0
        %2424 = vmatpush1.bf16.msra.mxu0 0
        %2425 = vmatprep.subr.bf16.mxu0 0
        %2426 = vmatpush1.bf16.msra.mxu0 0
        %2427 = vmatprep.subr.bf16.mxu0 0
        %2428 = vmatpush1.bf16.msra.mxu0 0
        %2429 = vmatprep.subr.bf16.mxu0 0
        %2430 = vmatpush1.bf16.msra.mxu0 0
        %2431 = vmatprep.subr.bf16.mxu0 0
        %2432 = vmatpush1.bf16.msra.mxu0 0
        %2433 = vmatprep.subr.bf16.mxu0 0
        %2434 = vmatpush1.bf16.msra.mxu0 0
        %2435 = vmatprep.subr.bf16.mxu0 0
        %2436 = vmatpush1.bf16.msra.mxu0 0
        %2437 = vmatprep.subr.bf16.mxu0 0
        %2438 = vmatpush1.bf16.msra.mxu0 0
        %2439 = vmatprep.subr.bf16.mxu0 0
        %2440 = vmatpush1.bf16.msra.mxu0 0
        %2441 = vmatprep.subr.bf16.mxu0 0
        %2442 = vmatpush1.bf16.msra.mxu0 0
        %2443 = vmatprep.mubr.bf16.mxu0 0
        %2444 = vmatmul.mubr.bf16.gmra.mrb[0].mxu0 %v2409
        %v2445 = vpop.f32.mrb[0].mxu0
        %v2446 = vadd.f32 0.0, %v2445
        %v2447 = vpop.f32.mrb[0].mxu0
        %v2448 = vpop.f32.mrb[0].mxu0
        %v2449 = vadd.f32 0.0, %v2448
        %v2450 = vpop.f32.mrb[0].mxu0
        %2451 = vdwg.mxu0
        %v2452 = vadd.f32 %v1320, %v2446
        %v2453 = vadd.f32 %v1321, %v2449
        %v2454 = vld [vmem:[%s1048] sm:$0x1]
        %v2456 = vlaneseq
        %v2457 = vshrl.u32 %v2456, 7
        %v2458 = vsub.s32 0, %v2457
        %v2459 = vrot.slane %v2454, %v2458
        %v2461 = vadd.f32 %v2452, %v2459
        %v2462 = vadd.f32 %v2453, %v2459
        %v2463 = vld [vmem:[%s1051] sm:$0x1]
        %v2464 = vld [vmem:[%s1054] sm:$0x1]
        %v2465 = vsel %vm1324, %v2461, 0.0
        %2466 = vadd.xlane.f32.xlu0 %v2465
        %v2467 = vpop.xlane.xlu0 %2466
        %v2468 = vsel %vm1324, %v2462, 0.0
        %2469 = vadd.xlane.f32.xlu0 %v2468
        %v2470 = vpop.xlane.xlu0 %2469
        %v2471 = vmul.f32 %v2467, %v1331
        %v2472 = vmul.f32 %v2470, %v1331
        %v2473 = vsub.f32 %v2461, %v2471
        %v2474 = vsub.f32 %v2462, %v2472
        %v2475 = vmul.f32 %v2473, %v2473
        %v2476 = vmul.f32 %v2474, %v2474
        %v2477 = vsel %vm1324, %v2475, 0.0
        %2478 = vadd.xlane.f32.xlu0 %v2477
        %v2479 = vpop.xlane.xlu0 %2478
        %v2480 = vsel %vm1324, %v2476, 0.0
        %2481 = vadd.xlane.f32.xlu0 %v2480
        %v2482 = vpop.xlane.xlu0 %2481
        %v2483 = vmul.f32 %v2479, %v1331
        %v2484 = vmul.f32 %v2482, %v1331
        %v2485 = vadd.f32 %v2483, 1e-06
        %v2486 = vadd.f32 %v2484, 1e-06
        %v2487 = vrsqrt.pop %v2485
        %v2488 = vrsqrt.pop %v2486
        %v2489 = vmul.f32 %v2473, %v2487
        %v2490 = vmul.f32 %v2474, %v2488
        %v2492 = vlaneseq
        %v2493 = vshrl.u32 %v2492, 7
        %v2494 = vsub.s32 0, %v2493
        %v2495 = vrot.slane %v2463, %v2494
        %v2497 = vmul.f32 %v2489, %v2495
        %v2498 = vmul.f32 %v2490, %v2495
        %v2500 = vlaneseq
        %v2501 = vshrl.u32 %v2500, 7
        %v2502 = vsub.s32 0, %v2501
        %v2503 = vrot.slane %v2464, %v2502
        %v2505 = vadd.f32 %v2497, %v2503
        %v2506 = vadd.f32 %v2498, %v2503
        %v2507 = vpack.c.bf16 %v2506, %v2505
        %v2508 = vld [vmem:[%s1059] sm:$0xf]
        %v2509 = vld [vmem:[%s1059 + $0x4] sm:$0xf]
        %v2510 = vld [vmem:[%s1059 + $0x8] sm:$0xf]
        %v2511 = vld [vmem:[%s1059 + $0xc] sm:$0xf]
        %v2512 = vld [vmem:[%s1062] sm:$0x1]
        %v2514 = vlaneseq
        %v2515 = vshrl.u32 %v2514, 7
        %v2516 = vsub.s32 0, %v2515
        %v2517 = vrot.slane %v2512, %v2516
        %v2523 = vunpack.c.l.b16 %v2508
        %v2524 = vunpack.c.l.b16 %v2509
        %v2525 = vunpack.c.l.b16 %v2510
        %v2526 = vunpack.c.l.b16 %v2511
        %v2527 = vpack.c.b16 %v2524, %v2523
        %v2528 = vpack.c.b16 %v2526, %v2525
        %v2532 = vsel %vm1324, %v2507, 0
        %2534 = vmatprep.subr.bf16.mxu0 0
        %2535 = vmatpush1.bf16.msra.mxu0 %v2527
        %2536 = vmatprep.subr.bf16.mxu0 0
        %2537 = vmatpush1.bf16.msra.mxu0 %v2528
        %2538 = vmatprep.subr.bf16.mxu0 0
        %2539 = vmatpush1.bf16.msra.mxu0 0
        %2540 = vmatprep.subr.bf16.mxu0 0
        %2541 = vmatpush1.bf16.msra.mxu0 0
        %2542 = vmatprep.subr.bf16.mxu0 0
        %2543 = vmatpush1.bf16.msra.mxu0 0
        %2544 = vmatprep.subr.bf16.mxu0 0
        %2545 = vmatpush1.bf16.msra.mxu0 0
        %2546 = vmatprep.subr.bf16.mxu0 0
        %2547 = vmatpush1.bf16.msra.mxu0 0
        %2548 = vmatprep.subr.bf16.mxu0 0
        %2549 = vmatpush1.bf16.msra.mxu0 0
        %2550 = vmatprep.subr.bf16.mxu0 0
        %2551 = vmatpush1.bf16.msra.mxu0 0
        %2552 = vmatprep.subr.bf16.mxu0 0
        %2553 = vmatpush1.bf16.msra.mxu0 0
        %2554 = vmatprep.subr.bf16.mxu0 0
        %2555 = vmatpush1.bf16.msra.mxu0 0
        %2556 = vmatprep.subr.bf16.mxu0 0
        %2557 = vmatpush1.bf16.msra.mxu0 0
        %2558 = vmatprep.subr.bf16.mxu0 0
        %2559 = vmatpush1.bf16.msra.mxu0 0
        %2560 = vmatprep.subr.bf16.mxu0 0
        %2561 = vmatpush1.bf16.msra.mxu0 0
        %2562 = vmatprep.subr.bf16.mxu0 0
        %2563 = vmatpush1.bf16.msra.mxu0 0
        %2564 = vmatprep.subr.bf16.mxu0 0
        %2565 = vmatpush1.bf16.msra.mxu0 0
        %2566 = vmatprep.mubr.bf16.mxu0 0
        %2567 = vmatmul.mubr.bf16.gmra.mrb[0].mxu0 %v2532
        %v2568 = vpop.f32.mrb[0].mxu0
        %v2569 = vadd.f32 %v2517, %v2568
        %v2570 = vpop.f32.mrb[0].mxu0
        %v2571 = vpop.f32.mrb[0].mxu0
        %v2572 = vadd.f32 %v2517, %v2571
        %v2573 = vpop.f32.mrb[0].mxu0
        %2574 = vdwg.mxu0
        %v2575 = vld [vmem:[%s1067] sm:$0xf]
        %v2576 = vld [vmem:[%s1067 + $0x4] sm:$0xf]
        %v2577 = vld [vmem:[%s1067 + $0x8] sm:$0xf]
        %v2578 = vld [vmem:[%s1067 + $0xc] sm:$0xf]
        %v2579 = vld [vmem:[%s1070] sm:$0x1]
        %v2581 = vlaneseq
        %v2582 = vshrl.u32 %v2581, 7
        %v2583 = vsub.s32 0, %v2582
        %v2584 = vrot.slane %v2579, %v2583
        %v2590 = vunpack.c.l.b16 %v2575
        %v2591 = vunpack.c.l.b16 %v2576
        %v2592 = vunpack.c.l.b16 %v2577
        %v2593 = vunpack.c.l.b16 %v2578
        %v2594 = vpack.c.b16 %v2591, %v2590
        %v2595 = vpack.c.b16 %v2593, %v2592
        %2598 = vmatprep.subr.bf16.mxu0 0
        %2599 = vmatpush1.bf16.msra.mxu0 %v2594
        %2600 = vmatprep.subr.bf16.mxu0 0
        %2601 = vmatpush1.bf16.msra.mxu0 %v2595
        %2602 = vmatprep.subr.bf16.mxu0 0
        %2603 = vmatpush1.bf16.msra.mxu0 0
        %2604 = vmatprep.subr.bf16.mxu0 0
        %2605 = vmatpush1.bf16.msra.mxu0 0
        %2606 = vmatprep.subr.bf16.mxu0 0
        %2607 = vmatpush1.bf16.msra.mxu0 0
        %2608 = vmatprep.subr.bf16.mxu0 0
        %2609 = vmatpush1.bf16.msra.mxu0 0
        %2610 = vmatprep.subr.bf16.mxu0 0
        %2611 = vmatpush1.bf16.msra.mxu0 0
        %2612 = vmatprep.subr.bf16.mxu0 0
        %2613 = vmatpush1.bf16.msra.mxu0 0
        %2614 = vmatprep.subr.bf16.mxu0 0
        %2615 = vmatpush1.bf16.msra.mxu0 0
        %2616 = vmatprep.subr.bf16.mxu0 0
        %2617 = vmatpush1.bf16.msra.mxu0 0
        %2618 = vmatprep.subr.bf16.mxu0 0
        %2619 = vmatpush1.bf16.msra.mxu0 0
        %2620 = vmatprep.subr.bf16.mxu0 0
        %2621 = vmatpush1.bf16.msra.mxu0 0
        %2622 = vmatprep.subr.bf16.mxu0 0
        %2623 = vmatpush1.bf16.msra.mxu0 0
        %2624 = vmatprep.subr.bf16.mxu0 0
        %2625 = vmatpush1.bf16.msra.mxu0 0
        %2626 = vmatprep.subr.bf16.mxu0 0
        %2627 = vmatpush1.bf16.msra.mxu0 0
        %2628 = vmatprep.subr.bf16.mxu0 0
        %2629 = vmatpush1.bf16.msra.mxu0 0
        %2630 = vmatprep.mubr.bf16.mxu0 0
        %2631 = vmatmul.mubr.bf16.gmra.mrb[0].mxu0 %v2532
        %v2632 = vpop.f32.mrb[0].mxu0
        %v2633 = vadd.f32 %v2584, %v2632
        %v2634 = vpop.f32.mrb[0].mxu0
        %v2635 = vpop.f32.mrb[0].mxu0
        %v2636 = vadd.f32 %v2584, %v2635
        %v2637 = vpop.f32.mrb[0].mxu0
        %2638 = vdwg.mxu0
        %v2639 = vxor.u32 %v2569, 2147483648
        %v2640 = vxor.u32 %v2572, 2147483648
        %v2641 = vmul.f32 %v2639, 1.442695
        %v2642 = vpow.pop %v2641
        %v2643 = vmul.f32 %v2640, 1.442695
        %v2644 = vpow.pop %v2643
        %v2645 = vadd.f32 %v2642, 1.0
        %v2646 = vadd.f32 %v2644, 1.0
        %v2647 = vrcp.pop %v2645
        %v2648 = vmul.f32 1.0, %v2647
        %v2649 = vrcp.pop %v2646
        %v2650 = vmul.f32 1.0, %v2649
        %v2651 = vmul.f32 %v2569, %v2648
        %v2652 = vmul.f32 %v2572, %v2650
        %v2653 = vmul.f32 %v2651, %v2633
        %v2654 = vmul.f32 %v2652, %v2636
        %v2655 = vpack.c.bf16 %v2654, %v2653
        %v2656 = vld [vmem:[%s1075] sm:$0xf]
        %v2657 = vld [vmem:[%s1075 + $0x4] sm:$0xf]
        %v2658 = vld [vmem:[%s1075 + $0x8] sm:$0xf]
        %v2659 = vld [vmem:[%s1075 + $0xc] sm:$0xf]
        %v2660 = vld [vmem:[%s1075 + $0x10] sm:$0xf]
        %v2661 = vld [vmem:[%s1075 + $0x14] sm:$0xf]
        %v2662 = vld [vmem:[%s1075 + $0x18] sm:$0xf]
        %v2663 = vld [vmem:[%s1075 + $0x1c] sm:$0xf]
        %v2664 = vld [vmem:[%s1078] sm:$0x1]
        %v2666 = vlaneseq
        %v2667 = vshrl.u32 %v2666, 7
        %v2668 = vsub.s32 0, %v2667
        %v2669 = vrot.slane %v2664, %v2668
        %v2679 = vunpack.c.l.b16 %v2656
        %v2680 = vunpack.c.l.b16 %v2657
        %v2681 = vunpack.c.l.b16 %v2658
        %v2682 = vunpack.c.l.b16 %v2659
        %v2683 = vunpack.c.l.b16 %v2660
        %v2684 = vunpack.c.l.b16 %v2661
        %v2685 = vunpack.c.l.b16 %v2662
        %v2686 = vunpack.c.l.b16 %v2663
        %v2687 = vpack.c.b16 %v2680, %v2679
        %v2688 = vpack.c.b16 %v2682, %v2681
        %v2689 = vpack.c.b16 %v2684, %v2683
        %v2690 = vpack.c.b16 %v2686, %v2685
        %vm2695 = vcmask 523264
        %v2697 = vsel %vm2695, %v2655, 0
        %2699 = vmatprep.subr.bf16.mxu0 0
        %2700 = vmatpush1.bf16.msra.mxu0 %v2687
        %2701 = vmatprep.subr.bf16.mxu0 0
        %2702 = vmatpush1.bf16.msra.mxu0 %v2688
        %2703 = vmatprep.subr.bf16.mxu0 0
        %2704 = vmatpush1.bf16.msra.mxu0 %v2689
        %2705 = vmatprep.subr.bf16.mxu0 0
        %2706 = vmatpush1.bf16.msra.mxu0 %v2690
        %2707 = vmatprep.subr.bf16.mxu0 0
        %2708 = vmatpush1.bf16.msra.mxu0 0
        %2709 = vmatprep.subr.bf16.mxu0 0
        %2710 = vmatpush1.bf16.msra.mxu0 0
        %2711 = vmatprep.subr.bf16.mxu0 0
        %2712 = vmatpush1.bf16.msra.mxu0 0
        %2713 = vmatprep.subr.bf16.mxu0 0
        %2714 = vmatpush1.bf16.msra.mxu0 0
        %2715 = vmatprep.subr.bf16.mxu0 0
        %2716 = vmatpush1.bf16.msra.mxu0 0
        %2717 = vmatprep.subr.bf16.mxu0 0
        %2718 = vmatpush1.bf16.msra.mxu0 0
        %2719 = vmatprep.subr.bf16.mxu0 0
        %2720 = vmatpush1.bf16.msra.mxu0 0
        %2721 = vmatprep.subr.bf16.mxu0 0
        %2722 = vmatpush1.bf16.msra.mxu0 0
        %2723 = vmatprep.subr.bf16.mxu0 0
        %2724 = vmatpush1.bf16.msra.mxu0 0
        %2725 = vmatprep.subr.bf16.mxu0 0
        %2726 = vmatpush1.bf16.msra.mxu0 0
        %2727 = vmatprep.subr.bf16.mxu0 0
        %2728 = vmatpush1.bf16.msra.mxu0 0
        %2729 = vmatprep.subr.bf16.mxu0 0
        %2730 = vmatpush1.bf16.msra.mxu0 0
        %2731 = vmatprep.mubr.bf16.mxu0 0
        %2732 = vmatmul.mubr.bf16.gmra.mrb[0].mxu0 %v2697
        %v2733 = vpop.f32.mrb[0].mxu0
        %v2734 = vadd.f32 %v2669, %v2733
        %v2735 = vpop.f32.mrb[0].mxu0
        %v2736 = vpop.f32.mrb[0].mxu0
        %v2737 = vadd.f32 %v2669, %v2736
        %v2738 = vpop.f32.mrb[0].mxu0
        %2739 = vdwg.mxu0
        %v2740 = vadd.f32 %v2461, %v2734
        %v2741 = vadd.f32 %v2462, %v2737
        %2742 = vst.msk [vmem:[#allocation2] sm:$0xff] %vm1324, %v2740
        %2743 = vst.msk [vmem:[#allocation2 + $0x8] sm:$0xff] %vm1324, %v2741
        %p2744 = scmp.eq.s32.totalorder %s39, 1
        // Predicated region
        $region133: #{virchow_forward.1} parent=127 // pred_check
          %p2745 = pneg %p2744
        $region134: #{virchow_forward.1} parent=127 // pred_check_branch
          %2747 = sbr.rel (%p2745) target = $region136
        $region135: #{virchow_forward.1} parent=127 // pred_region
          %v2748 = vld [vmem:[%s7] sm:$0x1]
          %v2749 = vld [vmem:[%s8] sm:$0x1]
          %v2750 = vsel %vm1324, %v2740, 0.0
          %2751 = vadd.xlane.f32.xlu0 %v2750
          %v2752 = vpop.xlane.xlu0 %2751
          %v2753 = vsel %vm1324, %v2741, 0.0
          %2754 = vadd.xlane.f32.xlu0 %v2753
          %v2755 = vpop.xlane.xlu0 %2754
          %v2756 = vmul.f32 %v2752, %v1331
          %v2757 = vmul.f32 %v2755, %v1331
          %v2758 = vsub.f32 %v2740, %v2756
          %v2759 = vsub.f32 %v2741, %v2757
          %v2760 = vmul.f32 %v2758, %v2758
          %v2761 = vmul.f32 %v2759, %v2759
          %v2762 = vsel %vm1324, %v2760, 0.0
          %2763 = vadd.xlane.f32.xlu0 %v2762
          %v2764 = vpop.xlane.xlu0 %2763
          %v2765 = vsel %vm1324, %v2761, 0.0
          %2766 = vadd.xlane.f32.xlu0 %v2765
          %v2767 = vpop.xlane.xlu0 %2766
          %v2768 = vmul.f32 %v2764, %v1331
          %v2769 = vmul.f32 %v2767, %v1331
          %v2770 = vadd.f32 %v2768, 1e-06
          %v2771 = vadd.f32 %v2769, 1e-06
          %v2772 = vrsqrt.pop %v2770
          %v2773 = vrsqrt.pop %v2771
          %v2774 = vmul.f32 %v2758, %v2772
          %v2775 = vmul.f32 %v2759, %v2773
          %v2777 = vlaneseq
          %v2778 = vshrl.u32 %v2777, 7
          %v2779 = vsub.s32 0, %v2778
          %v2780 = vrot.slane %v2748, %v2779
          %v2782 = vmul.f32 %v2774, %v2780
          %v2783 = vmul.f32 %v2775, %v2780
          %v2785 = vlaneseq
          %v2786 = vshrl.u32 %v2785, 7
          %v2787 = vsub.s32 0, %v2786
          %v2788 = vrot.slane %v2749, %v2787
          %v2790 = vadd.f32 %v2782, %v2788
          %v2791 = vadd.f32 %v2783, %v2788
          %v2792 = vld [vmem:[%s5] sm:$0x3]
          %v2794 = vsel %vm1654, %v2792, 0
          %2796 = vmatprep.subr.mxu0 0.0
          %2797 = vmatpush1.msra.mxu0 %v2790
          %2798 = vmatprep.subr.mxu0 0.0
          %2799 = vmatpush1.msra.mxu0 %v2791
          %2800 = vmatprep.subr.mxu0 0.0
          %2801 = vmatpush1.msra.mxu0 0.0
          %2802 = vmatprep.subr.mxu0 0.0
          %2803 = vmatpush1.msra.mxu0 0.0
          %2804 = vmatprep.subr.mxu0 0.0
          %2805 = vmatpush1.msra.mxu0 0.0
          %2806 = vmatprep.subr.mxu0 0.0
          %2807 = vmatpush1.msra.mxu0 0.0
          %2808 = vmatprep.subr.mxu0 0.0
          %2809 = vmatpush1.msra.mxu0 0.0
          %2810 = vmatprep.subr.mxu0 0.0
          %2811 = vmatpush1.msra.mxu0 0.0
          %2812 = vmatprep.subr.mxu0 0.0
          %2813 = vmatpush1.msra.mxu0 0.0
          %2814 = vmatprep.subr.mxu0 0.0
          %2815 = vmatpush1.msra.mxu0 0.0
          %2816 = vmatprep.subr.mxu0 0.0
          %2817 = vmatpush1.msra.mxu0 0.0
          %2818 = vmatprep.subr.mxu0 0.0
          %2819 = vmatpush1.msra.mxu0 0.0
          %2820 = vmatprep.subr.mxu0 0.0
          %2821 = vmatpush1.msra.mxu0 0.0
          %2822 = vmatprep.subr.mxu0 0.0
          %2823 = vmatpush1.msra.mxu0 0.0
          %2824 = vmatprep.subr.mxu0 0.0
          %2825 = vmatpush1.msra.mxu0 0.0
          %2826 = vmatprep.subr.mxu0 0.0
          %2827 = vmatpush1.msra.mxu0 0.0
          %2828 = vmatprep.subr.mxu0 0.0
          %2829 = vmatpush1.msra.mxu0 0.0
          %2830 = vmatprep.subr.mxu0 0.0
          %2831 = vmatpush1.msra.mxu0 0.0
          %2832 = vmatprep.subr.mxu0 0.0
          %2833 = vmatpush1.msra.mxu0 0.0
          %2834 = vmatprep.subr.mxu0 0.0
          %2835 = vmatpush1.msra.mxu0 0.0
          %2836 = vmatprep.subr.mxu0 0.0
          %2837 = vmatpush1.msra.mxu0 0.0
          %2838 = vmatprep.subr.mxu0 0.0
          %2839 = vmatpush1.msra.mxu0 0.0
          %2840 = vmatprep.subr.mxu0 0.0
          %2841 = vmatpush1.msra.mxu0 0.0
          %2842 = vmatprep.subr.mxu0 0.0
          %2843 = vmatpush1.msra.mxu0 0.0
          %2844 = vmatprep.subr.mxu0 0.0
          %2845 = vmatpush1.msra.mxu0 0.0
          %2846 = vmatprep.subr.mxu0 0.0
          %2847 = vmatpush1.msra.mxu0 0.0
          %2848 = vmatprep.subr.mxu0 0.0
          %2849 = vmatpush1.msra.mxu0 0.0
          %2850 = vmatprep.subr.mxu0 0.0
          %2851 = vmatpush1.msra.mxu0 0.0
          %2852 = vmatprep.subr.mxu0 0.0
          %2853 = vmatpush1.msra.mxu0 0.0
          %2854 = vmatprep.subr.mxu0 0.0
          %2855 = vmatpush1.msra.mxu0 0.0
          %2856 = vmatprep.subr.mxu0 0.0
          %2857 = vmatpush1.msra.mxu0 0.0
          %2858 = vmatprep.subr.mxu0 0.0
          %2859 = vmatpush1.msra.mxu0 0.0
          %2860 = vmatprep.mubr.f32.mxu0 0.0
          %2861 = vmatmul.mubr.f32.gmra.mrb[0].mxu0 %v2794
          %v2862 = vpop.f32.mrb[0].mxu0
          %v2863 = vadd.f32 0.0, %v2862
          %v2864 = vpop.f32.mrb[0].mxu0
          %2865 = vdwg.mxu0
          %v2866 = vld [vmem:[%s6] sm:$0x3]
          %v2868 = vsel %vm1654, %v2866, 0
          %2870 = vmatprep.subr.mxu0 0.0
          %2871 = vmatpush1.msra.mxu0 %v2790
          %2872 = vmatprep.subr.mxu0 0.0
          %2873 = vmatpush1.msra.mxu0 %v2791
          %2874 = vmatprep.subr.mxu0 0.0
          %2875 = vmatpush1.msra.mxu0 0.0
          %2876 = vmatprep.subr.mxu0 0.0
          %2877 = vmatpush1.msra.mxu0 0.0
          %2878 = vmatprep.subr.mxu0 0.0
          %2879 = vmatpush1.msra.mxu0 0.0
          %2880 = vmatprep.subr.mxu0 0.0
          %2881 = vmatpush1.msra.mxu0 0.0
          %2882 = vmatprep.subr.mxu0 0.0
          %2883 = vmatpush1.msra.mxu0 0.0
          %2884 = vmatprep.subr.mxu0 0.0
          %2885 = vmatpush1.msra.mxu0 0.0
          %2886 = vmatprep.subr.mxu0 0.0
          %2887 = vmatpush1.msra.mxu0 0.0
          %2888 = vmatprep.subr.mxu0 0.0
          %2889 = vmatpush1.msra.mxu0 0.0
          %2890 = vmatprep.subr.mxu0 0.0
          %2891 = vmatpush1.msra.mxu0 0.0
          %2892 = vmatprep.subr.mxu0 0.0
          %2893 = vmatpush1.msra.mxu0 0.0
          %2894 = vmatprep.subr.mxu0 0.0
          %2895 = vmatpush1.msra.mxu0 0.0
          %2896 = vmatprep.subr.mxu0 0.0
          %2897 = vmatpush1.msra.mxu0 0.0
          %2898 = vmatprep.subr.mxu0 0.0
          %2899 = vmatpush1.msra.mxu0 0.0
          %2900 = vmatprep.subr.mxu0 0.0
          %2901 = vmatpush1.msra.mxu0 0.0
          %2902 = vmatprep.subr.mxu0 0.0
          %2903 = vmatpush1.msra.mxu0 0.0
          %2904 = vmatprep.subr.mxu0 0.0
          %2905 = vmatpush1.msra.mxu0 0.0
          %2906 = vmatprep.subr.mxu0 0.0
          %2907 = vmatpush1.msra.mxu0 0.0
          %2908 = vmatprep.subr.mxu0 0.0
          %2909 = vmatpush1.msra.mxu0 0.0
          %2910 = vmatprep.subr.mxu0 0.0
          %2911 = vmatpush1.msra.mxu0 0.0
          %2912 = vmatprep.subr.mxu0 0.0
          %2913 = vmatpush1.msra.mxu0 0.0
          %2914 = vmatprep.subr.mxu0 0.0
          %2915 = vmatpush1.msra.mxu0 0.0
          %2916 = vmatprep.subr.mxu0 0.0
          %2917 = vmatpush1.msra.mxu0 0.0
          %2918 = vmatprep.subr.mxu0 0.0
          %2919 = vmatpush1.msra.mxu0 0.0
          %2920 = vmatprep.subr.mxu0 0.0
          %2921 = vmatpush1.msra.mxu0 0.0
          %2922 = vmatprep.subr.mxu0 0.0
          %2923 = vmatpush1.msra.mxu0 0.0
          %2924 = vmatprep.subr.mxu0 0.0
          %2925 = vmatpush1.msra.mxu0 0.0
          %2926 = vmatprep.subr.mxu0 0.0
          %2927 = vmatpush1.msra.mxu0 0.0
          %2928 = vmatprep.subr.mxu0 0.0
          %2929 = vmatpush1.msra.mxu0 0.0
          %2930 = vmatprep.subr.mxu0 0.0
          %2931 = vmatpush1.msra.mxu0 0.0
          %2932 = vmatprep.subr.mxu0 0.0
          %2933 = vmatpush1.msra.mxu0 0.0
          %2934 = vmatprep.mubr.f32.mxu0 0.0
          %2935 = vmatmul.mubr.f32.gmra.mrb[0].mxu0 %v2868
          %v2936 = vpop.f32.mrb[0].mxu0
          %v2937 = vadd.f32 0.0, %v2936
          %v2938 = vpop.f32.mrb[0].mxu0
          %2939 = vdwg.mxu0
          %2941 = vrot.lane.b32.xlu0 %v2937, 32
          %v2942 = vpop.permute.xlu0 %2941
          %v2944 = vsel %vm1324, %v2863, %v2942
          %v2945 = vsel %vm2695, %v2944, 0.0
          %2946 = vst [vmem:[#allocation3] sm:$0x3] %v2945
        $region136: #{virchow_forward.1} parent=127 // pred_fallthru
          _
        // Predicated region
        $region137: #{virchow_forward.1} parent=127 // pred_check
          %p2947 = pneg %p709
        $region138: #{virchow_forward.1} parent=127 // pred_check_branch
          %2949 = sbr.rel (%p2947) target = $region140
        $region139: #{virchow_forward.1} parent=127 // pred_region
          %s2951 = ssub.s32 32, 32
          %2952 = vsyncadd [#allocation4], %s2951
          %s2954 = sshll.u32 [#allocation3], 4
          %s2955 = int_to_ptr.vmem [resolvable:$true] %s2954
          %2957 = dma.vmem_to_hbm [thread:$0]  %s2955, 32, %s27, [#allocation4]
        $region140: #{virchow_forward.1} parent=127 // pred_fallthru
          _
        // Predicated region
        $region141: #{virchow_forward.1} parent=127 // pred_check
          %p2958 = pneg %p709
        $region142: #{virchow_forward.1} parent=127 // pred_check_branch
          %2960 = sbr.rel (%p2958) target = $region144
        $region143: #{virchow_forward.1} parent=127 // pred_region
          %2961 = dma.done [#allocation4], 32
        $region144: #{virchow_forward.1} parent=127 // pred_fallthru
          _
      $region128: #{virchow_forward.1} parent=5 // pred_fallthru
        _
      %p2962 = scmp.le.s32.totalorder 2, %s34
      // Predicated region
      $region145: #{virchow_forward.1} parent=5 // pred_check
        %p2963 = pneg %p2962
      $region146: #{virchow_forward.1} parent=5 // pred_check_branch
        %2965 = sbr.rel (%p2963) target = $region148
      $region147: #{virchow_forward.1} parent=5 // pred_region
        %s2966 = ssub.s32 %s34, 2
      $region148: #{virchow_forward.1} parent=5 // pred_fallthru
        _
    $region6: #{virchow_forward.1} parent=1 // loop_footer
      %s38 = sadd.s32 1, %s34
    $region7: #{virchow_forward.1} parent=1 // loop_footer_branch
      %33 = sbr.rel target = $region3
    $region8: #{virchow_forward.1} parent=1 // loop_exit
      _
    %2967 = vsyncpa [#allocation4], 1
    %s2968 = scalar_lea.sflag [#allocation4], 1
    %2969 = vsyncpa %s2968, 1

</llo_original>
